<compile_context>
chip_gen: v5e
topology: v5e:2x2
jax: 0.10.0
libtpu: 0.0.40
codegen_flags: <defaults>
</compile_context>

<pallas_src>
import functools
import math

import jax
import jax.numpy as jnp
from jax.experimental import pallas as pl
from jax.experimental.pallas import tpu as pltpu

# ----------------------------- small synthetic config -----------------------------
BATCH = 2
MAX_TEXT_LEN = 16          # max_length in the reference
VOCAB_SIZE = 100
HIDDEN = 32                # 768 in the reference, shrunk for a synthetic run
NUM_HEADS = 4
HEAD_DIM = HIDDEN // NUM_HEADS
NUM_LAYERS = 2
INTERMEDIATE = 64
FILTER_SIZE = 64
WINDOW_SIZES = (1, 2, 3, 4, 5, 6)
NUM_LABELS = 1
LN_EPS = 1e-12

_SQRT_HALF = 0.7071067811865476


# ----------------------------- in-kernel math helpers -----------------------------
def _layernorm(x, g, b, eps):
    """Row-wise layernorm in f32. x:[M,H], g/b:[1,H]."""
    mu = jnp.mean(x, axis=-1, keepdims=True)
    var = jnp.mean((x - mu) ** 2, axis=-1, keepdims=True)
    return (x - mu) * jax.lax.rsqrt(var + eps) * g + b


def _erf(x):
    # Abramowitz & Stegun 7.1.26 rational approximation (|abs err| < 1.5e-7).
    # Uses only exp / mul / add / div / select so it always lowers in Mosaic.
    a1, a2, a3, a4, a5 = (0.254829592, -0.284496736, 1.421413741,
                          -1.453152027, 1.061405429)
    p = 0.3275911
    ax = jnp.abs(x)
    t = 1.0 / (1.0 + p * ax)
    poly = ((((a5 * t + a4) * t + a3) * t + a2) * t + a1) * t
    y = 1.0 - poly * jnp.exp(-ax * ax)
    return jnp.where(x >= 0.0, y, -y)


def _gelu_exact(x):
    # Matches HF BERT's exact erf-GELU (not the tanh approx).
    return 0.5 * x * (1.0 + _erf(x * _SQRT_HALF))


# ----------------------------- the single fused kernel -----------------------------
def _bert_cnn_kernel(
        emb_ref, emb_g_ref, emb_b_ref, bias_ref,
        qkv_w_ref, qkv_b_ref, ao_w_ref, ao_b_ref, ln1_g_ref, ln1_b_ref,
        ff1_w_ref, ff1_b_ref, ff2_w_ref, ff2_b_ref, ln2_g_ref, ln2_b_ref,
        cw_ref, cb_ref, cmask_ref, fc_w_ref, fc_b_ref,
        o_ref, resid_ref,
        *, num_heads, num_layers, batch, seq_len, hidden, windows,
        filter_size, eps):
    layer = pl.program_id(0)
    bl = batch * seq_len
    d = hidden // num_heads
    n_win = len(windows)
    max_win = max(windows)

    # ---- prologue (layer 0): embedding layernorm into the VMEM-resident stream ----
    @pl.when(layer == 0)
    def _():
        resid_ref[...] = _layernorm(emb_ref[...], emb_g_ref[...], emb_b_ref[...], eps)

    xf = resid_ref[...]                               # [BL, H] f32 residual stream
    x_bf = xf.astype(jnp.bfloat16)

    # ---- fused QKV projection (1/sqrt(d) already folded into the Q columns) ----
    qkv = jnp.dot(x_bf, qkv_w_ref[...],
                  preferred_element_type=jnp.float32) + qkv_b_ref[...]   # [BL, 3H]
    qkvT = qkv.T                                      # [3H, BL] : one 2D XLU transpose

    def head_major(base):
        # rows [base, base+H) hold one projection, head-major (h*d + j).
        # Built from 8-aligned sublane slices + tiny 2D transposes + a leading-axis
        # stack only (all guaranteed Mosaic lowerings) -> [nh, BL, d].
        return jnp.stack(
            [qkvT[base + h * d: base + (h + 1) * d, :].T for h in range(num_heads)],
            axis=0)

    q_h = head_major(0).astype(jnp.bfloat16)
    k_h = head_major(hidden).astype(jnp.bfloat16)
    v_h = head_major(2 * hidden).astype(jnp.bfloat16)

    # ---- attention: all heads in two batched einsums.  Both batch rows share one
    #      token axis (BL); the precomputed additive bias holds both the BERT key
    #      padding mask and a -1e9 block mask that keeps batches apart (exp -> 0,
    #      so per-batch softmax is exact). ----
    s = jnp.einsum('hqd,hkd->hqk', q_h, k_h,
                   preferred_element_type=jnp.float32)                   # [nh, BL, BL]
    s = s + bias_ref[...]
    s = s - jnp.max(s, axis=-1, keepdims=True)
    p = jnp.exp(s)
    p = p * pl.reciprocal(jnp.sum(p, axis=-1, keepdims=True), approx=True)
    ctx_h = jnp.einsum('hqk,hkd->hqd', p.astype(jnp.bfloat16), v_h,
                       preferred_element_type=jnp.float32)               # [nh, BL, d]
    ctx = jnp.concatenate([ctx_h[h] for h in range(num_heads)], axis=-1)  # [BL, H]

    # ---- attention output projection + residual + LN1 ----
    attn = jnp.dot(ctx.astype(jnp.bfloat16), ao_w_ref[...],
                   preferred_element_type=jnp.float32) + ao_b_ref[...]
    x1 = _layernorm(xf + attn, ln1_g_ref[...], ln1_b_ref[...], eps)

    # ---- feed-forward (exact GELU, f32) + residual + LN2 ----
    h1 = jnp.dot(x1.astype(jnp.bfloat16), ff1_w_ref[...],
                 preferred_element_type=jnp.float32) + ff1_b_ref[...]
    h1 = _gelu_exact(h1)
    ff = jnp.dot(h1.astype(jnp.bfloat16), ff2_w_ref[...],
                 preferred_element_type=jnp.float32) + ff2_b_ref[...]
    x2 = _layernorm(x1 + ff, ln2_g_ref[...], ln2_b_ref[...], eps)
    resid_ref[...] = x2

    # ---- epilogue (last layer): fused CNN head ----
    @pl.when(layer == num_layers - 1)
    def _():
        # im2col slab built once: column block k holds rows shifted by k
        # (direction-unambiguous two-slice rotation; wrapped rows are masked
        # below before the max-pool).
        pieces = [x2]
        for k in range(1, max_win):
            pieces.append(jnp.concatenate([x2[k:, :], x2[:k, :]], axis=0))
        slab = jnp.concatenate(pieces, axis=-1).astype(jnp.bfloat16)     # [BL, 6H]

        # all 6 windows as ONE block matmul against the block-padded weight
        conv = jnp.dot(slab, cw_ref[...],
                       preferred_element_type=jnp.float32) + cb_ref[...]  # [BL, 6F]
        conv = jnp.maximum(conv, 0.0) * cmask_ref[...]   # ReLU; zero-fill invalid tails
        # layout-aligned global max-pool over the L axis
        pooled = jnp.max(conv.reshape(batch, seq_len, n_win * filter_size), axis=1)

        logits = jnp.dot(pooled.astype(jnp.bfloat16), fc_w_ref[...],
                         preferred_element_type=jnp.float32) + fc_b_ref[...]
        o_ref[...] = 1.0 / (1.0 + jnp.exp(-logits))


# ----------------------------- wrapper -----------------------------
def bert_cnn_forward(params, input_ids, attention_mask):
    B, L = input_ids.shape
    H, I, NL = HIDDEN, INTERMEDIATE, NUM_LAYERS
    NW, F = len(WINDOW_SIZES), FILTER_SIZE
    MW = max(WINDOW_SIZES)
    BL = B * L

    # Embedding gathers stay in plain JAX (no clean Pallas win at this size).
    emb = (jnp.take(params["word_emb"], input_ids, axis=0)
           + params["pos_emb"][None, :L, :]
           + params["type_emb"][0][None, None, :]).reshape(BL, H)
    # TODO(synk): embedding / hidden / head dropout treated as identity (eval semantics).

    # Additive attention bias over keys: BERT padding mask + cross-batch block mask.
    key_bias = (1.0 - attention_mask.astype(jnp.float32)) * -10000.0        # [B, L]
    same = (jnp.arange(B)[:, None] == jnp.arange(B)[None, :]).astype(jnp.float32)
    attn_bias = (jnp.kron(1.0 - same, jnp.full((L, L), -1e9, jnp.float32))
                 + key_bias.reshape(1, BL))                                  # [BL, BL]

    def lspec(a, b):   # per-layer stacked tensors [NL, a, b]
        return pl.BlockSpec((None, a, b), lambda l: (l, 0, 0))

    def cspec(a, b):   # tensors shared by every layer
        return pl.BlockSpec((a, b), lambda l: (0, 0))

    in_specs = [
        cspec(BL, H),             # emb
        cspec(1, H),              # emb_ln_g
        cspec(1, H),              # emb_ln_b
        cspec(BL, BL),            # attention bias
        lspec(H, 3 * H),          # qkv_w
        lspec(1, 3 * H),          # qkv_b
        lspec(H, H),              # ao_w
        lspec(1, H),              # ao_b
        lspec(1, H),              # ln1_g
        lspec(1, H),              # ln1_b
        lspec(H, I),              # ff1_w
        lspec(1, I),              # ff1_b
        lspec(I, H),              # ff2_w
        lspec(1, H),              # ff2_b
        lspec(1, H),              # ln2_g
        lspec(1, H),              # ln2_b
        cspec(MW * H, NW * F),    # conv_w (block-padded, all windows)
        cspec(1, NW * F),         # conv_b
        cspec(BL, NW * F),        # conv position-validity mask
        cspec(NW * F, NUM_LABELS),  # fc_w
        cspec(1, NUM_LABELS),     # fc_b
    ]

    probs = pl.pallas_call(
        functools.partial(
            _bert_cnn_kernel,
            num_heads=NUM_HEADS, num_layers=NL, batch=B, seq_len=L,
            hidden=H, windows=WINDOW_SIZES, filter_size=F, eps=LN_EPS),
        out_shape=jax.ShapeDtypeStruct((B, NUM_LABELS), jnp.float32),
        grid_spec=pltpu.PrefetchScalarGridSpec(
            num_scalar_prefetch=0,
            grid=(NL,),
            in_specs=in_specs,
            out_specs=pl.BlockSpec((B, NUM_LABELS), lambda l: (0, 0)),
            scratch_shapes=[pltpu.VMEM((BL, H), jnp.float32)]),
        compiler_params=pltpu.CompilerParams(
            dimension_semantics=("arbitrary",)),
    )(emb, params["emb_ln_g"], params["emb_ln_b"], attn_bias,
      params["qkv_w"], params["qkv_b"], params["ao_w"], params["ao_b"],
      params["ln1_g"], params["ln1_b"], params["ff1_w"], params["ff1_b"],
      params["ff2_w"], params["ff2_b"], params["ln2_g"], params["ln2_b"],
      params["conv_w"], params["conv_b"], params["conv_mask"],
      params["fc_w"], params["fc_b"])
    return probs[:, 0]                                  # .squeeze(1)


# ----------------------------- deterministic params (packed once) -----------------------------
def init_params(key):
    keys = iter(jax.random.split(key, 256))

    def nrm(shape, scale=0.02):
        return scale * jax.random.normal(next(keys), shape, dtype=jnp.float32)

    inv_sqrt_d = 1.0 / math.sqrt(HEAD_DIM)
    params = {
        "word_emb": nrm((VOCAB_SIZE, HIDDEN)),
        "pos_emb": nrm((MAX_TEXT_LEN, HIDDEN)),
        "type_emb": nrm((2, HIDDEN)),
        "emb_ln_g": jnp.ones((1, HIDDEN), jnp.float32),
        "emb_ln_b": jnp.zeros((1, HIDDEN), jnp.float32),
    }

    qkv_w, qkv_b, ao_w, ao_b = [], [], [], []
    ln1_g, ln1_b, ff1_w, ff1_b = [], [], [], []
    ff2_w, ff2_b, ln2_g, ln2_b = [], [], [], []
    for _ in range(NUM_LAYERS):
        q_w, k_w, v_w = nrm((HIDDEN, HIDDEN)), nrm((HIDDEN, HIDDEN)), nrm((HIDDEN, HIDDEN))
        q_bv, k_bv, v_bv = nrm((HIDDEN,)), nrm((HIDDEN,)), nrm((HIDDEN,))
        # fuse Q/K/V and fold the attention scale into the Q block (hoisted from the kernel)
        qkv_w.append(jnp.concatenate([q_w * inv_sqrt_d, k_w, v_w], axis=1))
        qkv_b.append(jnp.concatenate([q_bv * inv_sqrt_d, k_bv, v_bv]).reshape(1, 3 * HIDDEN))
        ao_w.append(nrm((HIDDEN, HIDDEN)))
        ao_b.append(nrm((HIDDEN,)).reshape(1, HIDDEN))
        ln1_g.append(jnp.ones((1, HIDDEN), jnp.float32))
        ln1_b.append(jnp.zeros((1, HIDDEN), jnp.float32))
        ff1_w.append(nrm((HIDDEN, INTERMEDIATE)))
        ff1_b.append(nrm((INTERMEDIATE,)).reshape(1, INTERMEDIATE))
        ff2_w.append(nrm((INTERMEDIATE, HIDDEN)))
        ff2_b.append(nrm((HIDDEN,)).reshape(1, HIDDEN))
        ln2_g.append(jnp.ones((1, HIDDEN), jnp.float32))
        ln2_b.append(jnp.zeros((1, HIDDEN), jnp.float32))

    params.update({
        "qkv_w": jnp.stack(qkv_w).astype(jnp.bfloat16),   # [NL, H, 3H]
        "qkv_b": jnp.stack(qkv_b),
        "ao_w": jnp.stack(ao_w).astype(jnp.bfloat16),
        "ao_b": jnp.stack(ao_b),
        "ln1_g": jnp.stack(ln1_g), "ln1_b": jnp.stack(ln1_b),
        "ff1_w": jnp.stack(ff1_w).astype(jnp.bfloat16),
        "ff1_b": jnp.stack(ff1_b),
        "ff2_w": jnp.stack(ff2_w).astype(jnp.bfloat16),
        "ff2_b": jnp.stack(ff2_b),
        "ln2_g": jnp.stack(ln2_g), "ln2_b": jnp.stack(ln2_b),
    })

    # conv weights initialized in torch Conv1d layout [F, H, win], then packed once
    # into a single block-padded [max_win*H, n_win*F] matrix (window i's taps occupy
    # its first win_i*H rows; zeros elsewhere).
    max_win = max(WINDOW_SIZES)
    w_blocks, b_blocks = [], []
    for win in WINDOW_SIZES:
        w_t = nrm((FILTER_SIZE, HIDDEN, win))            # torch layout
        b_t = nrm((FILTER_SIZE,))
        w_tap = jnp.transpose(w_t, (2, 1, 0)).reshape(win * HIDDEN, FILTER_SIZE)
        w_pad = jnp.zeros((max_win * HIDDEN, FILTER_SIZE), jnp.float32)
        w_pad = w_pad.at[:win * HIDDEN].set(w_tap)
        w_blocks.append(w_pad)
        b_blocks.append(b_t)
    params["conv_w"] = jnp.concatenate(w_blocks, axis=1).astype(jnp.bfloat16)  # [6H, 6F]
    params["conv_b"] = jnp.concatenate(b_blocks).reshape(1, -1)                 # [1, 6F]

    # static validity mask: position t is valid for window `win` iff t <= L - win
    t_idx = jnp.arange(MAX_TEXT_LEN)
    m_cols = [jnp.broadcast_to(
        (t_idx <= MAX_TEXT_LEN - win).astype(jnp.float32)[:, None],
        (MAX_TEXT_LEN, FILTER_SIZE)) for win in WINDOW_SIZES]
    params["conv_mask"] = jnp.tile(jnp.concatenate(m_cols, axis=1), (BATCH, 1))  # [BL, 6F]

    # final FC (torch Linear weight [out, in] -> packed [in, out])
    fc_w_t = nrm((NUM_LABELS, FILTER_SIZE * len(WINDOW_SIZES)))
    params["fc_w"] = jnp.transpose(fc_w_t).astype(jnp.bfloat16)                  # [6F, 1]
    params["fc_b"] = nrm((NUM_LABELS,)).reshape(1, NUM_LABELS)
    return params


# ----------------------------- main -----------------------------
if __name__ == "__main__":
    key = jax.random.PRNGKey(0)
    pkey, ikey = jax.random.split(key)
    params = init_params(pkey)

    input_ids = jax.random.randint(ikey, (BATCH, MAX_TEXT_LEN), 0, VOCAB_SIZE,
                                   dtype=jnp.int32)
    attention_mask = jnp.ones((BATCH, MAX_TEXT_LEN), dtype=jnp.int32)

    fwd = jax.jit(bert_cnn_forward)
    out = jax.block_until_ready(fwd(params, input_ids, attention_mask))

    assert out.shape == (BATCH,)
    assert bool(jnp.all(jnp.isfinite(out)))
    assert bool(jnp.all((out >= 0.0) & (out <= 1.0)))
    print("KERNEL_OK")
</pallas_src>

<mosaic_0001>
module attributes {stable_mosaic.version = 11 : i64} {
  func.func @_bert_cnn_kernel(%arg0: i32, %arg1: memref<32x32xf32, #tpu.memory_space<vmem>>, %arg2: memref<1x32xf32, #tpu.memory_space<vmem>>, %arg3: memref<1x32xf32, #tpu.memory_space<vmem>>, %arg4: memref<32x32xf32, #tpu.memory_space<vmem>>, %arg5: memref<1x32x96xbf16, #tpu.memory_space<vmem>>, %arg6: memref<1x1x96xf32, #tpu.memory_space<vmem>>, %arg7: memref<1x32x32xbf16, #tpu.memory_space<vmem>>, %arg8: memref<1x1x32xf32, #tpu.memory_space<vmem>>, %arg9: memref<1x1x32xf32, #tpu.memory_space<vmem>>, %arg10: memref<1x1x32xf32, #tpu.memory_space<vmem>>, %arg11: memref<1x32x64xbf16, #tpu.memory_space<vmem>>, %arg12: memref<1x1x64xf32, #tpu.memory_space<vmem>>, %arg13: memref<1x64x32xbf16, #tpu.memory_space<vmem>>, %arg14: memref<1x1x32xf32, #tpu.memory_space<vmem>>, %arg15: memref<1x1x32xf32, #tpu.memory_space<vmem>>, %arg16: memref<1x1x32xf32, #tpu.memory_space<vmem>>, %arg17: memref<192x384xbf16, #tpu.memory_space<vmem>>, %arg18: memref<1x384xf32, #tpu.memory_space<vmem>>, %arg19: memref<32x384xf32, #tpu.memory_space<vmem>>, %arg20: memref<384x1xbf16, #tpu.memory_space<vmem>>, %arg21: memref<1x1xf32, #tpu.memory_space<vmem>>, %arg22: memref<2x1xf32, #tpu.memory_space<vmem>>, %arg23: memref<32x32xf32, #tpu.memory_space<vmem>>) attributes {dimension_semantics = [#tpu.dimension_semantics<arbitrary>], iteration_bounds = array<i64: 2>, scalar_prefetch = 0 : i64, scratch_operands = 1 : i64, tpu.core_type = #tpu.core_type<tc>, window_params = [{pipeline_mode = #tpu.pipeline_mode<synchronous>, transform_indices = @transform_0, window_bounds = array<i64: 32, 32>}, {pipeline_mode = #tpu.pipeline_mode<synchronous>, transform_indices = @transform_1, window_bounds = array<i64: 1, 32>}, {pipeline_mode = #tpu.pipeline_mode<synchronous>, transform_indices = @transform_2, window_bounds = array<i64: 1, 32>}, {pipeline_mode = #tpu.pipeline_mode<synchronous>, transform_indices = @transform_3, window_bounds = array<i64: 32, 32>}, {transform_indices = @transform_4, window_bounds = array<i64: 1, 32, 96>}, {transform_indices = @transform_5, window_bounds = array<i64: 1, 1, 96>}, {transform_indices = @transform_6, window_bounds = array<i64: 1, 32, 32>}, {transform_indices = @transform_7, window_bounds = array<i64: 1, 1, 32>}, {transform_indices = @transform_8, window_bounds = array<i64: 1, 1, 32>}, {transform_indices = @transform_9, window_bounds = array<i64: 1, 1, 32>}, {transform_indices = @transform_10, window_bounds = array<i64: 1, 32, 64>}, {transform_indices = @transform_11, window_bounds = array<i64: 1, 1, 64>}, {transform_indices = @transform_12, window_bounds = array<i64: 1, 64, 32>}, {transform_indices = @transform_13, window_bounds = array<i64: 1, 1, 32>}, {transform_indices = @transform_14, window_bounds = array<i64: 1, 1, 32>}, {transform_indices = @transform_15, window_bounds = array<i64: 1, 1, 32>}, {pipeline_mode = #tpu.pipeline_mode<synchronous>, transform_indices = @transform_16, window_bounds = array<i64: 192, 384>}, {pipeline_mode = #tpu.pipeline_mode<synchronous>, transform_indices = @transform_17, window_bounds = array<i64: 1, 384>}, {pipeline_mode = #tpu.pipeline_mode<synchronous>, transform_indices = @transform_18, window_bounds = array<i64: 32, 384>}, {pipeline_mode = #tpu.pipeline_mode<synchronous>, transform_indices = @transform_19, window_bounds = array<i64: 384, 1>}, {pipeline_mode = #tpu.pipeline_mode<synchronous>, transform_indices = @transform_20, window_bounds = array<i64: 1, 1>}, {pipeline_mode = #tpu.pipeline_mode<synchronous>, transform_indices = @transform_21, window_bounds = array<i64: 2, 1>}]} {
    %c0_i32 = arith.constant 0 : i32
    %0 = arith.cmpi eq, %arg0, %c0_i32 : i32
    %1 = arith.extui %0 : i1 to i32
    %c0_i32_0 = arith.constant 0 : i32
    %2 = arith.cmpi ne, %1, %c0_i32_0 : i32
    scf.if %2 {
      %c0_75 = arith.constant 0 : index
      %c0_76 = arith.constant 0 : index
      %203 = vector.load %arg1[%c0_75, %c0_76] : memref<32x32xf32, #tpu.memory_space<vmem>>, vector<32x32xf32>
      %c0_77 = arith.constant 0 : index
      %c0_78 = arith.constant 0 : index
      %204 = vector.load %arg2[%c0_77, %c0_78] : memref<1x32xf32, #tpu.memory_space<vmem>>, vector<1x32xf32>
      %c0_79 = arith.constant 0 : index
      %c0_80 = arith.constant 0 : index
      %205 = vector.load %arg3[%c0_79, %c0_80] : memref<1x32xf32, #tpu.memory_space<vmem>>, vector<1x32xf32>
      %cst_81 = arith.constant dense<0.000000e+00> : vector<32xf32>
      %206 = vector.multi_reduction <add>, %203, %cst_81 [1] : vector<32x32xf32> to vector<32xf32>
      %207 = vector.shape_cast %206 : vector<32xf32> to vector<32x1xf32>
      %cst_82 = arith.constant 3.200000e+01 : f32
      %208 = vector.broadcast %cst_82 : f32 to vector<32x1xf32>
      %209 = arith.divf %207, %208 : vector<32x1xf32>
      %210 = vector.broadcast %209 : vector<32x1xf32> to vector<32x32xf32>
      %211 = arith.subf %203, %210 : vector<32x32xf32>
      %212 = arith.mulf %211, %211 : vector<32x32xf32>
      %cst_83 = arith.constant dense<0.000000e+00> : vector<32xf32>
      %213 = vector.multi_reduction <add>, %212, %cst_83 [1] : vector<32x32xf32> to vector<32xf32>
      %214 = vector.shape_cast %213 : vector<32xf32> to vector<32x1xf32>
      %cst_84 = arith.constant 3.200000e+01 : f32
      %215 = vector.broadcast %cst_84 : f32 to vector<32x1xf32>
      %216 = arith.divf %214, %215 : vector<32x1xf32>
      %217 = vector.broadcast %209 : vector<32x1xf32> to vector<32x32xf32>
      %218 = arith.subf %203, %217 : vector<32x32xf32>
      %cst_85 = arith.constant 9.99999996E-13 : f32
      %219 = vector.broadcast %cst_85 : f32 to vector<32x1xf32>
      %220 = arith.addf %216, %219 : vector<32x1xf32>
      %221 = math.rsqrt %220 : vector<32x1xf32>
      %222 = vector.broadcast %221 : vector<32x1xf32> to vector<32x32xf32>
      %223 = arith.mulf %218, %222 : vector<32x32xf32>
      %224 = vector.broadcast %204 : vector<1x32xf32> to vector<32x32xf32>
      %225 = arith.mulf %223, %224 : vector<32x32xf32>
      %226 = vector.broadcast %205 : vector<1x32xf32> to vector<32x32xf32>
      %227 = arith.addf %225, %226 : vector<32x32xf32>
      %c0_86 = arith.constant 0 : index
      %c0_87 = arith.constant 0 : index
      %228 = vector.load %arg23[%c0_86, %c0_87] : memref<32x32xf32, #tpu.memory_space<vmem>>, vector<32x32xf32>
      tpu.vector_store %arg23[%c0_86, %c0_87], %227 {strides = array<i32>} : memref<32x32xf32, #tpu.memory_space<vmem>>, vector<32x32xf32>,
    } else {
    }
    %c0 = arith.constant 0 : index
    %c0_1 = arith.constant 0 : index
    %3 = vector.load %arg23[%c0, %c0_1] : memref<32x32xf32, #tpu.memory_space<vmem>>, vector<32x32xf32>
    %4 = arith.truncf %3 : vector<32x32xf32> to vector<32x32xbf16>
    %c0_2 = arith.constant 0 : index
    %c0_3 = arith.constant 0 : index
    %c0_4 = arith.constant 0 : index
    %5 = vector.load %arg5[%c0_2, %c0_3, %c0_4] : memref<1x32x96xbf16, #tpu.memory_space<vmem>>, vector<1x32x96xbf16>
    %6 = vector.shape_cast %5 : vector<1x32x96xbf16> to vector<32x96xbf16>
    %cst = arith.constant dense<0.000000e+00> : vector<32x96xf32>
    %7 = tpu.matmul %4, %6, %cst {dimension_numbers = #tpu.dot_dimension_numbers<[1], [0], [0], [1], [0, 0, 1, 1], [], []>} : vector<32x32xbf16>, vector<32x96xbf16>, vector<32x96xf32> -> vector<32x96xf32>
    %c0_5 = arith.constant 0 : index
    %c0_6 = arith.constant 0 : index
    %c0_7 = arith.constant 0 : index
    %8 = vector.load %arg6[%c0_5, %c0_6, %c0_7] : memref<1x1x96xf32, #tpu.memory_space<vmem>>, vector<1x1x96xf32>
    %9 = vector.shape_cast %8 : vector<1x1x96xf32> to vector<1x96xf32>
    %10 = vector.broadcast %9 : vector<1x96xf32> to vector<32x96xf32>
    %11 = arith.addf %7, %10 : vector<32x96xf32>
    %12 = tpu.transpose %11, [1, 0] : vector<32x96xf32> -> vector<96x32xf32>
    %13 = vector.extract_strided_slice %12 {offsets = [0, 0], sizes = [8, 32], strides = [1, 1]} : vector<96x32xf32> to vector<8x32xf32>
    %14 = tpu.transpose %13, [1, 0] : vector<8x32xf32> -> vector<32x8xf32>
    %15 = vector.extract_strided_slice %12 {offsets = [8, 0], sizes = [8, 32], strides = [1, 1]} : vector<96x32xf32> to vector<8x32xf32>
    %16 = tpu.transpose %15, [1, 0] : vector<8x32xf32> -> vector<32x8xf32>
    %17 = vector.extract_strided_slice %12 {offsets = [16, 0], sizes = [8, 32], strides = [1, 1]} : vector<96x32xf32> to vector<8x32xf32>
    %18 = tpu.transpose %17, [1, 0] : vector<8x32xf32> -> vector<32x8xf32>
    %19 = vector.extract_strided_slice %12 {offsets = [24, 0], sizes = [8, 32], strides = [1, 1]} : vector<96x32xf32> to vector<8x32xf32>
    %20 = tpu.transpose %19, [1, 0] : vector<8x32xf32> -> vector<32x8xf32>
    %21 = vector.shape_cast %14 : vector<32x8xf32> to vector<1x32x8xf32>
    %22 = vector.shape_cast %16 : vector<32x8xf32> to vector<1x32x8xf32>
    %23 = vector.shape_cast %18 : vector<32x8xf32> to vector<1x32x8xf32>
    %24 = vector.shape_cast %20 : vector<32x8xf32> to vector<1x32x8xf32>
    %25 = tpu.concatenate %21, %22, %23, %24 in 0 : vector<1x32x8xf32>, vector<1x32x8xf32>, vector<1x32x8xf32>, vector<1x32x8xf32> -> vector<4x32x8xf32>
    %26 = arith.truncf %25 : vector<4x32x8xf32> to vector<4x32x8xbf16>
    %27 = vector.extract_strided_slice %12 {offsets = [32, 0], sizes = [8, 32], strides = [1, 1]} : vector<96x32xf32> to vector<8x32xf32>
    %28 = tpu.transpose %27, [1, 0] : vector<8x32xf32> -> vector<32x8xf32>
    %29 = vector.extract_strided_slice %12 {offsets = [40, 0], sizes = [8, 32], strides = [1, 1]} : vector<96x32xf32> to vector<8x32xf32>
    %30 = tpu.transpose %29, [1, 0] : vector<8x32xf32> -> vector<32x8xf32>
    %31 = vector.extract_strided_slice %12 {offsets = [48, 0], sizes = [8, 32], strides = [1, 1]} : vector<96x32xf32> to vector<8x32xf32>
    %32 = tpu.transpose %31, [1, 0] : vector<8x32xf32> -> vector<32x8xf32>
    %33 = vector.extract_strided_slice %12 {offsets = [56, 0], sizes = [8, 32], strides = [1, 1]} : vector<96x32xf32> to vector<8x32xf32>
    %34 = tpu.transpose %33, [1, 0] : vector<8x32xf32> -> vector<32x8xf32>
    %35 = vector.shape_cast %28 : vector<32x8xf32> to vector<1x32x8xf32>
    %36 = vector.shape_cast %30 : vector<32x8xf32> to vector<1x32x8xf32>
    %37 = vector.shape_cast %32 : vector<32x8xf32> to vector<1x32x8xf32>
    %38 = vector.shape_cast %34 : vector<32x8xf32> to vector<1x32x8xf32>
    %39 = tpu.concatenate %35, %36, %37, %38 in 0 : vector<1x32x8xf32>, vector<1x32x8xf32>, vector<1x32x8xf32>, vector<1x32x8xf32> -> vector<4x32x8xf32>
    %40 = arith.truncf %39 : vector<4x32x8xf32> to vector<4x32x8xbf16>
    %41 = vector.extract_strided_slice %12 {offsets = [64, 0], sizes = [8, 32], strides = [1, 1]} : vector<96x32xf32> to vector<8x32xf32>
    %42 = tpu.transpose %41, [1, 0] : vector<8x32xf32> -> vector<32x8xf32>
    %43 = vector.extract_strided_slice %12 {offsets = [72, 0], sizes = [8, 32], strides = [1, 1]} : vector<96x32xf32> to vector<8x32xf32>
    %44 = tpu.transpose %43, [1, 0] : vector<8x32xf32> -> vector<32x8xf32>
    %45 = vector.extract_strided_slice %12 {offsets = [80, 0], sizes = [8, 32], strides = [1, 1]} : vector<96x32xf32> to vector<8x32xf32>
    %46 = tpu.transpose %45, [1, 0] : vector<8x32xf32> -> vector<32x8xf32>
    %47 = vector.extract_strided_slice %12 {offsets = [88, 0], sizes = [8, 32], strides = [1, 1]} : vector<96x32xf32> to vector<8x32xf32>
    %48 = tpu.transpose %47, [1, 0] : vector<8x32xf32> -> vector<32x8xf32>
    %49 = vector.shape_cast %42 : vector<32x8xf32> to vector<1x32x8xf32>
    %50 = vector.shape_cast %44 : vector<32x8xf32> to vector<1x32x8xf32>
    %51 = vector.shape_cast %46 : vector<32x8xf32> to vector<1x32x8xf32>
    %52 = vector.shape_cast %48 : vector<32x8xf32> to vector<1x32x8xf32>
    %53 = tpu.concatenate %49, %50, %51, %52 in 0 : vector<1x32x8xf32>, vector<1x32x8xf32>, vector<1x32x8xf32>, vector<1x32x8xf32> -> vector<4x32x8xf32>
    %54 = arith.truncf %53 : vector<4x32x8xf32> to vector<4x32x8xbf16>
    "tpu.trace_start"() <{level = 10 : i32, message = "hqd,hkd->hqk"}> : () -> ()
    %cst_8 = arith.constant dense<0.000000e+00> : vector<4x32x32xf32>
    %55 = tpu.matmul %26, %40, %cst_8 {dimension_numbers = #tpu.dot_dimension_numbers<[2], [2], [1], [1], [0, 0, 0, 1, 1, 1], [0], [0]>} : vector<4x32x8xbf16>, vector<4x32x8xbf16>, vector<4x32x32xf32> -> vector<4x32x32xf32>
    "tpu.trace_stop"() : () -> ()
    %c0_9 = arith.constant 0 : index
    %c0_10 = arith.constant 0 : index
    %56 = vector.load %arg4[%c0_9, %c0_10] : memref<32x32xf32, #tpu.memory_space<vmem>>, vector<32x32xf32>
    %57 = vector.shape_cast %56 : vector<32x32xf32> to vector<1x32x32xf32>
    %58 = vector.broadcast %57 : vector<1x32x32xf32> to vector<4x32x32xf32>
    %59 = arith.addf %55, %58 : vector<4x32x32xf32>
    %cst_11 = arith.constant dense<0xFF800000> : vector<4x32xf32>
    %60 = vector.multi_reduction <maximumf>, %59, %cst_11 [2] : vector<4x32x32xf32> to vector<4x32xf32>
    %61 = vector.shape_cast %60 : vector<4x32xf32> to vector<4x32x1xf32>
    %62 = vector.broadcast %61 : vector<4x32x1xf32> to vector<4x32x32xf32>
    %63 = arith.subf %59, %62 : vector<4x32x32xf32>
    %64 = math.exp %63 : vector<4x32x32xf32>
    %cst_12 = arith.constant dense<0.000000e+00> : vector<4x32xf32>
    %65 = vector.multi_reduction <add>, %64, %cst_12 [2] : vector<4x32x32xf32> to vector<4x32xf32>
    %66 = vector.shape_cast %65 : vector<4x32xf32> to vector<4x32x1xf32>
    %67 = tpu.reciprocal %66 {approx = true} : vector<4x32x1xf32> -> vector<4x32x1xf32>
    %68 = vector.broadcast %67 : vector<4x32x1xf32> to vector<4x32x32xf32>
    %69 = arith.mulf %64, %68 : vector<4x32x32xf32>
    %70 = arith.truncf %69 : vector<4x32x32xf32> to vector<4x32x32xbf16>
    "tpu.trace_start"() <{level = 10 : i32, message = "hqk,hkd->hqd"}> : () -> ()
    %cst_13 = arith.constant dense<0.000000e+00> : vector<4x32x8xf32>
    %71 = tpu.matmul %70, %54, %cst_13 {dimension_numbers = #tpu.dot_dimension_numbers<[2], [1], [1], [2], [0, 0, 0, 1, 1, 2], [0], [0]>} : vector<4x32x32xbf16>, vector<4x32x8xbf16>, vector<4x32x8xf32> -> vector<4x32x8xf32>
    "tpu.trace_stop"() : () -> ()
    %72 = vector.extract_strided_slice %71 {offsets = [0, 0, 0], sizes = [1, 32, 8], strides = [1, 1, 1]} : vector<4x32x8xf32> to vector<1x32x8xf32>
    %73 = vector.shape_cast %72 : vector<1x32x8xf32> to vector<32x8xf32>
    %74 = vector.extract_strided_slice %71 {offsets = [1, 0, 0], sizes = [1, 32, 8], strides = [1, 1, 1]} : vector<4x32x8xf32> to vector<1x32x8xf32>
    %75 = vector.shape_cast %74 : vector<1x32x8xf32> to vector<32x8xf32>
    %76 = vector.extract_strided_slice %71 {offsets = [2, 0, 0], sizes = [1, 32, 8], strides = [1, 1, 1]} : vector<4x32x8xf32> to vector<1x32x8xf32>
    %77 = vector.shape_cast %76 : vector<1x32x8xf32> to vector<32x8xf32>
    %78 = vector.extract_strided_slice %71 {offsets = [3, 0, 0], sizes = [1, 32, 8], strides = [1, 1, 1]} : vector<4x32x8xf32> to vector<1x32x8xf32>
    %79 = vector.shape_cast %78 : vector<1x32x8xf32> to vector<32x8xf32>
    %80 = tpu.concatenate %73, %75, %77, %79 in 1 : vector<32x8xf32>, vector<32x8xf32>, vector<32x8xf32>, vector<32x8xf32> -> vector<32x32xf32>
    %81 = arith.truncf %80 : vector<32x32xf32> to vector<32x32xbf16>
    %c0_14 = arith.constant 0 : index
    %c0_15 = arith.constant 0 : index
    %c0_16 = arith.constant 0 : index
    %82 = vector.load %arg7[%c0_14, %c0_15, %c0_16] : memref<1x32x32xbf16, #tpu.memory_space<vmem>>, vector<1x32x32xbf16>
    %83 = vector.shape_cast %82 : vector<1x32x32xbf16> to vector<32x32xbf16>
    %cst_17 = arith.constant dense<0.000000e+00> : vector<32x32xf32>
    %84 = tpu.matmul %81, %83, %cst_17 {dimension_numbers = #tpu.dot_dimension_numbers<[1], [0], [0], [1], [0, 0, 1, 1], [], []>} : vector<32x32xbf16>, vector<32x32xbf16>, vector<32x32xf32> -> vector<32x32xf32>
    %c0_18 = arith.constant 0 : index
    %c0_19 = arith.constant 0 : index
    %c0_20 = arith.constant 0 : index
    %85 = vector.load %arg8[%c0_18, %c0_19, %c0_20] : memref<1x1x32xf32, #tpu.memory_space<vmem>>, vector<1x1x32xf32>
    %86 = vector.shape_cast %85 : vector<1x1x32xf32> to vector<1x32xf32>
    %87 = vector.broadcast %86 : vector<1x32xf32> to vector<32x32xf32>
    %88 = arith.addf %84, %87 : vector<32x32xf32>
    %89 = arith.addf %3, %88 : vector<32x32xf32>
    %c0_21 = arith.constant 0 : index
    %c0_22 = arith.constant 0 : index
    %c0_23 = arith.constant 0 : index
    %90 = vector.load %arg9[%c0_21, %c0_22, %c0_23] : memref<1x1x32xf32, #tpu.memory_space<vmem>>, vector<1x1x32xf32>
    %91 = vector.shape_cast %90 : vector<1x1x32xf32> to vector<1x32xf32>
    %c0_24 = arith.constant 0 : index
    %c0_25 = arith.constant 0 : index
    %c0_26 = arith.constant 0 : index
    %92 = vector.load %arg10[%c0_24, %c0_25, %c0_26] : memref<1x1x32xf32, #tpu.memory_space<vmem>>, vector<1x1x32xf32>
    %93 = vector.shape_cast %92 : vector<1x1x32xf32> to vector<1x32xf32>
    %cst_27 = arith.constant dense<0.000000e+00> : vector<32xf32>
    %94 = vector.multi_reduction <add>, %89, %cst_27 [1] : vector<32x32xf32> to vector<32xf32>
    %95 = vector.shape_cast %94 : vector<32xf32> to vector<32x1xf32>
    %cst_28 = arith.constant 3.200000e+01 : f32
    %96 = vector.broadcast %cst_28 : f32 to vector<32x1xf32>
    %97 = arith.divf %95, %96 : vector<32x1xf32>
    %98 = vector.broadcast %97 : vector<32x1xf32> to vector<32x32xf32>
    %99 = arith.subf %89, %98 : vector<32x32xf32>
    %100 = arith.mulf %99, %99 : vector<32x32xf32>
    %cst_29 = arith.constant dense<0.000000e+00> : vector<32xf32>
    %101 = vector.multi_reduction <add>, %100, %cst_29 [1] : vector<32x32xf32> to vector<32xf32>
    %102 = vector.shape_cast %101 : vector<32xf32> to vector<32x1xf32>
    %cst_30 = arith.constant 3.200000e+01 : f32
    %103 = vector.broadcast %cst_30 : f32 to vector<32x1xf32>
    %104 = arith.divf %102, %103 : vector<32x1xf32>
    %105 = vector.broadcast %97 : vector<32x1xf32> to vector<32x32xf32>
    %106 = arith.subf %89, %105 : vector<32x32xf32>
    %cst_31 = arith.constant 9.99999996E-13 : f32
    %107 = vector.broadcast %cst_31 : f32 to vector<32x1xf32>
    %108 = arith.addf %104, %107 : vector<32x1xf32>
    %109 = math.rsqrt %108 : vector<32x1xf32>
    %110 = vector.broadcast %109 : vector<32x1xf32> to vector<32x32xf32>
    %111 = arith.mulf %106, %110 : vector<32x32xf32>
    %112 = vector.broadcast %91 : vector<1x32xf32> to vector<32x32xf32>
    %113 = arith.mulf %111, %112 : vector<32x32xf32>
    %114 = vector.broadcast %93 : vector<1x32xf32> to vector<32x32xf32>
    %115 = arith.addf %113, %114 : vector<32x32xf32>
    %116 = arith.truncf %115 : vector<32x32xf32> to vector<32x32xbf16>
    %c0_32 = arith.constant 0 : index
    %c0_33 = arith.constant 0 : index
    %c0_34 = arith.constant 0 : index
    %117 = vector.load %arg11[%c0_32, %c0_33, %c0_34] : memref<1x32x64xbf16, #tpu.memory_space<vmem>>, vector<1x32x64xbf16>
    %118 = vector.shape_cast %117 : vector<1x32x64xbf16> to vector<32x64xbf16>
    %cst_35 = arith.constant dense<0.000000e+00> : vector<32x64xf32>
    %119 = tpu.matmul %116, %118, %cst_35 {dimension_numbers = #tpu.dot_dimension_numbers<[1], [0], [0], [1], [0, 0, 1, 1], [], []>} : vector<32x32xbf16>, vector<32x64xbf16>, vector<32x64xf32> -> vector<32x64xf32>
    %c0_36 = arith.constant 0 : index
    %c0_37 = arith.constant 0 : index
    %c0_38 = arith.constant 0 : index
    %120 = vector.load %arg12[%c0_36, %c0_37, %c0_38] : memref<1x1x64xf32, #tpu.memory_space<vmem>>, vector<1x1x64xf32>
    %121 = vector.shape_cast %120 : vector<1x1x64xf32> to vector<1x64xf32>
    %122 = vector.broadcast %121 : vector<1x64xf32> to vector<32x64xf32>
    %123 = arith.addf %119, %122 : vector<32x64xf32>
    %cst_39 = arith.constant 5.000000e-01 : f32
    %124 = vector.broadcast %cst_39 : f32 to vector<32x64xf32>
    %125 = arith.mulf %124, %123 : vector<32x64xf32>
    %cst_40 = arith.constant 0.707106769 : f32
    %126 = vector.broadcast %cst_40 : f32 to vector<32x64xf32>
    %127 = arith.mulf %123, %126 : vector<32x64xf32>
    %128 = math.absf %127 : vector<32x64xf32>
    %cst_41 = arith.constant 0.327591091 : f32
    %129 = vector.broadcast %cst_41 : f32 to vector<32x64xf32>
    %130 = arith.mulf %129, %128 : vector<32x64xf32>
    %cst_42 = arith.constant 1.000000e+00 : f32
    %131 = vector.broadcast %cst_42 : f32 to vector<32x64xf32>
    %132 = arith.addf %131, %130 : vector<32x64xf32>
    %cst_43 = arith.constant 1.000000e+00 : f32
    %133 = vector.broadcast %cst_43 : f32 to vector<32x64xf32>
    %134 = arith.divf %133, %132 : vector<32x64xf32>
    %cst_44 = arith.constant 1.06140542 : f32
    %135 = vector.broadcast %cst_44 : f32 to vector<32x64xf32>
    %136 = arith.mulf %135, %134 : vector<32x64xf32>
    %cst_45 = arith.constant -1.45315206 : f32
    %137 = vector.broadcast %cst_45 : f32 to vector<32x64xf32>
    %138 = arith.addf %136, %137 : vector<32x64xf32>
    %139 = arith.mulf %138, %134 : vector<32x64xf32>
    %cst_46 = arith.constant 1.42141378 : f32
    %140 = vector.broadcast %cst_46 : f32 to vector<32x64xf32>
    %141 = arith.addf %139, %140 : vector<32x64xf32>
    %142 = arith.mulf %141, %134 : vector<32x64xf32>
    %cst_47 = arith.constant -0.284496725 : f32
    %143 = vector.broadcast %cst_47 : f32 to vector<32x64xf32>
    %144 = arith.addf %142, %143 : vector<32x64xf32>
    %145 = arith.mulf %144, %134 : vector<32x64xf32>
    %cst_48 = arith.constant 0.254829586 : f32
    %146 = vector.broadcast %cst_48 : f32 to vector<32x64xf32>
    %147 = arith.addf %145, %146 : vector<32x64xf32>
    %148 = arith.mulf %147, %134 : vector<32x64xf32>
    %cst_49 = arith.constant 0.000000e+00 : f32
    %149 = vector.broadcast %cst_49 : f32 to vector<32x64xf32>
    %150 = arith.subf %149, %128 : vector<32x64xf32>
    %151 = arith.mulf %150, %128 : vector<32x64xf32>
    %152 = math.exp %151 : vector<32x64xf32>
    %153 = arith.mulf %148, %152 : vector<32x64xf32>
    %cst_50 = arith.constant 1.000000e+00 : f32
    %154 = vector.broadcast %cst_50 : f32 to vector<32x64xf32>
    %155 = arith.subf %154, %153 : vector<32x64xf32>
    %cst_51 = arith.constant 0.000000e+00 : f32
    %156 = vector.broadcast %cst_51 : f32 to vector<32x64xf32>
    %157 = arith.cmpf oge, %127, %156 : vector<32x64xf32>
    %cst_52 = arith.constant 0.000000e+00 : f32
    %158 = vector.broadcast %cst_52 : f32 to vector<32x64xf32>
    %159 = arith.subf %158, %155 : vector<32x64xf32>
    %160 = arith.select %157, %155, %159 : vector<32x64xi1>, vector<32x64xf32>
    %cst_53 = arith.constant 1.000000e+00 : f32
    %161 = vector.broadcast %cst_53 : f32 to vector<32x64xf32>
    %162 = arith.addf %161, %160 : vector<32x64xf32>
    %163 = arith.mulf %125, %162 : vector<32x64xf32>
    %164 = arith.truncf %163 : vector<32x64xf32> to vector<32x64xbf16>
    %c0_54 = arith.constant 0 : index
    %c0_55 = arith.constant 0 : index
    %c0_56 = arith.constant 0 : index
    %165 = vector.load %arg13[%c0_54, %c0_55, %c0_56] : memref<1x64x32xbf16, #tpu.memory_space<vmem>>, vector<1x64x32xbf16>
    %166 = vector.shape_cast %165 : vector<1x64x32xbf16> to vector<64x32xbf16>
    %cst_57 = arith.constant dense<0.000000e+00> : vector<32x32xf32>
    %167 = tpu.matmul %164, %166, %cst_57 {dimension_numbers = #tpu.dot_dimension_numbers<[1], [0], [0], [1], [0, 0, 1, 1], [], []>} : vector<32x64xbf16>, vector<64x32xbf16>, vector<32x32xf32> -> vector<32x32xf32>
    %c0_58 = arith.constant 0 : index
    %c0_59 = arith.constant 0 : index
    %c0_60 = arith.constant 0 : index
    %168 = vector.load %arg14[%c0_58, %c0_59, %c0_60] : memref<1x1x32xf32, #tpu.memory_space<vmem>>, vector<1x1x32xf32>
    %169 = vector.shape_cast %168 : vector<1x1x32xf32> to vector<1x32xf32>
    %170 = vector.broadcast %169 : vector<1x32xf32> to vector<32x32xf32>
    %171 = arith.addf %167, %170 : vector<32x32xf32>
    %172 = arith.addf %115, %171 : vector<32x32xf32>
    %c0_61 = arith.constant 0 : index
    %c0_62 = arith.constant 0 : index
    %c0_63 = arith.constant 0 : index
    %173 = vector.load %arg15[%c0_61, %c0_62, %c0_63] : memref<1x1x32xf32, #tpu.memory_space<vmem>>, vector<1x1x32xf32>
    %174 = vector.shape_cast %173 : vector<1x1x32xf32> to vector<1x32xf32>
    %c0_64 = arith.constant 0 : index
    %c0_65 = arith.constant 0 : index
    %c0_66 = arith.constant 0 : index
    %175 = vector.load %arg16[%c0_64, %c0_65, %c0_66] : memref<1x1x32xf32, #tpu.memory_space<vmem>>, vector<1x1x32xf32>
    %176 = vector.shape_cast %175 : vector<1x1x32xf32> to vector<1x32xf32>
    %cst_67 = arith.constant dense<0.000000e+00> : vector<32xf32>
    %177 = vector.multi_reduction <add>, %172, %cst_67 [1] : vector<32x32xf32> to vector<32xf32>
    %178 = vector.shape_cast %177 : vector<32xf32> to vector<32x1xf32>
    %cst_68 = arith.constant 3.200000e+01 : f32
    %179 = vector.broadcast %cst_68 : f32 to vector<32x1xf32>
    %180 = arith.divf %178, %179 : vector<32x1xf32>
    %181 = vector.broadcast %180 : vector<32x1xf32> to vector<32x32xf32>
    %182 = arith.subf %172, %181 : vector<32x32xf32>
    %183 = arith.mulf %182, %182 : vector<32x32xf32>
    %cst_69 = arith.constant dense<0.000000e+00> : vector<32xf32>
    %184 = vector.multi_reduction <add>, %183, %cst_69 [1] : vector<32x32xf32> to vector<32xf32>
    %185 = vector.shape_cast %184 : vector<32xf32> to vector<32x1xf32>
    %cst_70 = arith.constant 3.200000e+01 : f32
    %186 = vector.broadcast %cst_70 : f32 to vector<32x1xf32>
    %187 = arith.divf %185, %186 : vector<32x1xf32>
    %188 = vector.broadcast %180 : vector<32x1xf32> to vector<32x32xf32>
    %189 = arith.subf %172, %188 : vector<32x32xf32>
    %cst_71 = arith.constant 9.99999996E-13 : f32
    %190 = vector.broadcast %cst_71 : f32 to vector<32x1xf32>
    %191 = arith.addf %187, %190 : vector<32x1xf32>
    %192 = math.rsqrt %191 : vector<32x1xf32>
    %193 = vector.broadcast %192 : vector<32x1xf32> to vector<32x32xf32>
    %194 = arith.mulf %189, %193 : vector<32x32xf32>
    %195 = vector.broadcast %174 : vector<1x32xf32> to vector<32x32xf32>
    %196 = arith.mulf %194, %195 : vector<32x32xf32>
    %197 = vector.broadcast %176 : vector<1x32xf32> to vector<32x32xf32>
    %198 = arith.addf %196, %197 : vector<32x32xf32>
    %c0_72 = arith.constant 0 : index
    %c0_73 = arith.constant 0 : index
    %199 = vector.load %arg23[%c0_72, %c0_73] : memref<32x32xf32, #tpu.memory_space<vmem>>, vector<32x32xf32>
    tpu.vector_store %arg23[%c0_72, %c0_73], %198 {strides = array<i32>} : memref<32x32xf32, #tpu.memory_space<vmem>>, vector<32x32xf32>,
    %c1_i32 = arith.constant 1 : i32
    %200 = arith.cmpi eq, %arg0, %c1_i32 : i32
    %201 = arith.extui %200 : i1 to i32
    %c0_i32_74 = arith.constant 0 : i32
    %202 = arith.cmpi ne, %201, %c0_i32_74 : i32
    scf.if %202 {
      %203 = vector.extract_strided_slice %198 {offsets = [1, 0], sizes = [31, 32], strides = [1, 1]} : vector<32x32xf32> to vector<31x32xf32>
      %204 = vector.extract_strided_slice %198 {offsets = [0, 0], sizes = [1, 32], strides = [1, 1]} : vector<32x32xf32> to vector<1x32xf32>
      %205 = tpu.concatenate %203, %204 in 0 : vector<31x32xf32>, vector<1x32xf32> -> vector<32x32xf32>
      %206 = vector.extract_strided_slice %198 {offsets = [2, 0], sizes = [30, 32], strides = [1, 1]} : vector<32x32xf32> to vector<30x32xf32>
      %207 = vector.extract_strided_slice %198 {offsets = [0, 0], sizes = [2, 32], strides = [1, 1]} : vector<32x32xf32> to vector<2x32xf32>
      %208 = tpu.concatenate %206, %207 in 0 : vector<30x32xf32>, vector<2x32xf32> -> vector<32x32xf32>
      %209 = vector.extract_strided_slice %198 {offsets = [3, 0], sizes = [29, 32], strides = [1, 1]} : vector<32x32xf32> to vector<29x32xf32>
      %210 = vector.extract_strided_slice %198 {offsets = [0, 0], sizes = [3, 32], strides = [1, 1]} : vector<32x32xf32> to vector<3x32xf32>
      %211 = tpu.concatenate %209, %210 in 0 : vector<29x32xf32>, vector<3x32xf32> -> vector<32x32xf32>
      %212 = vector.extract_strided_slice %198 {offsets = [4, 0], sizes = [28, 32], strides = [1, 1]} : vector<32x32xf32> to vector<28x32xf32>
      %213 = vector.extract_strided_slice %198 {offsets = [0, 0], sizes = [4, 32], strides = [1, 1]} : vector<32x32xf32> to vector<4x32xf32>
      %214 = tpu.concatenate %212, %213 in 0 : vector<28x32xf32>, vector<4x32xf32> -> vector<32x32xf32>
      %215 = vector.extract_strided_slice %198 {offsets = [5, 0], sizes = [27, 32], strides = [1, 1]} : vector<32x32xf32> to vector<27x32xf32>
      %216 = vector.extract_strided_slice %198 {offsets = [0, 0], sizes = [5, 32], strides = [1, 1]} : vector<32x32xf32> to vector<5x32xf32>
      %217 = tpu.concatenate %215, %216 in 0 : vector<27x32xf32>, vector<5x32xf32> -> vector<32x32xf32>
      %218 = tpu.concatenate %198, %205, %208, %211, %214, %217 in 1 : vector<32x32xf32>, vector<32x32xf32>, vector<32x32xf32>, vector<32x32xf32>, vector<32x32xf32>, vector<32x32xf32> -> vector<32x192xf32>
      %219 = arith.truncf %218 : vector<32x192xf32> to vector<32x192xbf16>
      %c0_75 = arith.constant 0 : index
      %c0_76 = arith.constant 0 : index
      %220 = vector.load %arg17[%c0_75, %c0_76] : memref<192x384xbf16, #tpu.memory_space<vmem>>, vector<192x384xbf16>
      %cst_77 = arith.constant dense<0.000000e+00> : vector<32x384xf32>
      %221 = tpu.matmul %219, %220, %cst_77 {dimension_numbers = #tpu.dot_dimension_numbers<[1], [0], [0], [1], [0, 0, 1, 1], [], []>} : vector<32x192xbf16>, vector<192x384xbf16>, vector<32x384xf32> -> vector<32x384xf32>
      %c0_78 = arith.constant 0 : index
      %c0_79 = arith.constant 0 : index
      %222 = vector.load %arg18[%c0_78, %c0_79] : memref<1x384xf32, #tpu.memory_space<vmem>>, vector<1x384xf32>
      %223 = vector.broadcast %222 : vector<1x384xf32> to vector<32x384xf32>
      %224 = arith.addf %221, %223 : vector<32x384xf32>
      %cst_80 = arith.constant 0.000000e+00 : f32
      %225 = vector.broadcast %cst_80 : f32 to vector<32x384xf32>
      %226 = arith.maximumf %224, %225 : vector<32x384xf32>
      %c0_81 = arith.constant 0 : index
      %c0_82 = arith.constant 0 : index
      %227 = vector.load %arg19[%c0_81, %c0_82] : memref<32x384xf32, #tpu.memory_space<vmem>>, vector<32x384xf32>
      %228 = arith.mulf %226, %227 : vector<32x384xf32>
      %229 = vector.shape_cast %228 : vector<32x384xf32> to vector<2x16x384xf32>
      %cst_83 = arith.constant dense<0xFF800000> : vector<2x384xf32>
      %230 = vector.multi_reduction <maximumf>, %229, %cst_83 [1] : vector<2x16x384xf32> to vector<2x384xf32>
      %231 = arith.truncf %230 : vector<2x384xf32> to vector<2x384xbf16>
      %c0_84 = arith.constant 0 : index
      %c0_85 = arith.constant 0 : index
      %232 = vector.load %arg20[%c0_84, %c0_85] : memref<384x1xbf16, #tpu.memory_space<vmem>>, vector<384x1xbf16>
      %cst_86 = arith.constant dense<0.000000e+00> : vector<2x1xf32>
      %233 = tpu.matmul %231, %232, %cst_86 {dimension_numbers = #tpu.dot_dimension_numbers<[1], [0], [0], [1], [0, 0, 1, 1], [], []>} : vector<2x384xbf16>, vector<384x1xbf16>, vector<2x1xf32> -> vector<2x1xf32>
      %c0_87 = arith.constant 0 : index
      %c0_88 = arith.constant 0 : index
      %234 = vector.load %arg21[%c0_87, %c0_88] : memref<1x1xf32, #tpu.memory_space<vmem>>, vector<1x1xf32>
      %235 = vector.broadcast %234 : vector<1x1xf32> to vector<2x1xf32>
      %236 = arith.addf %233, %235 : vector<2x1xf32>
      %cst_89 = arith.constant 0.000000e+00 : f32
      %237 = vector.broadcast %cst_89 : f32 to vector<2x1xf32>
      %238 = arith.subf %237, %236 : vector<2x1xf32>
      %239 = math.exp %238 : vector<2x1xf32>
      %cst_90 = arith.constant 1.000000e+00 : f32
      %240 = vector.broadcast %cst_90 : f32 to vector<2x1xf32>
      %241 = arith.addf %240, %239 : vector<2x1xf32>
      %cst_91 = arith.constant 1.000000e+00 : f32
      %242 = vector.broadcast %cst_91 : f32 to vector<2x1xf32>
      %243 = arith.divf %242, %241 : vector<2x1xf32>
      %c0_92 = arith.constant 0 : index
      %c0_93 = arith.constant 0 : index
      %244 = vector.load %arg22[%c0_92, %c0_93] : memref<2x1xf32, #tpu.memory_space<vmem>>, vector<2x1xf32>
      tpu.vector_store %arg22[%c0_92, %c0_93], %243 {strides = array<i32>} : memref<2x1xf32, #tpu.memory_space<vmem>>, vector<2x1xf32>,
    } else {
    }
    return
  }
  func.func @transform_0(%arg0: i32) -> (i32, i32) {
    %c0_i32 = arith.constant 0 : i32
    %c0_i32_0 = arith.constant 0 : i32
    %c0_i32_1 = arith.constant 0 : i32
    return %c0_i32, %c0_i32_0 : i32, i32
  }
  func.func @transform_1(%arg0: i32) -> (i32, i32) {
    %c0_i32 = arith.constant 0 : i32
    %c0_i32_0 = arith.constant 0 : i32
    %c0_i32_1 = arith.constant 0 : i32
    return %c0_i32, %c0_i32_0 : i32, i32
  }
  func.func @transform_2(%arg0: i32) -> (i32, i32) {
    %c0_i32 = arith.constant 0 : i32
    %c0_i32_0 = arith.constant 0 : i32
    %c0_i32_1 = arith.constant 0 : i32
    return %c0_i32, %c0_i32_0 : i32, i32
  }
  func.func @transform_3(%arg0: i32) -> (i32, i32) {
    %c0_i32 = arith.constant 0 : i32
    %c0_i32_0 = arith.constant 0 : i32
    %c0_i32_1 = arith.constant 0 : i32
    return %c0_i32, %c0_i32_0 : i32, i32
  }
  func.func @transform_4(%arg0: i32) -> (i32, i32, i32) {
    %c0_i32 = arith.constant 0 : i32
    %c0_i32_0 = arith.constant 0 : i32
    %c0_i32_1 = arith.constant 0 : i32
    return %arg0, %c0_i32, %c0_i32_0 : i32, i32, i32
  }
  func.func @transform_5(%arg0: i32) -> (i32, i32, i32) {
    %c0_i32 = arith.constant 0 : i32
    %c0_i32_0 = arith.constant 0 : i32
    %c0_i32_1 = arith.constant 0 : i32
    return %arg0, %c0_i32, %c0_i32_0 : i32, i32, i32
  }
  func.func @transform_6(%arg0: i32) -> (i32, i32, i32) {
    %c0_i32 = arith.constant 0 : i32
    %c0_i32_0 = arith.constant 0 : i32
    %c0_i32_1 = arith.constant 0 : i32
    return %arg0, %c0_i32, %c0_i32_0 : i32, i32, i32
  }
  func.func @transform_7(%arg0: i32) -> (i32, i32, i32) {
    %c0_i32 = arith.constant 0 : i32
    %c0_i32_0 = arith.constant 0 : i32
    %c0_i32_1 = arith.constant 0 : i32
    return %arg0, %c0_i32, %c0_i32_0 : i32, i32, i32
  }
  func.func @transform_8(%arg0: i32) -> (i32, i32, i32) {
    %c0_i32 = arith.constant 0 : i32
    %c0_i32_0 = arith.constant 0 : i32
    %c0_i32_1 = arith.constant 0 : i32
    return %arg0, %c0_i32, %c0_i32_0 : i32, i32, i32
  }
  func.func @transform_9(%arg0: i32) -> (i32, i32, i32) {
    %c0_i32 = arith.constant 0 : i32
    %c0_i32_0 = arith.constant 0 : i32
    %c0_i32_1 = arith.constant 0 : i32
    return %arg0, %c0_i32, %c0_i32_0 : i32, i32, i32
  }
  func.func @transform_10(%arg0: i32) -> (i32, i32, i32) {
    %c0_i32 = arith.constant 0 : i32
    %c0_i32_0 = arith.constant 0 : i32
    %c0_i32_1 = arith.constant 0 : i32
    return %arg0, %c0_i32, %c0_i32_0 : i32, i32, i32
  }
  func.func @transform_11(%arg0: i32) -> (i32, i32, i32) {
    %c0_i32 = arith.constant 0 : i32
    %c0_i32_0 = arith.constant 0 : i32
    %c0_i32_1 = arith.constant 0 : i32
    return %arg0, %c0_i32, %c0_i32_0 : i32, i32, i32
  }
  func.func @transform_12(%arg0: i32) -> (i32, i32, i32) {
    %c0_i32 = arith.constant 0 : i32
    %c0_i32_0 = arith.constant 0 : i32
    %c0_i32_1 = arith.constant 0 : i32
    return %arg0, %c0_i32, %c0_i32_0 : i32, i32, i32
  }
  func.func @transform_13(%arg0: i32) -> (i32, i32, i32) {
    %c0_i32 = arith.constant 0 : i32
    %c0_i32_0 = arith.constant 0 : i32
    %c0_i32_1 = arith.constant 0 : i32
    return %arg0, %c0_i32, %c0_i32_0 : i32, i32, i32
  }
  func.func @transform_14(%arg0: i32) -> (i32, i32, i32) {
    %c0_i32 = arith.constant 0 : i32
    %c0_i32_0 = arith.constant 0 : i32
    %c0_i32_1 = arith.constant 0 : i32
    return %arg0, %c0_i32, %c0_i32_0 : i32, i32, i32
  }
  func.func @transform_15(%arg0: i32) -> (i32, i32, i32) {
    %c0_i32 = arith.constant 0 : i32
    %c0_i32_0 = arith.constant 0 : i32
    %c0_i32_1 = arith.constant 0 : i32
    return %arg0, %c0_i32, %c0_i32_0 : i32, i32, i32
  }
  func.func @transform_16(%arg0: i32) -> (i32, i32) {
    %c0_i32 = arith.constant 0 : i32
    %c0_i32_0 = arith.constant 0 : i32
    %c0_i32_1 = arith.constant 0 : i32
    return %c0_i32, %c0_i32_0 : i32, i32
  }
  func.func @transform_17(%arg0: i32) -> (i32, i32) {
    %c0_i32 = arith.constant 0 : i32
    %c0_i32_0 = arith.constant 0 : i32
    %c0_i32_1 = arith.constant 0 : i32
    return %c0_i32, %c0_i32_0 : i32, i32
  }
  func.func @transform_18(%arg0: i32) -> (i32, i32) {
    %c0_i32 = arith.constant 0 : i32
    %c0_i32_0 = arith.constant 0 : i32
    %c0_i32_1 = arith.constant 0 : i32
    return %c0_i32, %c0_i32_0 : i32, i32
  }
  func.func @transform_19(%arg0: i32) -> (i32, i32) {
    %c0_i32 = arith.constant 0 : i32
    %c0_i32_0 = arith.constant 0 : i32
    %c0_i32_1 = arith.constant 0 : i32
    return %c0_i32, %c0_i32_0 : i32, i32
  }
  func.func @transform_20(%arg0: i32) -> (i32, i32) {
    %c0_i32 = arith.constant 0 : i32
    %c0_i32_0 = arith.constant 0 : i32
    %c0_i32_1 = arith.constant 0 : i32
    return %c0_i32, %c0_i32_0 : i32, i32
  }
  func.func @transform_21(%arg0: i32) -> (i32, i32) {
    %c0_i32 = arith.constant 0 : i32
    %c0_i32_0 = arith.constant 0 : i32
    %c0_i32_1 = arith.constant 0 : i32
    return %c0_i32, %c0_i32_0 : i32, i32
  }
}

</mosaic_0001>

<llo_original>
// kernel: bert_cnn_forward.1
$region0: #{bert_cnn_forward.1}
  #allocation0 [shape = 'u32[]', space=smem, size = 0x4, offset = 0x4, fixed_abs, tag = 'smem constant byte address 0x4 - core index']
  #allocation1 [shape = 'u32[72,128]{1,0:T(1,128)}', space=vmem, size = 0x9000, scoped, tag = 'internal scratch']
  #allocation2 [shape = 'f32[32,32]{1,0:T(8,128)}', space=vmem, size = 0x4000, scoped, tag = 'scratch operand']
  #allocation3 [shape = 'f32[1,1]{1,0:T(1,128)S(1)}', space=vmem, size = 0x200, scoped, tag = 'scoped memory for bert_cnn_forward.1']
  %s0 = inlined_call_operand.vmem [shape: f32[32,32], index: 0, kind: input, shape index: {}]
  %s1 = inlined_call_operand.vmem [shape: f32[1,32], index: 1, kind: input, shape index: {}]
  %s2 = inlined_call_operand.vmem [shape: f32[1,32], index: 2, kind: input, shape index: {}]
  %s3 = inlined_call_operand.vmem [shape: f32[32,32], index: 3, kind: input, shape index: {}]
  %s4 = inlined_call_operand.vmem [shape: bf16[2,32,96], index: 4, kind: input, shape index: {}]
  %s5 = inlined_call_operand.vmem [shape: f32[2,1,96], index: 5, kind: input, shape index: {}]
  %s6 = inlined_call_operand.vmem [shape: bf16[2,32,32], index: 6, kind: input, shape index: {}]
  %s7 = inlined_call_operand.vmem [shape: f32[2,1,32], index: 7, kind: input, shape index: {}]
  %s8 = inlined_call_operand.vmem [shape: f32[2,1,32], index: 8, kind: input, shape index: {}]
  %s9 = inlined_call_operand.vmem [shape: f32[2,1,32], index: 9, kind: input, shape index: {}]
  %s10 = inlined_call_operand.vmem [shape: bf16[2,32,64], index: 10, kind: input, shape index: {}]
  %s11 = inlined_call_operand.vmem [shape: f32[2,1,64], index: 11, kind: input, shape index: {}]
  %s12 = inlined_call_operand.vmem [shape: bf16[2,64,32], index: 12, kind: input, shape index: {}]
  %s13 = inlined_call_operand.vmem [shape: f32[2,1,32], index: 13, kind: input, shape index: {}]
  %s14 = inlined_call_operand.vmem [shape: f32[2,1,32], index: 14, kind: input, shape index: {}]
  %s15 = inlined_call_operand.vmem [shape: f32[2,1,32], index: 15, kind: input, shape index: {}]
  %s16 = inlined_call_operand.vmem [shape: bf16[192,384], index: 16, kind: input, shape index: {}]
  %s17 = inlined_call_operand.vmem [shape: f32[1,384], index: 17, kind: input, shape index: {}]
  %s18 = inlined_call_operand.vmem [shape: f32[32,384], index: 18, kind: input, shape index: {}]
  %s19 = inlined_call_operand.vmem [shape: bf16[384,1], index: 19, kind: input, shape index: {}]
  %s20 = inlined_call_operand.<no memory space> [shape: f32[1,1], index: 20, kind: input, shape index: {}]
  %s21 = inlined_call_operand.vmem [shape: f32[2,1], index: 21, kind: output, shape index: {}]
  %s22 = sld [smem:[#allocation0]]
  $region125: #{bert_cnn_forward.1} parent=0
    _
  %s24 = ssub.s32 1, %s22
  %s25 = scalar_select 0, %s24, %s22
  %v26 = vstv %s20
  %27 = vst [vmem:[#allocation3] sm:$0x1] %v26
  loop: start=0, step=1, limit=4
  $region2: #{bert_cnn_forward.1} parent=0 // loop_pre_header
    _
  $region3: #{bert_cnn_forward.1} parent=0 // loop_header
    %s29 = sphi 0, %s33
    %p30 = scmp.ge.s32.totalorder %s29, 4
    %s37 = sphi 0, %s37
    %s39 = sphi 0, %s37
    %s40 = sphi 0, %s39
    %s54 = sphi 0, %s40
    %s58 = sphi 0, %s58
    %s60 = sphi 0, %s58
    %s61 = sphi 0, %s60
    %s75 = sphi 0, %s61
    %s79 = sphi 0, %s79
    %s81 = sphi 0, %s79
    %s82 = sphi 0, %s81
    %s96 = sphi 0, %s82
    %s100 = sphi 0, %s100
    %s102 = sphi 0, %s100
    %s103 = sphi 0, %s102
    %s117 = sphi 0, %s103
    %s123 = sphi 0, %s125
    %s126 = sphi 0, %s123
    %s127 = sphi 0, %s126
    %s143 = sphi 0, %s127
    %s149 = sphi 0, %s151
    %s152 = sphi 0, %s149
    %s153 = sphi 0, %s152
    %s169 = sphi 0, %s153
    %s175 = sphi 0, %s177
    %s178 = sphi 0, %s175
    %s179 = sphi 0, %s178
    %s195 = sphi 0, %s179
    %s201 = sphi 0, %s203
    %s204 = sphi 0, %s201
    %s205 = sphi 0, %s204
    %s221 = sphi 0, %s205
    %s227 = sphi 0, %s229
    %s230 = sphi 0, %s227
    %s231 = sphi 0, %s230
    %s247 = sphi 0, %s231
    %s253 = sphi 0, %s255
    %s256 = sphi 0, %s253
    %s257 = sphi 0, %s256
    %s273 = sphi 0, %s257
    %s279 = sphi 0, %s281
    %s282 = sphi 0, %s279
    %s283 = sphi 0, %s282
    %s299 = sphi 0, %s283
    %s305 = sphi 0, %s307
    %s308 = sphi 0, %s305
    %s309 = sphi 0, %s308
    %s325 = sphi 0, %s309
    %s331 = sphi 0, %s333
    %s334 = sphi 0, %s331
    %s335 = sphi 0, %s334
    %s351 = sphi 0, %s335
    %s357 = sphi 0, %s359
    %s360 = sphi 0, %s357
    %s361 = sphi 0, %s360
    %s377 = sphi 0, %s361
    %s383 = sphi 0, %s385
    %s386 = sphi 0, %s383
    %s387 = sphi 0, %s386
    %s403 = sphi 0, %s387
    %s409 = sphi 0, %s411
    %s412 = sphi 0, %s409
    %s413 = sphi 0, %s412
    %s429 = sphi 0, %s413
    %s433 = sphi 0, %s433
    %s435 = sphi 0, %s433
    %s436 = sphi 0, %s435
    %s450 = sphi 0, %s436
    %s454 = sphi 0, %s454
    %s456 = sphi 0, %s454
    %s457 = sphi 0, %s456
    %s471 = sphi 0, %s457
    %s475 = sphi 0, %s475
    %s477 = sphi 0, %s475
    %s478 = sphi 0, %s477
    %s492 = sphi 0, %s478
    %s496 = sphi 0, %s496
    %s498 = sphi 0, %s496
    %s499 = sphi 0, %s498
    %s513 = sphi 0, %s499
    %s517 = sphi 0, %s517
    %s519 = sphi 0, %s517
    %s520 = sphi 0, %s519
    %s534 = sphi 0, %s520
    %s538 = sphi 0, %s538
    %s540 = sphi 0, %s538
    %s541 = sphi 0, %s540
    %s555 = sphi 0, %s541
  $region4: #{bert_cnn_forward.1} parent=0 // loop_header_branch
    %32 = sbr.rel (%p30) target = $region8
  $region5: #{bert_cnn_forward.1} parent=0 // loop_body
    %s34 = ssub.s32 %s29, 1
    %s35 = ssub.s32 %s29, 2
    %s36 = sadd.s32 %s29, 1
    %s38 = sadd.s32 %s37, 1
    %p41 = scmp.eq.s32.totalorder %s29, 1
    %p42 = scmp.ne.s32.totalorder %s37, %s39
    %p43 = scmp.eq.s32.totalorder %s29, 0
    %p44 = por %p42, %p43
    %p45 = scmp.ne.s32.totalorder %s37, %s39
    %p46 = scmp.eq.s32.totalorder %s34, 1
    %p47 = por %p45, %p46
    %p48 = scmp.ne.s32.totalorder %s39, %s40
    %p49 = scmp.eq.s32.totalorder %s34, 0
    %p50 = por %p48, %p49
    %p51 = scmp.ne.s32.totalorder %s39, %s40
    %p52 = scmp.eq.s32.totalorder %s35, 1
    %p53 = por %p51, %p52
    %p55 = scmp.ne.s32.totalorder %s40, %s54
    %p56 = scmp.eq.s32.totalorder %s35, 0
    %p57 = por %p55, %p56
    %s59 = sadd.s32 %s58, 1
    %p62 = scmp.eq.s32.totalorder %s29, 1
    %p63 = scmp.ne.s32.totalorder %s58, %s60
    %p64 = scmp.eq.s32.totalorder %s29, 0
    %p65 = por %p63, %p64
    %p66 = scmp.ne.s32.totalorder %s58, %s60
    %p67 = scmp.eq.s32.totalorder %s34, 1
    %p68 = por %p66, %p67
    %p69 = scmp.ne.s32.totalorder %s60, %s61
    %p70 = scmp.eq.s32.totalorder %s34, 0
    %p71 = por %p69, %p70
    %p72 = scmp.ne.s32.totalorder %s60, %s61
    %p73 = scmp.eq.s32.totalorder %s35, 1
    %p74 = por %p72, %p73
    %p76 = scmp.ne.s32.totalorder %s61, %s75
    %p77 = scmp.eq.s32.totalorder %s35, 0
    %p78 = por %p76, %p77
    %s80 = sadd.s32 %s79, 1
    %p83 = scmp.eq.s32.totalorder %s29, 1
    %p84 = scmp.ne.s32.totalorder %s79, %s81
    %p85 = scmp.eq.s32.totalorder %s29, 0
    %p86 = por %p84, %p85
    %p87 = scmp.ne.s32.totalorder %s79, %s81
    %p88 = scmp.eq.s32.totalorder %s34, 1
    %p89 = por %p87, %p88
    %p90 = scmp.ne.s32.totalorder %s81, %s82
    %p91 = scmp.eq.s32.totalorder %s34, 0
    %p92 = por %p90, %p91
    %p93 = scmp.ne.s32.totalorder %s81, %s82
    %p94 = scmp.eq.s32.totalorder %s35, 1
    %p95 = por %p93, %p94
    %p97 = scmp.ne.s32.totalorder %s82, %s96
    %p98 = scmp.eq.s32.totalorder %s35, 0
    %p99 = por %p97, %p98
    %s101 = sadd.s32 %s100, 1
    %p104 = scmp.eq.s32.totalorder %s29, 1
    %p105 = scmp.ne.s32.totalorder %s100, %s102
    %p106 = scmp.eq.s32.totalorder %s29, 0
    %p107 = por %p105, %p106
    %p108 = scmp.ne.s32.totalorder %s100, %s102
    %p109 = scmp.eq.s32.totalorder %s34, 1
    %p110 = por %p108, %p109
    %p111 = scmp.ne.s32.totalorder %s102, %s103
    %p112 = scmp.eq.s32.totalorder %s34, 0
    %p113 = por %p111, %p112
    %p114 = scmp.ne.s32.totalorder %s102, %s103
    %p115 = scmp.eq.s32.totalorder %s35, 1
    %p116 = por %p114, %p115
    %p118 = scmp.ne.s32.totalorder %s103, %s117
    %p119 = scmp.eq.s32.totalorder %s35, 0
    %p120 = por %p118, %p119
    %s121 = ssub.s32 %s29, %s36
    %p122 = scmp.eq.s32.totalorder %s121, 0
    %s124 = sadd.s32 %s123, 1
    %s125 = scalar_select %p122, %s123, %s124
    %p128 = pneg %p122
    %p129 = scmp.eq.s32.totalorder %s29, 1
    %p130 = por %p128, %p129
    %p131 = scmp.ne.s32.totalorder %s123, %s126
    %p132 = scmp.eq.s32.totalorder %s29, 0
    %p133 = por %p131, %p132
    %p134 = scmp.ne.s32.totalorder %s123, %s126
    %p135 = scmp.eq.s32.totalorder %s34, 1
    %p136 = por %p134, %p135
    %p137 = scmp.ne.s32.totalorder %s126, %s127
    %p138 = scmp.eq.s32.totalorder %s34, 0
    %p139 = por %p137, %p138
    %p140 = scmp.ne.s32.totalorder %s126, %s127
    %p141 = scmp.eq.s32.totalorder %s35, 1
    %p142 = por %p140, %p141
    %p144 = scmp.ne.s32.totalorder %s127, %s143
    %p145 = scmp.eq.s32.totalorder %s35, 0
    %p146 = por %p144, %p145
    %s147 = ssub.s32 %s29, %s36
    %p148 = scmp.eq.s32.totalorder %s147, 0
    %s150 = sadd.s32 %s149, 1
    %s151 = scalar_select %p148, %s149, %s150
    %p154 = pneg %p148
    %p155 = scmp.eq.s32.totalorder %s29, 1
    %p156 = por %p154, %p155
    %p157 = scmp.ne.s32.totalorder %s149, %s152
    %p158 = scmp.eq.s32.totalorder %s29, 0
    %p159 = por %p157, %p158
    %p160 = scmp.ne.s32.totalorder %s149, %s152
    %p161 = scmp.eq.s32.totalorder %s34, 1
    %p162 = por %p160, %p161
    %p163 = scmp.ne.s32.totalorder %s152, %s153
    %p164 = scmp.eq.s32.totalorder %s34, 0
    %p165 = por %p163, %p164
    %p166 = scmp.ne.s32.totalorder %s152, %s153
    %p167 = scmp.eq.s32.totalorder %s35, 1
    %p168 = por %p166, %p167
    %p170 = scmp.ne.s32.totalorder %s153, %s169
    %p171 = scmp.eq.s32.totalorder %s35, 0
    %p172 = por %p170, %p171
    %s173 = ssub.s32 %s29, %s36
    %p174 = scmp.eq.s32.totalorder %s173, 0
    %s176 = sadd.s32 %s175, 1
    %s177 = scalar_select %p174, %s175, %s176
    %p180 = pneg %p174
    %p181 = scmp.eq.s32.totalorder %s29, 1
    %p182 = por %p180, %p181
    %p183 = scmp.ne.s32.totalorder %s175, %s178
    %p184 = scmp.eq.s32.totalorder %s29, 0
    %p185 = por %p183, %p184
    %p186 = scmp.ne.s32.totalorder %s175, %s178
    %p187 = scmp.eq.s32.totalorder %s34, 1
    %p188 = por %p186, %p187
    %p189 = scmp.ne.s32.totalorder %s178, %s179
    %p190 = scmp.eq.s32.totalorder %s34, 0
    %p191 = por %p189, %p190
    %p192 = scmp.ne.s32.totalorder %s178, %s179
    %p193 = scmp.eq.s32.totalorder %s35, 1
    %p194 = por %p192, %p193
    %p196 = scmp.ne.s32.totalorder %s179, %s195
    %p197 = scmp.eq.s32.totalorder %s35, 0
    %p198 = por %p196, %p197
    %s199 = ssub.s32 %s29, %s36
    %p200 = scmp.eq.s32.totalorder %s199, 0
    %s202 = sadd.s32 %s201, 1
    %s203 = scalar_select %p200, %s201, %s202
    %p206 = pneg %p200
    %p207 = scmp.eq.s32.totalorder %s29, 1
    %p208 = por %p206, %p207
    %p209 = scmp.ne.s32.totalorder %s201, %s204
    %p210 = scmp.eq.s32.totalorder %s29, 0
    %p211 = por %p209, %p210
    %p212 = scmp.ne.s32.totalorder %s201, %s204
    %p213 = scmp.eq.s32.totalorder %s34, 1
    %p214 = por %p212, %p213
    %p215 = scmp.ne.s32.totalorder %s204, %s205
    %p216 = scmp.eq.s32.totalorder %s34, 0
    %p217 = por %p215, %p216
    %p218 = scmp.ne.s32.totalorder %s204, %s205
    %p219 = scmp.eq.s32.totalorder %s35, 1
    %p220 = por %p218, %p219
    %p222 = scmp.ne.s32.totalorder %s205, %s221
    %p223 = scmp.eq.s32.totalorder %s35, 0
    %p224 = por %p222, %p223
    %s225 = ssub.s32 %s29, %s36
    %p226 = scmp.eq.s32.totalorder %s225, 0
    %s228 = sadd.s32 %s227, 1
    %s229 = scalar_select %p226, %s227, %s228
    %p232 = pneg %p226
    %p233 = scmp.eq.s32.totalorder %s29, 1
    %p234 = por %p232, %p233
    %p235 = scmp.ne.s32.totalorder %s227, %s230
    %p236 = scmp.eq.s32.totalorder %s29, 0
    %p237 = por %p235, %p236
    %p238 = scmp.ne.s32.totalorder %s227, %s230
    %p239 = scmp.eq.s32.totalorder %s34, 1
    %p240 = por %p238, %p239
    %p241 = scmp.ne.s32.totalorder %s230, %s231
    %p242 = scmp.eq.s32.totalorder %s34, 0
    %p243 = por %p241, %p242
    %p244 = scmp.ne.s32.totalorder %s230, %s231
    %p245 = scmp.eq.s32.totalorder %s35, 1
    %p246 = por %p244, %p245
    %p248 = scmp.ne.s32.totalorder %s231, %s247
    %p249 = scmp.eq.s32.totalorder %s35, 0
    %p250 = por %p248, %p249
    %s251 = ssub.s32 %s29, %s36
    %p252 = scmp.eq.s32.totalorder %s251, 0
    %s254 = sadd.s32 %s253, 1
    %s255 = scalar_select %p252, %s253, %s254
    %p258 = pneg %p252
    %p259 = scmp.eq.s32.totalorder %s29, 1
    %p260 = por %p258, %p259
    %p261 = scmp.ne.s32.totalorder %s253, %s256
    %p262 = scmp.eq.s32.totalorder %s29, 0
    %p263 = por %p261, %p262
    %p264 = scmp.ne.s32.totalorder %s253, %s256
    %p265 = scmp.eq.s32.totalorder %s34, 1
    %p266 = por %p264, %p265
    %p267 = scmp.ne.s32.totalorder %s256, %s257
    %p268 = scmp.eq.s32.totalorder %s34, 0
    %p269 = por %p267, %p268
    %p270 = scmp.ne.s32.totalorder %s256, %s257
    %p271 = scmp.eq.s32.totalorder %s35, 1
    %p272 = por %p270, %p271
    %p274 = scmp.ne.s32.totalorder %s257, %s273
    %p275 = scmp.eq.s32.totalorder %s35, 0
    %p276 = por %p274, %p275
    %s277 = ssub.s32 %s29, %s36
    %p278 = scmp.eq.s32.totalorder %s277, 0
    %s280 = sadd.s32 %s279, 1
    %s281 = scalar_select %p278, %s279, %s280
    %p284 = pneg %p278
    %p285 = scmp.eq.s32.totalorder %s29, 1
    %p286 = por %p284, %p285
    %p287 = scmp.ne.s32.totalorder %s279, %s282
    %p288 = scmp.eq.s32.totalorder %s29, 0
    %p289 = por %p287, %p288
    %p290 = scmp.ne.s32.totalorder %s279, %s282
    %p291 = scmp.eq.s32.totalorder %s34, 1
    %p292 = por %p290, %p291
    %p293 = scmp.ne.s32.totalorder %s282, %s283
    %p294 = scmp.eq.s32.totalorder %s34, 0
    %p295 = por %p293, %p294
    %p296 = scmp.ne.s32.totalorder %s282, %s283
    %p297 = scmp.eq.s32.totalorder %s35, 1
    %p298 = por %p296, %p297
    %p300 = scmp.ne.s32.totalorder %s283, %s299
    %p301 = scmp.eq.s32.totalorder %s35, 0
    %p302 = por %p300, %p301
    %s303 = ssub.s32 %s29, %s36
    %p304 = scmp.eq.s32.totalorder %s303, 0
    %s306 = sadd.s32 %s305, 1
    %s307 = scalar_select %p304, %s305, %s306
    %p310 = pneg %p304
    %p311 = scmp.eq.s32.totalorder %s29, 1
    %p312 = por %p310, %p311
    %p313 = scmp.ne.s32.totalorder %s305, %s308
    %p314 = scmp.eq.s32.totalorder %s29, 0
    %p315 = por %p313, %p314
    %p316 = scmp.ne.s32.totalorder %s305, %s308
    %p317 = scmp.eq.s32.totalorder %s34, 1
    %p318 = por %p316, %p317
    %p319 = scmp.ne.s32.totalorder %s308, %s309
    %p320 = scmp.eq.s32.totalorder %s34, 0
    %p321 = por %p319, %p320
    %p322 = scmp.ne.s32.totalorder %s308, %s309
    %p323 = scmp.eq.s32.totalorder %s35, 1
    %p324 = por %p322, %p323
    %p326 = scmp.ne.s32.totalorder %s309, %s325
    %p327 = scmp.eq.s32.totalorder %s35, 0
    %p328 = por %p326, %p327
    %s329 = ssub.s32 %s29, %s36
    %p330 = scmp.eq.s32.totalorder %s329, 0
    %s332 = sadd.s32 %s331, 1
    %s333 = scalar_select %p330, %s331, %s332
    %p336 = pneg %p330
    %p337 = scmp.eq.s32.totalorder %s29, 1
    %p338 = por %p336, %p337
    %p339 = scmp.ne.s32.totalorder %s331, %s334
    %p340 = scmp.eq.s32.totalorder %s29, 0
    %p341 = por %p339, %p340
    %p342 = scmp.ne.s32.totalorder %s331, %s334
    %p343 = scmp.eq.s32.totalorder %s34, 1
    %p344 = por %p342, %p343
    %p345 = scmp.ne.s32.totalorder %s334, %s335
    %p346 = scmp.eq.s32.totalorder %s34, 0
    %p347 = por %p345, %p346
    %p348 = scmp.ne.s32.totalorder %s334, %s335
    %p349 = scmp.eq.s32.totalorder %s35, 1
    %p350 = por %p348, %p349
    %p352 = scmp.ne.s32.totalorder %s335, %s351
    %p353 = scmp.eq.s32.totalorder %s35, 0
    %p354 = por %p352, %p353
    %s355 = ssub.s32 %s29, %s36
    %p356 = scmp.eq.s32.totalorder %s355, 0
    %s358 = sadd.s32 %s357, 1
    %s359 = scalar_select %p356, %s357, %s358
    %p362 = pneg %p356
    %p363 = scmp.eq.s32.totalorder %s29, 1
    %p364 = por %p362, %p363
    %p365 = scmp.ne.s32.totalorder %s357, %s360
    %p366 = scmp.eq.s32.totalorder %s29, 0
    %p367 = por %p365, %p366
    %p368 = scmp.ne.s32.totalorder %s357, %s360
    %p369 = scmp.eq.s32.totalorder %s34, 1
    %p370 = por %p368, %p369
    %p371 = scmp.ne.s32.totalorder %s360, %s361
    %p372 = scmp.eq.s32.totalorder %s34, 0
    %p373 = por %p371, %p372
    %p374 = scmp.ne.s32.totalorder %s360, %s361
    %p375 = scmp.eq.s32.totalorder %s35, 1
    %p376 = por %p374, %p375
    %p378 = scmp.ne.s32.totalorder %s361, %s377
    %p379 = scmp.eq.s32.totalorder %s35, 0
    %p380 = por %p378, %p379
    %s381 = ssub.s32 %s29, %s36
    %p382 = scmp.eq.s32.totalorder %s381, 0
    %s384 = sadd.s32 %s383, 1
    %s385 = scalar_select %p382, %s383, %s384
    %p388 = pneg %p382
    %p389 = scmp.eq.s32.totalorder %s29, 1
    %p390 = por %p388, %p389
    %p391 = scmp.ne.s32.totalorder %s383, %s386
    %p392 = scmp.eq.s32.totalorder %s29, 0
    %p393 = por %p391, %p392
    %p394 = scmp.ne.s32.totalorder %s383, %s386
    %p395 = scmp.eq.s32.totalorder %s34, 1
    %p396 = por %p394, %p395
    %p397 = scmp.ne.s32.totalorder %s386, %s387
    %p398 = scmp.eq.s32.totalorder %s34, 0
    %p399 = por %p397, %p398
    %p400 = scmp.ne.s32.totalorder %s386, %s387
    %p401 = scmp.eq.s32.totalorder %s35, 1
    %p402 = por %p400, %p401
    %p404 = scmp.ne.s32.totalorder %s387, %s403
    %p405 = scmp.eq.s32.totalorder %s35, 0
    %p406 = por %p404, %p405
    %s407 = ssub.s32 %s29, %s36
    %p408 = scmp.eq.s32.totalorder %s407, 0
    %s410 = sadd.s32 %s409, 1
    %s411 = scalar_select %p408, %s409, %s410
    %p414 = pneg %p408
    %p415 = scmp.eq.s32.totalorder %s29, 1
    %p416 = por %p414, %p415
    %p417 = scmp.ne.s32.totalorder %s409, %s412
    %p418 = scmp.eq.s32.totalorder %s29, 0
    %p419 = por %p417, %p418
    %p420 = scmp.ne.s32.totalorder %s409, %s412
    %p421 = scmp.eq.s32.totalorder %s34, 1
    %p422 = por %p420, %p421
    %p423 = scmp.ne.s32.totalorder %s412, %s413
    %p424 = scmp.eq.s32.totalorder %s34, 0
    %p425 = por %p423, %p424
    %p426 = scmp.ne.s32.totalorder %s412, %s413
    %p427 = scmp.eq.s32.totalorder %s35, 1
    %p428 = por %p426, %p427
    %p430 = scmp.ne.s32.totalorder %s413, %s429
    %p431 = scmp.eq.s32.totalorder %s35, 0
    %p432 = por %p430, %p431
    %s434 = sadd.s32 %s433, 1
    %p437 = scmp.eq.s32.totalorder %s29, 1
    %p438 = scmp.ne.s32.totalorder %s433, %s435
    %p439 = scmp.eq.s32.totalorder %s29, 0
    %p440 = por %p438, %p439
    %p441 = scmp.ne.s32.totalorder %s433, %s435
    %p442 = scmp.eq.s32.totalorder %s34, 1
    %p443 = por %p441, %p442
    %p444 = scmp.ne.s32.totalorder %s435, %s436
    %p445 = scmp.eq.s32.totalorder %s34, 0
    %p446 = por %p444, %p445
    %p447 = scmp.ne.s32.totalorder %s435, %s436
    %p448 = scmp.eq.s32.totalorder %s35, 1
    %p449 = por %p447, %p448
    %p451 = scmp.ne.s32.totalorder %s436, %s450
    %p452 = scmp.eq.s32.totalorder %s35, 0
    %p453 = por %p451, %p452
    %s455 = sadd.s32 %s454, 1
    %p458 = scmp.eq.s32.totalorder %s29, 1
    %p459 = scmp.ne.s32.totalorder %s454, %s456
    %p460 = scmp.eq.s32.totalorder %s29, 0
    %p461 = por %p459, %p460
    %p462 = scmp.ne.s32.totalorder %s454, %s456
    %p463 = scmp.eq.s32.totalorder %s34, 1
    %p464 = por %p462, %p463
    %p465 = scmp.ne.s32.totalorder %s456, %s457
    %p466 = scmp.eq.s32.totalorder %s34, 0
    %p467 = por %p465, %p466
    %p468 = scmp.ne.s32.totalorder %s456, %s457
    %p469 = scmp.eq.s32.totalorder %s35, 1
    %p470 = por %p468, %p469
    %p472 = scmp.ne.s32.totalorder %s457, %s471
    %p473 = scmp.eq.s32.totalorder %s35, 0
    %p474 = por %p472, %p473
    %s476 = sadd.s32 %s475, 1
    %p479 = scmp.eq.s32.totalorder %s29, 1
    %p480 = scmp.ne.s32.totalorder %s475, %s477
    %p481 = scmp.eq.s32.totalorder %s29, 0
    %p482 = por %p480, %p481
    %p483 = scmp.ne.s32.totalorder %s475, %s477
    %p484 = scmp.eq.s32.totalorder %s34, 1
    %p485 = por %p483, %p484
    %p486 = scmp.ne.s32.totalorder %s477, %s478
    %p487 = scmp.eq.s32.totalorder %s34, 0
    %p488 = por %p486, %p487
    %p489 = scmp.ne.s32.totalorder %s477, %s478
    %p490 = scmp.eq.s32.totalorder %s35, 1
    %p491 = por %p489, %p490
    %p493 = scmp.ne.s32.totalorder %s478, %s492
    %p494 = scmp.eq.s32.totalorder %s35, 0
    %p495 = por %p493, %p494
    %s497 = sadd.s32 %s496, 1
    %p500 = scmp.eq.s32.totalorder %s29, 1
    %p501 = scmp.ne.s32.totalorder %s496, %s498
    %p502 = scmp.eq.s32.totalorder %s29, 0
    %p503 = por %p501, %p502
    %p504 = scmp.ne.s32.totalorder %s496, %s498
    %p505 = scmp.eq.s32.totalorder %s34, 1
    %p506 = por %p504, %p505
    %p507 = scmp.ne.s32.totalorder %s498, %s499
    %p508 = scmp.eq.s32.totalorder %s34, 0
    %p509 = por %p507, %p508
    %p510 = scmp.ne.s32.totalorder %s498, %s499
    %p511 = scmp.eq.s32.totalorder %s35, 1
    %p512 = por %p510, %p511
    %p514 = scmp.ne.s32.totalorder %s499, %s513
    %p515 = scmp.eq.s32.totalorder %s35, 0
    %p516 = por %p514, %p515
    %s518 = sadd.s32 %s517, 1
    %p521 = scmp.eq.s32.totalorder %s29, 1
    %p522 = scmp.ne.s32.totalorder %s517, %s519
    %p523 = scmp.eq.s32.totalorder %s29, 0
    %p524 = por %p522, %p523
    %p525 = scmp.ne.s32.totalorder %s517, %s519
    %p526 = scmp.eq.s32.totalorder %s34, 1
    %p527 = por %p525, %p526
    %p528 = scmp.ne.s32.totalorder %s519, %s520
    %p529 = scmp.eq.s32.totalorder %s34, 0
    %p530 = por %p528, %p529
    %p531 = scmp.ne.s32.totalorder %s519, %s520
    %p532 = scmp.eq.s32.totalorder %s35, 1
    %p533 = por %p531, %p532
    %p535 = scmp.ne.s32.totalorder %s520, %s534
    %p536 = scmp.eq.s32.totalorder %s35, 0
    %p537 = por %p535, %p536
    %s539 = sadd.s32 %s538, 1
    %p542 = scmp.eq.s32.totalorder %s29, 1
    %p543 = scmp.ne.s32.totalorder %s538, %s540
    %p544 = scmp.eq.s32.totalorder %s29, 0
    %p545 = por %p543, %p544
    %p546 = scmp.ne.s32.totalorder %s538, %s540
    %p547 = scmp.eq.s32.totalorder %s34, 1
    %p548 = por %p546, %p547
    %p549 = scmp.ne.s32.totalorder %s540, %s541
    %p550 = scmp.eq.s32.totalorder %s34, 0
    %p551 = por %p549, %p550
    %p552 = scmp.ne.s32.totalorder %s540, %s541
    %p553 = scmp.eq.s32.totalorder %s35, 1
    %p554 = por %p552, %p553
    %p556 = scmp.ne.s32.totalorder %s541, %s555
    %p557 = scmp.eq.s32.totalorder %s35, 0
    %p558 = por %p556, %p557
    %p559 = scmp.le.s32.totalorder 1, %s29
    %p560 = scmp.lt.s32.totalorder %s29, 3
    %p561 = pnand %p559, %p560
    %p562 = pneg %p561
    // Predicated region
    $region9: #{bert_cnn_forward.1} parent=5 // pred_check
      _
    $region10: #{bert_cnn_forward.1} parent=5 // pred_check_branch
      %564 = sbr.rel (%p561) target = $region12
    $region11: #{bert_cnn_forward.1} parent=5 // pred_region
      %s565 = ssub.s32 %s29, 1
      // Predicated region
      $region13: #{bert_cnn_forward.1} parent=11 // pred_check
        %p566 = pneg %p50
      $region14: #{bert_cnn_forward.1} parent=11 // pred_check_branch
        %568 = sbr.rel (%p566) target = $region16
      $region15: #{bert_cnn_forward.1} parent=11 // pred_region
        _
      $region16: #{bert_cnn_forward.1} parent=11 // pred_fallthru
        _
      // Predicated region
      $region17: #{bert_cnn_forward.1} parent=11 // pred_check
        %p569 = pneg %p71
      $region18: #{bert_cnn_forward.1} parent=11 // pred_check_branch
        %571 = sbr.rel (%p569) target = $region20
      $region19: #{bert_cnn_forward.1} parent=11 // pred_region
        _
      $region20: #{bert_cnn_forward.1} parent=11 // pred_fallthru
        _
      // Predicated region
      $region21: #{bert_cnn_forward.1} parent=11 // pred_check
        %p572 = pneg %p92
      $region22: #{bert_cnn_forward.1} parent=11 // pred_check_branch
        %574 = sbr.rel (%p572) target = $region24
      $region23: #{bert_cnn_forward.1} parent=11 // pred_region
        _
      $region24: #{bert_cnn_forward.1} parent=11 // pred_fallthru
        _
      // Predicated region
      $region25: #{bert_cnn_forward.1} parent=11 // pred_check
        %p575 = pneg %p113
      $region26: #{bert_cnn_forward.1} parent=11 // pred_check_branch
        %577 = sbr.rel (%p575) target = $region28
      $region27: #{bert_cnn_forward.1} parent=11 // pred_region
        _
      $region28: #{bert_cnn_forward.1} parent=11 // pred_fallthru
        _
      // Predicated region
      $region29: #{bert_cnn_forward.1} parent=11 // pred_check
        %p578 = pneg %p446
      $region30: #{bert_cnn_forward.1} parent=11 // pred_check_branch
        %580 = sbr.rel (%p578) target = $region32
      $region31: #{bert_cnn_forward.1} parent=11 // pred_region
        _
      $region32: #{bert_cnn_forward.1} parent=11 // pred_fallthru
        _
      // Predicated region
      $region33: #{bert_cnn_forward.1} parent=11 // pred_check
        %p581 = pneg %p467
      $region34: #{bert_cnn_forward.1} parent=11 // pred_check_branch
        %583 = sbr.rel (%p581) target = $region36
      $region35: #{bert_cnn_forward.1} parent=11 // pred_region
        _
      $region36: #{bert_cnn_forward.1} parent=11 // pred_fallthru
        _
      // Predicated region
      $region37: #{bert_cnn_forward.1} parent=11 // pred_check
        %p584 = pneg %p488
      $region38: #{bert_cnn_forward.1} parent=11 // pred_check_branch
        %586 = sbr.rel (%p584) target = $region40
      $region39: #{bert_cnn_forward.1} parent=11 // pred_region
        _
      $region40: #{bert_cnn_forward.1} parent=11 // pred_fallthru
        _
      // Predicated region
      $region41: #{bert_cnn_forward.1} parent=11 // pred_check
        %p587 = pneg %p509
      $region42: #{bert_cnn_forward.1} parent=11 // pred_check_branch
        %589 = sbr.rel (%p587) target = $region44
      $region43: #{bert_cnn_forward.1} parent=11 // pred_region
        _
      $region44: #{bert_cnn_forward.1} parent=11 // pred_fallthru
        _
      // Predicated region
      $region45: #{bert_cnn_forward.1} parent=11 // pred_check
        %p590 = pneg %p530
      $region46: #{bert_cnn_forward.1} parent=11 // pred_check_branch
        %592 = sbr.rel (%p590) target = $region48
      $region47: #{bert_cnn_forward.1} parent=11 // pred_region
        _
      $region48: #{bert_cnn_forward.1} parent=11 // pred_fallthru
        _
    $region12: #{bert_cnn_forward.1} parent=5 // pred_fallthru
      _
    %p593 = scmp.lt.s32.totalorder %s29, 2
    // Predicated region
    $region49: #{bert_cnn_forward.1} parent=5 // pred_check
      %p594 = pneg %p593
    $region50: #{bert_cnn_forward.1} parent=5 // pred_check_branch
      %596 = sbr.rel (%p594) target = $region52
    $region51: #{bert_cnn_forward.1} parent=5 // pred_region
      // Predicated region
      $region53: #{bert_cnn_forward.1} parent=51 // pred_check
        %p597 = pneg %p133
      $region54: #{bert_cnn_forward.1} parent=51 // pred_check_branch
        %599 = sbr.rel (%p597) target = $region56
      $region55: #{bert_cnn_forward.1} parent=51 // pred_region
        %p600 = scmp.lt.s32.totalorder %s29, 1
        %s601 = scalar_select %p600, %s29, 1
        %s602 = smul.addr %s601, 4
        %s603 = smul.addr %s602, 4
        %s604 = scalar_lea.vmem %s4, %s603
      $region56: #{bert_cnn_forward.1} parent=51 // pred_fallthru
        _
      // Predicated region
      $region57: #{bert_cnn_forward.1} parent=51 // pred_check
        %p605 = pneg %p159
      $region58: #{bert_cnn_forward.1} parent=51 // pred_check_branch
        %607 = sbr.rel (%p605) target = $region60
      $region59: #{bert_cnn_forward.1} parent=51 // pred_region
        %p608 = scmp.lt.s32.totalorder %s29, 1
        %s609 = scalar_select %p608, %s29, 1
        %s610 = scalar_lea.vmem %s5, %s609
      $region60: #{bert_cnn_forward.1} parent=51 // pred_fallthru
        _
      // Predicated region
      $region61: #{bert_cnn_forward.1} parent=51 // pred_check
        %p611 = pneg %p185
      $region62: #{bert_cnn_forward.1} parent=51 // pred_check_branch
        %613 = sbr.rel (%p611) target = $region64
      $region63: #{bert_cnn_forward.1} parent=51 // pred_region
        %p614 = scmp.lt.s32.totalorder %s29, 1
        %s615 = scalar_select %p614, %s29, 1
        %s616 = smul.addr %s615, 4
        %s617 = smul.addr %s616, 4
        %s618 = scalar_lea.vmem %s6, %s617
      $region64: #{bert_cnn_forward.1} parent=51 // pred_fallthru
        _
      // Predicated region
      $region65: #{bert_cnn_forward.1} parent=51 // pred_check
        %p619 = pneg %p211
      $region66: #{bert_cnn_forward.1} parent=51 // pred_check_branch
        %621 = sbr.rel (%p619) target = $region68
      $region67: #{bert_cnn_forward.1} parent=51 // pred_region
        %p622 = scmp.lt.s32.totalorder %s29, 1
        %s623 = scalar_select %p622, %s29, 1
        %s624 = scalar_lea.vmem %s7, %s623
      $region68: #{bert_cnn_forward.1} parent=51 // pred_fallthru
        _
      // Predicated region
      $region69: #{bert_cnn_forward.1} parent=51 // pred_check
        %p625 = pneg %p237
      $region70: #{bert_cnn_forward.1} parent=51 // pred_check_branch
        %627 = sbr.rel (%p625) target = $region72
      $region71: #{bert_cnn_forward.1} parent=51 // pred_region
        %p628 = scmp.lt.s32.totalorder %s29, 1
        %s629 = scalar_select %p628, %s29, 1
        %s630 = scalar_lea.vmem %s8, %s629
      $region72: #{bert_cnn_forward.1} parent=51 // pred_fallthru
        _
      // Predicated region
      $region73: #{bert_cnn_forward.1} parent=51 // pred_check
        %p631 = pneg %p263
      $region74: #{bert_cnn_forward.1} parent=51 // pred_check_branch
        %633 = sbr.rel (%p631) target = $region76
      $region75: #{bert_cnn_forward.1} parent=51 // pred_region
        %p634 = scmp.lt.s32.totalorder %s29, 1
        %s635 = scalar_select %p634, %s29, 1
        %s636 = scalar_lea.vmem %s9, %s635
      $region76: #{bert_cnn_forward.1} parent=51 // pred_fallthru
        _
      // Predicated region
      $region77: #{bert_cnn_forward.1} parent=51 // pred_check
        %p637 = pneg %p289
      $region78: #{bert_cnn_forward.1} parent=51 // pred_check_branch
        %639 = sbr.rel (%p637) target = $region80
      $region79: #{bert_cnn_forward.1} parent=51 // pred_region
        %p640 = scmp.lt.s32.totalorder %s29, 1
        %s641 = scalar_select %p640, %s29, 1
        %s642 = smul.addr %s641, 4
        %s643 = smul.addr %s642, 4
        %s644 = scalar_lea.vmem %s10, %s643
      $region80: #{bert_cnn_forward.1} parent=51 // pred_fallthru
        _
      // Predicated region
      $region81: #{bert_cnn_forward.1} parent=51 // pred_check
        %p645 = pneg %p315
      $region82: #{bert_cnn_forward.1} parent=51 // pred_check_branch
        %647 = sbr.rel (%p645) target = $region84
      $region83: #{bert_cnn_forward.1} parent=51 // pred_region
        %p648 = scmp.lt.s32.totalorder %s29, 1
        %s649 = scalar_select %p648, %s29, 1
        %s650 = scalar_lea.vmem %s11, %s649
      $region84: #{bert_cnn_forward.1} parent=51 // pred_fallthru
        _
      // Predicated region
      $region85: #{bert_cnn_forward.1} parent=51 // pred_check
        %p651 = pneg %p341
      $region86: #{bert_cnn_forward.1} parent=51 // pred_check_branch
        %653 = sbr.rel (%p651) target = $region88
      $region87: #{bert_cnn_forward.1} parent=51 // pred_region
        %p654 = scmp.lt.s32.totalorder %s29, 1
        %s655 = scalar_select %p654, %s29, 1
        %s656 = smul.addr %s655, 8
        %s657 = smul.addr %s656, 4
        %s658 = scalar_lea.vmem %s12, %s657
      $region88: #{bert_cnn_forward.1} parent=51 // pred_fallthru
        _
      // Predicated region
      $region89: #{bert_cnn_forward.1} parent=51 // pred_check
        %p659 = pneg %p367
      $region90: #{bert_cnn_forward.1} parent=51 // pred_check_branch
        %661 = sbr.rel (%p659) target = $region92
      $region91: #{bert_cnn_forward.1} parent=51 // pred_region
        %p662 = scmp.lt.s32.totalorder %s29, 1
        %s663 = scalar_select %p662, %s29, 1
        %s664 = scalar_lea.vmem %s13, %s663
      $region92: #{bert_cnn_forward.1} parent=51 // pred_fallthru
        _
      // Predicated region
      $region93: #{bert_cnn_forward.1} parent=51 // pred_check
        %p665 = pneg %p393
      $region94: #{bert_cnn_forward.1} parent=51 // pred_check_branch
        %667 = sbr.rel (%p665) target = $region96
      $region95: #{bert_cnn_forward.1} parent=51 // pred_region
        %p668 = scmp.lt.s32.totalorder %s29, 1
        %s669 = scalar_select %p668, %s29, 1
        %s670 = scalar_lea.vmem %s14, %s669
      $region96: #{bert_cnn_forward.1} parent=51 // pred_fallthru
        _
      // Predicated region
      $region97: #{bert_cnn_forward.1} parent=51 // pred_check
        %p671 = pneg %p419
      $region98: #{bert_cnn_forward.1} parent=51 // pred_check_branch
        %673 = sbr.rel (%p671) target = $region100
      $region99: #{bert_cnn_forward.1} parent=51 // pred_region
        %p674 = scmp.lt.s32.totalorder %s29, 1
        %s675 = scalar_select %p674, %s29, 1
        %s676 = scalar_lea.vmem %s15, %s675
      $region100: #{bert_cnn_forward.1} parent=51 // pred_fallthru
        _
    $region52: #{bert_cnn_forward.1} parent=5 // pred_fallthru
      _
    %p677 = scmp.le.s32.totalorder 1, %s29
    %p678 = scmp.lt.s32.totalorder %s29, 3
    %p679 = pnand %p677, %p678
    %p680 = pneg %p679
    // Predicated region
    $region101: #{bert_cnn_forward.1} parent=5 // pred_check
      _
    $region102: #{bert_cnn_forward.1} parent=5 // pred_check_branch
      %682 = sbr.rel (%p679) target = $region104
    $region103: #{bert_cnn_forward.1} parent=5 // pred_region
      %s683 = ssub.s32 %s29, 1
      %p684 = pneg %p50
      %p685 = pneg %p47
      %p686 = pneg %p71
      %p687 = pneg %p68
      %p688 = pneg %p92
      %p689 = pneg %p89
      %p690 = pneg %p113
      %p691 = pneg %p110
      %p692 = scmp.lt.s32.totalorder %s34, 1
      %s693 = scalar_select %p692, %s34, 1
      %s694 = smul.addr %s693, 4
      %s695 = smul.addr %s694, 4
      %s696 = scalar_lea.vmem %s4, %s695
      %p697 = pneg %p139
      %p698 = pneg %p136
      %p699 = scmp.lt.s32.totalorder %s34, 1
      %s700 = scalar_select %p699, %s34, 1
      %s701 = scalar_lea.vmem %s5, %s700
      %p702 = pneg %p165
      %p703 = pneg %p162
      %p704 = scmp.lt.s32.totalorder %s34, 1
      %s705 = scalar_select %p704, %s34, 1
      %s706 = smul.addr %s705, 4
      %s707 = smul.addr %s706, 4
      %s708 = scalar_lea.vmem %s6, %s707
      %p709 = pneg %p191
      %p710 = pneg %p188
      %p711 = scmp.lt.s32.totalorder %s34, 1
      %s712 = scalar_select %p711, %s34, 1
      %s713 = scalar_lea.vmem %s7, %s712
      %p714 = pneg %p217
      %p715 = pneg %p214
      %p716 = scmp.lt.s32.totalorder %s34, 1
      %s717 = scalar_select %p716, %s34, 1
      %s718 = scalar_lea.vmem %s8, %s717
      %p719 = pneg %p243
      %p720 = pneg %p240
      %p721 = scmp.lt.s32.totalorder %s34, 1
      %s722 = scalar_select %p721, %s34, 1
      %s723 = scalar_lea.vmem %s9, %s722
      %p724 = pneg %p269
      %p725 = pneg %p266
      %p726 = scmp.lt.s32.totalorder %s34, 1
      %s727 = scalar_select %p726, %s34, 1
      %s728 = smul.addr %s727, 4
      %s729 = smul.addr %s728, 4
      %s730 = scalar_lea.vmem %s10, %s729
      %p731 = pneg %p295
      %p732 = pneg %p292
      %p733 = scmp.lt.s32.totalorder %s34, 1
      %s734 = scalar_select %p733, %s34, 1
      %s735 = scalar_lea.vmem %s11, %s734
      %p736 = pneg %p321
      %p737 = pneg %p318
      %p738 = scmp.lt.s32.totalorder %s34, 1
      %s739 = scalar_select %p738, %s34, 1
      %s740 = smul.addr %s739, 8
      %s741 = smul.addr %s740, 4
      %s742 = scalar_lea.vmem %s12, %s741
      %p743 = pneg %p347
      %p744 = pneg %p344
      %p745 = scmp.lt.s32.totalorder %s34, 1
      %s746 = scalar_select %p745, %s34, 1
      %s747 = scalar_lea.vmem %s13, %s746
      %p748 = pneg %p373
      %p749 = pneg %p370
      %p750 = scmp.lt.s32.totalorder %s34, 1
      %s751 = scalar_select %p750, %s34, 1
      %s752 = scalar_lea.vmem %s14, %s751
      %p753 = pneg %p399
      %p754 = pneg %p396
      %p755 = scmp.lt.s32.totalorder %s34, 1
      %s756 = scalar_select %p755, %s34, 1
      %s757 = scalar_lea.vmem %s15, %s756
      %p758 = pneg %p425
      %p759 = pneg %p422
      %p760 = pneg %p446
      %p761 = pneg %p443
      %p762 = pneg %p467
      %p763 = pneg %p464
      %p764 = pneg %p488
      %p765 = pneg %p485
      %p766 = pneg %p509
      %p767 = pneg %p506
      %p768 = pneg %p530
      %p769 = pneg %p527
      %p770 = pneg %p551
      %p771 = pneg %p548
      %p772 = scmp.lt.s32.totalorder %s34, 1
      %s773 = scalar_select %p772, %s34, 1
      %s774 = smul.addr %s773, 4
      %s775 = smul.addr %s774, 4
      %s776 = scalar_lea.vmem %s4, %s775
      %p777 = scmp.lt.s32.totalorder %s34, 1
      %s778 = scalar_select %p777, %s34, 1
      %s779 = scalar_lea.vmem %s5, %s778
      %p780 = scmp.lt.s32.totalorder %s34, 1
      %s781 = scalar_select %p780, %s34, 1
      %s782 = smul.addr %s781, 4
      %s783 = smul.addr %s782, 4
      %s784 = scalar_lea.vmem %s6, %s783
      %p785 = scmp.lt.s32.totalorder %s34, 1
      %s786 = scalar_select %p785, %s34, 1
      %s787 = scalar_lea.vmem %s7, %s786
      %p788 = scmp.lt.s32.totalorder %s34, 1
      %s789 = scalar_select %p788, %s34, 1
      %s790 = scalar_lea.vmem %s8, %s789
      %p791 = scmp.lt.s32.totalorder %s34, 1
      %s792 = scalar_select %p791, %s34, 1
      %s793 = scalar_lea.vmem %s9, %s792
      %p794 = scmp.lt.s32.totalorder %s34, 1
      %s795 = scalar_select %p794, %s34, 1
      %s796 = smul.addr %s795, 4
      %s797 = smul.addr %s796, 4
      %s798 = scalar_lea.vmem %s10, %s797
      %p799 = scmp.lt.s32.totalorder %s34, 1
      %s800 = scalar_select %p799, %s34, 1
      %s801 = scalar_lea.vmem %s11, %s800
      %p802 = scmp.lt.s32.totalorder %s34, 1
      %s803 = scalar_select %p802, %s34, 1
      %s804 = smul.addr %s803, 8
      %s805 = smul.addr %s804, 4
      %s806 = scalar_lea.vmem %s12, %s805
      %p807 = scmp.lt.s32.totalorder %s34, 1
      %s808 = scalar_select %p807, %s34, 1
      %s809 = scalar_lea.vmem %s13, %s808
      %p810 = scmp.lt.s32.totalorder %s34, 1
      %s811 = scalar_select %p810, %s34, 1
      %s812 = scalar_lea.vmem %s14, %s811
      %p813 = scmp.lt.s32.totalorder %s34, 1
      %s814 = scalar_select %p813, %s34, 1
      %s815 = scalar_lea.vmem %s15, %s814
      %p817 = scmp.eq.s32.totalorder %s34, 0
      // Predicated region
      $region105: #{bert_cnn_forward.1} parent=103 // pred_check
        %p818 = pneg %p817
      $region106: #{bert_cnn_forward.1} parent=103 // pred_check_branch
        %820 = sbr.rel (%p818) target = $region108
      $region107: #{bert_cnn_forward.1} parent=103 // pred_region
        %v821 = vld [vmem:[%s0] sm:$0xff]
        %v822 = vld [vmem:[%s0 + $0x8] sm:$0xff]
        %v823 = vld [vmem:[%s0 + $0x10] sm:$0xff]
        %v824 = vld [vmem:[%s0 + $0x18] sm:$0xff]
        %v825 = vld [vmem:[%s1] sm:$0x1]
        %v826 = vld [vmem:[%s2] sm:$0x1]
        %vm827 = vcmask 261120
        %v828 = vsel %vm827, %v821, 0.0
        %829 = vadd.xlane.f32.xlu0 %v828
        %v830 = vpop.xlane.xlu0 %829
        %v831 = vsel %vm827, %v822, 0.0
        %832 = vadd.xlane.f32.xlu0 %v831
        %v833 = vpop.xlane.xlu0 %832
        %v834 = vsel %vm827, %v823, 0.0
        %835 = vadd.xlane.f32.xlu0 %v834
        %v836 = vpop.xlane.xlu0 %835
        %v837 = vsel %vm827, %v824, 0.0
        %838 = vadd.xlane.f32.xlu0 %v837
        %v839 = vpop.xlane.xlu0 %838
        %v840 = vrcp.pop 32.0
        %v841 = vmul.f32 32.0, %v840
        %v842 = vsub.f32 1.0, %v841
        %v843 = vmul.f32 %v840, %v842
        %v844 = vadd.f32 %v840, %v843
        %vm845 = vweird.f32 %v840
        %v846 = vsel %vm845, %v840, %v844
        %v847 = vmul.f32 %v830, %v846
        %v848 = vmul.f32 %v833, %v846
        %v849 = vmul.f32 %v836, %v846
        %v850 = vmul.f32 %v839, %v846
        %v851 = vsub.f32 %v821, %v847
        %v852 = vsub.f32 %v822, %v848
        %v853 = vsub.f32 %v823, %v849
        %v854 = vsub.f32 %v824, %v850
        %v855 = vmul.f32 %v851, %v851
        %v856 = vmul.f32 %v852, %v852
        %v857 = vmul.f32 %v853, %v853
        %v858 = vmul.f32 %v854, %v854
        %v859 = vsel %vm827, %v855, 0.0
        %860 = vadd.xlane.f32.xlu0 %v859
        %v861 = vpop.xlane.xlu0 %860
        %v862 = vsel %vm827, %v856, 0.0
        %863 = vadd.xlane.f32.xlu0 %v862
        %v864 = vpop.xlane.xlu0 %863
        %v865 = vsel %vm827, %v857, 0.0
        %866 = vadd.xlane.f32.xlu0 %v865
        %v867 = vpop.xlane.xlu0 %866
        %v868 = vsel %vm827, %v858, 0.0
        %869 = vadd.xlane.f32.xlu0 %v868
        %v870 = vpop.xlane.xlu0 %869
        %v871 = vmul.f32 %v861, %v846
        %v872 = vmul.f32 %v864, %v846
        %v873 = vmul.f32 %v867, %v846
        %v874 = vmul.f32 %v870, %v846
        %v875 = vadd.f32 %v871, 1e-12
        %v876 = vadd.f32 %v872, 1e-12
        %v877 = vadd.f32 %v873, 1e-12
        %v878 = vadd.f32 %v874, 1e-12
        %v879 = vrsqrt.pop %v875
        %v880 = vmul.f32 %v879, %v875
        %v881 = vmul.f32 %v880, %v879
        %v882 = vmul.f32 0.5, %v881
        %v883 = vsub.f32 1.5, %v882
        %v884 = vmul.f32 %v879, %v883
        %vm885 = vweird.f32 %v875
        %vm886 = vweird.f32 %v879
        %vm887 = vmor %vm885, %vm886
        %v888 = vsel %vm887, %v879, %v884
        %v889 = vrsqrt.pop %v876
        %v890 = vmul.f32 %v889, %v876
        %v891 = vmul.f32 %v890, %v889
        %v892 = vmul.f32 0.5, %v891
        %v893 = vsub.f32 1.5, %v892
        %v894 = vmul.f32 %v889, %v893
        %vm895 = vweird.f32 %v876
        %vm896 = vweird.f32 %v889
        %vm897 = vmor %vm895, %vm896
        %v898 = vsel %vm897, %v889, %v894
        %v899 = vrsqrt.pop %v877
        %v900 = vmul.f32 %v899, %v877
        %v901 = vmul.f32 %v900, %v899
        %v902 = vmul.f32 0.5, %v901
        %v903 = vsub.f32 1.5, %v902
        %v904 = vmul.f32 %v899, %v903
        %vm905 = vweird.f32 %v877
        %vm906 = vweird.f32 %v899
        %vm907 = vmor %vm905, %vm906
        %v908 = vsel %vm907, %v899, %v904
        %v909 = vrsqrt.pop %v878
        %v910 = vmul.f32 %v909, %v878
        %v911 = vmul.f32 %v910, %v909
        %v912 = vmul.f32 0.5, %v911
        %v913 = vsub.f32 1.5, %v912
        %v914 = vmul.f32 %v909, %v913
        %vm915 = vweird.f32 %v878
        %vm916 = vweird.f32 %v909
        %vm917 = vmor %vm915, %vm916
        %v918 = vsel %vm917, %v909, %v914
        %v919 = vmul.f32 %v851, %v888
        %v920 = vmul.f32 %v852, %v898
        %v921 = vmul.f32 %v853, %v908
        %v922 = vmul.f32 %v854, %v918
        %v924 = vperm.slane %v825, 0
        %v926 = vmul.f32 %v919, %v924
        %v927 = vmul.f32 %v920, %v924
        %v928 = vmul.f32 %v921, %v924
        %v929 = vmul.f32 %v922, %v924
        %v931 = vperm.slane %v826, 0
        %v933 = vadd.f32 %v926, %v931
        %v934 = vadd.f32 %v927, %v931
        %v935 = vadd.f32 %v928, %v931
        %v936 = vadd.f32 %v929, %v931
        %937 = vst.msk [vmem:[#allocation2] sm:$0xff] %vm827, %v933
        %938 = vst.msk [vmem:[#allocation2 + $0x8] sm:$0xff] %vm827, %v934
        %939 = vst.msk [vmem:[#allocation2 + $0x10] sm:$0xff] %vm827, %v935
        %940 = vst.msk [vmem:[#allocation2 + $0x18] sm:$0xff] %vm827, %v936
      $region108: #{bert_cnn_forward.1} parent=103 // pred_fallthru
        _
      %v941 = vld [vmem:[#allocation2] sm:$0xff]
      %v942 = vld [vmem:[#allocation2 + $0x8] sm:$0xff]
      %v943 = vld [vmem:[#allocation2 + $0x10] sm:$0xff]
      %v944 = vld [vmem:[#allocation2 + $0x18] sm:$0xff]
      %v945 = vpack.c.bf16 %v942, %v941
      %v946 = vpack.c.bf16 %v944, %v943
      %v947 = vld [vmem:[%s776] sm:$0xf]
      %v948 = vld [vmem:[%s776 + $0x4] sm:$0xf]
      %v949 = vld [vmem:[%s776 + $0x8] sm:$0xf]
      %v950 = vld [vmem:[%s776 + $0xc] sm:$0xf]
      %v951 = vld [vmem:[%s779] sm:$0x1]
      %v953 = vperm.slane %v951, 0
      %v959 = vunpack.c.l.b16 %v947
      %v960 = vunpack.c.l.b16 %v948
      %v961 = vunpack.c.l.b16 %v949
      %v962 = vunpack.c.l.b16 %v950
      %v963 = vpack.c.b16 %v960, %v959
      %v964 = vpack.c.b16 %v962, %v961
      %vm967 = vcmask 261120
      %v969 = vsel %vm967, %v945, 0
      %v972 = vsel %vm967, %v946, 0
      %974 = vmatpush.bf16.msra.mxu0 0
      %975 = vmatpush.bf16.msra.mxu0 0
      %976 = vmatpush.bf16.msra.mxu0 0
      %977 = vmatpush.bf16.msra.mxu0 0
      %978 = vmatpush.bf16.msra.mxu0 0
      %979 = vmatpush.bf16.msra.mxu0 0
      %980 = vmatpush.bf16.msra.mxu0 %v964
      %981 = vmatpush.bf16.msra.mxu0 %v963
      %982 = vmatmul.bf16.gmra.mxu0 %v969
      %v983 = vpop.f32.mrf.mxu0
      %v984 = vadd.f32 %v953, %v983
      %v985 = vpop.f32.mrf.mxu0
      %v986 = vadd.f32 %v953, %v985
      %987 = vmatmul.bf16.gmra.mxu0 %v972
      %v988 = vpop.f32.mrf.mxu0
      %v989 = vadd.f32 %v953, %v988
      %v990 = vpop.f32.mrf.mxu0
      %v991 = vadd.f32 %v953, %v990
      %992 = vdwg.mxu0
      %993 = vxpose.xlu0.b32.start [1/16] %v984, 128
      %994 = vxpose.xlu0.b32.cont [2/16] %v986, 128
      %995 = vxpose.xlu0.b32.cont [3/16] %v989, 128
      %996 = vxpose.xlu0.b32.cont [4/16] %v991, 128
      %997 = vxpose.xlu0.b32.cont [5/16] 0.0, 128
      %998 = vxpose.xlu0.b32.cont [6/16] 0.0, 128
      %999 = vxpose.xlu0.b32.cont [7/16] 0.0, 128
      %1000 = vxpose.xlu0.b32.cont [8/16] 0.0, 128
      %1001 = vxpose.xlu0.b32.cont [9/16] 0.0, 128
      %1002 = vxpose.xlu0.b32.cont [10/16] 0.0, 128
      %1003 = vxpose.xlu0.b32.cont [11/16] 0.0, 128
      %1004 = vxpose.xlu0.b32.cont [12/16] 0.0, 128
      %1005 = vxpose.xlu0.b32.cont [13/16] 0.0, 128
      %1006 = vxpose.xlu0.b32.cont [14/16] 0.0, 128
      %1007 = vxpose.xlu0.b32.cont [15/16] 0.0, 128
      %1008 = vxpose.xlu0.b32.end [16/16] 0.0, 128
      %v1009 = vpop.trf.xlu0
      %v1010 = vpop.trf.xlu0
      %v1011 = vpop.trf.xlu0
      %v1012 = vpop.trf.xlu0
      %v1013 = vpop.trf.xlu0
      %v1014 = vpop.trf.xlu0
      %v1015 = vpop.trf.xlu0
      %v1016 = vpop.trf.xlu0
      %v1017 = vpop.trf.xlu0
      %v1018 = vpop.trf.xlu0
      %v1019 = vpop.trf.xlu0
      %v1020 = vpop.trf.xlu0
      %v1021 = vpop.trf.xlu0
      %v1022 = vpop.trf.xlu0
      %v1023 = vpop.trf.xlu0
      %v1024 = vpop.trf.xlu0
      %1025 = vxpose.xlu0.b32.start [1/16] %v1009, 128
      %1026 = vxpose.xlu0.b32.cont [2/16] 0.0, 128
      %1027 = vxpose.xlu0.b32.cont [3/16] 0.0, 128
      %1028 = vxpose.xlu0.b32.cont [4/16] 0.0, 128
      %1029 = vxpose.xlu0.b32.cont [5/16] 0.0, 128
      %1030 = vxpose.xlu0.b32.cont [6/16] 0.0, 128
      %1031 = vxpose.xlu0.b32.cont [7/16] 0.0, 128
      %1032 = vxpose.xlu0.b32.cont [8/16] 0.0, 128
      %1033 = vxpose.xlu0.b32.cont [9/16] 0.0, 128
      %1034 = vxpose.xlu0.b32.cont [10/16] 0.0, 128
      %1035 = vxpose.xlu0.b32.cont [11/16] 0.0, 128
      %1036 = vxpose.xlu0.b32.cont [12/16] 0.0, 128
      %1037 = vxpose.xlu0.b32.cont [13/16] 0.0, 128
      %1038 = vxpose.xlu0.b32.cont [14/16] 0.0, 128
      %1039 = vxpose.xlu0.b32.cont [15/16] 0.0, 128
      %1040 = vxpose.xlu0.b32.end [16/16] 0.0, 128
      %v1041 = vpop.trf.xlu0
      %v1042 = vpop.trf.xlu0
      %v1043 = vpop.trf.xlu0
      %v1044 = vpop.trf.xlu0
      %v1045 = vpop.trf.xlu0
      %v1046 = vpop.trf.xlu0
      %v1047 = vpop.trf.xlu0
      %v1048 = vpop.trf.xlu0
      %v1049 = vpop.trf.xlu0
      %v1050 = vpop.trf.xlu0
      %v1051 = vpop.trf.xlu0
      %v1052 = vpop.trf.xlu0
      %v1053 = vpop.trf.xlu0
      %v1054 = vpop.trf.xlu0
      %v1055 = vpop.trf.xlu0
      %v1056 = vpop.trf.xlu0
      %1057 = vxpose.xlu0.b32.start [1/16] %v1010, 128
      %1058 = vxpose.xlu0.b32.cont [2/16] 0.0, 128
      %1059 = vxpose.xlu0.b32.cont [3/16] 0.0, 128
      %1060 = vxpose.xlu0.b32.cont [4/16] 0.0, 128
      %1061 = vxpose.xlu0.b32.cont [5/16] 0.0, 128
      %1062 = vxpose.xlu0.b32.cont [6/16] 0.0, 128
      %1063 = vxpose.xlu0.b32.cont [7/16] 0.0, 128
      %1064 = vxpose.xlu0.b32.cont [8/16] 0.0, 128
      %1065 = vxpose.xlu0.b32.cont [9/16] 0.0, 128
      %1066 = vxpose.xlu0.b32.cont [10/16] 0.0, 128
      %1067 = vxpose.xlu0.b32.cont [11/16] 0.0, 128
      %1068 = vxpose.xlu0.b32.cont [12/16] 0.0, 128
      %1069 = vxpose.xlu0.b32.cont [13/16] 0.0, 128
      %1070 = vxpose.xlu0.b32.cont [14/16] 0.0, 128
      %1071 = vxpose.xlu0.b32.cont [15/16] 0.0, 128
      %1072 = vxpose.xlu0.b32.end [16/16] 0.0, 128
      %v1073 = vpop.trf.xlu0
      %v1074 = vpop.trf.xlu0
      %v1075 = vpop.trf.xlu0
      %v1076 = vpop.trf.xlu0
      %v1077 = vpop.trf.xlu0
      %v1078 = vpop.trf.xlu0
      %v1079 = vpop.trf.xlu0
      %v1080 = vpop.trf.xlu0
      %v1081 = vpop.trf.xlu0
      %v1082 = vpop.trf.xlu0
      %v1083 = vpop.trf.xlu0
      %v1084 = vpop.trf.xlu0
      %v1085 = vpop.trf.xlu0
      %v1086 = vpop.trf.xlu0
      %v1087 = vpop.trf.xlu0
      %v1088 = vpop.trf.xlu0
      %1089 = vxpose.xlu0.b32.start [1/16] %v1011, 128
      %1090 = vxpose.xlu0.b32.cont [2/16] 0.0, 128
      %1091 = vxpose.xlu0.b32.cont [3/16] 0.0, 128
      %1092 = vxpose.xlu0.b32.cont [4/16] 0.0, 128
      %1093 = vxpose.xlu0.b32.cont [5/16] 0.0, 128
      %1094 = vxpose.xlu0.b32.cont [6/16] 0.0, 128
      %1095 = vxpose.xlu0.b32.cont [7/16] 0.0, 128
      %1096 = vxpose.xlu0.b32.cont [8/16] 0.0, 128
      %1097 = vxpose.xlu0.b32.cont [9/16] 0.0, 128
      %1098 = vxpose.xlu0.b32.cont [10/16] 0.0, 128
      %1099 = vxpose.xlu0.b32.cont [11/16] 0.0, 128
      %1100 = vxpose.xlu0.b32.cont [12/16] 0.0, 128
      %1101 = vxpose.xlu0.b32.cont [13/16] 0.0, 128
      %1102 = vxpose.xlu0.b32.cont [14/16] 0.0, 128
      %1103 = vxpose.xlu0.b32.cont [15/16] 0.0, 128
      %1104 = vxpose.xlu0.b32.end [16/16] 0.0, 128
      %v1105 = vpop.trf.xlu0
      %v1106 = vpop.trf.xlu0
      %v1107 = vpop.trf.xlu0
      %v1108 = vpop.trf.xlu0
      %v1109 = vpop.trf.xlu0
      %v1110 = vpop.trf.xlu0
      %v1111 = vpop.trf.xlu0
      %v1112 = vpop.trf.xlu0
      %v1113 = vpop.trf.xlu0
      %v1114 = vpop.trf.xlu0
      %v1115 = vpop.trf.xlu0
      %v1116 = vpop.trf.xlu0
      %v1117 = vpop.trf.xlu0
      %v1118 = vpop.trf.xlu0
      %v1119 = vpop.trf.xlu0
      %v1120 = vpop.trf.xlu0
      %1121 = vxpose.xlu0.b32.start [1/16] %v1012, 128
      %1122 = vxpose.xlu0.b32.cont [2/16] 0.0, 128
      %1123 = vxpose.xlu0.b32.cont [3/16] 0.0, 128
      %1124 = vxpose.xlu0.b32.cont [4/16] 0.0, 128
      %1125 = vxpose.xlu0.b32.cont [5/16] 0.0, 128
      %1126 = vxpose.xlu0.b32.cont [6/16] 0.0, 128
      %1127 = vxpose.xlu0.b32.cont [7/16] 0.0, 128
      %1128 = vxpose.xlu0.b32.cont [8/16] 0.0, 128
      %1129 = vxpose.xlu0.b32.cont [9/16] 0.0, 128
      %1130 = vxpose.xlu0.b32.cont [10/16] 0.0, 128
      %1131 = vxpose.xlu0.b32.cont [11/16] 0.0, 128
      %1132 = vxpose.xlu0.b32.cont [12/16] 0.0, 128
      %1133 = vxpose.xlu0.b32.cont [13/16] 0.0, 128
      %1134 = vxpose.xlu0.b32.cont [14/16] 0.0, 128
      %1135 = vxpose.xlu0.b32.cont [15/16] 0.0, 128
      %1136 = vxpose.xlu0.b32.end [16/16] 0.0, 128
      %v1137 = vpop.trf.xlu0
      %v1138 = vpop.trf.xlu0
      %v1139 = vpop.trf.xlu0
      %v1140 = vpop.trf.xlu0
      %v1141 = vpop.trf.xlu0
      %v1142 = vpop.trf.xlu0
      %v1143 = vpop.trf.xlu0
      %v1144 = vpop.trf.xlu0
      %v1145 = vpop.trf.xlu0
      %v1146 = vpop.trf.xlu0
      %v1147 = vpop.trf.xlu0
      %v1148 = vpop.trf.xlu0
      %v1149 = vpop.trf.xlu0
      %v1150 = vpop.trf.xlu0
      %v1151 = vpop.trf.xlu0
      %v1152 = vpop.trf.xlu0
      %v1153 = vpack.c.bf16 %v1041, %v1041
      %v1154 = vpack.c.bf16 %v1042, %v1042
      %v1155 = vpack.c.bf16 %v1043, %v1043
      %v1156 = vpack.c.bf16 %v1044, %v1044
      %v1157 = vpack.c.bf16 %v1073, %v1073
      %v1158 = vpack.c.bf16 %v1074, %v1074
      %v1159 = vpack.c.bf16 %v1075, %v1075
      %v1160 = vpack.c.bf16 %v1076, %v1076
      %v1161 = vpack.c.bf16 %v1105, %v1105
      %v1162 = vpack.c.bf16 %v1106, %v1106
      %v1163 = vpack.c.bf16 %v1107, %v1107
      %v1164 = vpack.c.bf16 %v1108, %v1108
      %v1165 = vpack.c.bf16 %v1137, %v1137
      %v1166 = vpack.c.bf16 %v1138, %v1138
      %v1167 = vpack.c.bf16 %v1139, %v1139
      %v1168 = vpack.c.bf16 %v1140, %v1140
      %1169 = vxpose.xlu0.b32.start [1/16] %v1013, 128
      %1170 = vxpose.xlu0.b32.cont [2/16] 0.0, 128
      %1171 = vxpose.xlu0.b32.cont [3/16] 0.0, 128
      %1172 = vxpose.xlu0.b32.cont [4/16] 0.0, 128
      %1173 = vxpose.xlu0.b32.cont [5/16] 0.0, 128
      %1174 = vxpose.xlu0.b32.cont [6/16] 0.0, 128
      %1175 = vxpose.xlu0.b32.cont [7/16] 0.0, 128
      %1176 = vxpose.xlu0.b32.cont [8/16] 0.0, 128
      %1177 = vxpose.xlu0.b32.cont [9/16] 0.0, 128
      %1178 = vxpose.xlu0.b32.cont [10/16] 0.0, 128
      %1179 = vxpose.xlu0.b32.cont [11/16] 0.0, 128
      %1180 = vxpose.xlu0.b32.cont [12/16] 0.0, 128
      %1181 = vxpose.xlu0.b32.cont [13/16] 0.0, 128
      %1182 = vxpose.xlu0.b32.cont [14/16] 0.0, 128
      %1183 = vxpose.xlu0.b32.cont [15/16] 0.0, 128
      %1184 = vxpose.xlu0.b32.end [16/16] 0.0, 128
      %v1185 = vpop.trf.xlu0
      %v1186 = vpop.trf.xlu0
      %v1187 = vpop.trf.xlu0
      %v1188 = vpop.trf.xlu0
      %v1189 = vpop.trf.xlu0
      %v1190 = vpop.trf.xlu0
      %v1191 = vpop.trf.xlu0
      %v1192 = vpop.trf.xlu0
      %v1193 = vpop.trf.xlu0
      %v1194 = vpop.trf.xlu0
      %v1195 = vpop.trf.xlu0
      %v1196 = vpop.trf.xlu0
      %v1197 = vpop.trf.xlu0
      %v1198 = vpop.trf.xlu0
      %v1199 = vpop.trf.xlu0
      %v1200 = vpop.trf.xlu0
      %1201 = vxpose.xlu0.b32.start [1/16] %v1014, 128
      %1202 = vxpose.xlu0.b32.cont [2/16] 0.0, 128
      %1203 = vxpose.xlu0.b32.cont [3/16] 0.0, 128
      %1204 = vxpose.xlu0.b32.cont [4/16] 0.0, 128
      %1205 = vxpose.xlu0.b32.cont [5/16] 0.0, 128
      %1206 = vxpose.xlu0.b32.cont [6/16] 0.0, 128
      %1207 = vxpose.xlu0.b32.cont [7/16] 0.0, 128
      %1208 = vxpose.xlu0.b32.cont [8/16] 0.0, 128
      %1209 = vxpose.xlu0.b32.cont [9/16] 0.0, 128
      %1210 = vxpose.xlu0.b32.cont [10/16] 0.0, 128
      %1211 = vxpose.xlu0.b32.cont [11/16] 0.0, 128
      %1212 = vxpose.xlu0.b32.cont [12/16] 0.0, 128
      %1213 = vxpose.xlu0.b32.cont [13/16] 0.0, 128
      %1214 = vxpose.xlu0.b32.cont [14/16] 0.0, 128
      %1215 = vxpose.xlu0.b32.cont [15/16] 0.0, 128
      %1216 = vxpose.xlu0.b32.end [16/16] 0.0, 128
      %v1217 = vpop.trf.xlu0
      %v1218 = vpop.trf.xlu0
      %v1219 = vpop.trf.xlu0
      %v1220 = vpop.trf.xlu0
      %v1221 = vpop.trf.xlu0
      %v1222 = vpop.trf.xlu0
      %v1223 = vpop.trf.xlu0
      %v1224 = vpop.trf.xlu0
      %v1225 = vpop.trf.xlu0
      %v1226 = vpop.trf.xlu0
      %v1227 = vpop.trf.xlu0
      %v1228 = vpop.trf.xlu0
      %v1229 = vpop.trf.xlu0
      %v1230 = vpop.trf.xlu0
      %v1231 = vpop.trf.xlu0
      %v1232 = vpop.trf.xlu0
      %1233 = vxpose.xlu0.b32.start [1/16] %v1015, 128
      %1234 = vxpose.xlu0.b32.cont [2/16] 0.0, 128
      %1235 = vxpose.xlu0.b32.cont [3/16] 0.0, 128
      %1236 = vxpose.xlu0.b32.cont [4/16] 0.0, 128
      %1237 = vxpose.xlu0.b32.cont [5/16] 0.0, 128
      %1238 = vxpose.xlu0.b32.cont [6/16] 0.0, 128
      %1239 = vxpose.xlu0.b32.cont [7/16] 0.0, 128
      %1240 = vxpose.xlu0.b32.cont [8/16] 0.0, 128
      %1241 = vxpose.xlu0.b32.cont [9/16] 0.0, 128
      %1242 = vxpose.xlu0.b32.cont [10/16] 0.0, 128
      %1243 = vxpose.xlu0.b32.cont [11/16] 0.0, 128
      %1244 = vxpose.xlu0.b32.cont [12/16] 0.0, 128
      %1245 = vxpose.xlu0.b32.cont [13/16] 0.0, 128
      %1246 = vxpose.xlu0.b32.cont [14/16] 0.0, 128
      %1247 = vxpose.xlu0.b32.cont [15/16] 0.0, 128
      %1248 = vxpose.xlu0.b32.end [16/16] 0.0, 128
      %v1249 = vpop.trf.xlu0
      %v1250 = vpop.trf.xlu0
      %v1251 = vpop.trf.xlu0
      %v1252 = vpop.trf.xlu0
      %v1253 = vpop.trf.xlu0
      %v1254 = vpop.trf.xlu0
      %v1255 = vpop.trf.xlu0
      %v1256 = vpop.trf.xlu0
      %v1257 = vpop.trf.xlu0
      %v1258 = vpop.trf.xlu0
      %v1259 = vpop.trf.xlu0
      %v1260 = vpop.trf.xlu0
      %v1261 = vpop.trf.xlu0
      %v1262 = vpop.trf.xlu0
      %v1263 = vpop.trf.xlu0
      %v1264 = vpop.trf.xlu0
      %1265 = vxpose.xlu0.b32.start [1/16] %v1016, 128
      %1266 = vxpose.xlu0.b32.cont [2/16] 0.0, 128
      %1267 = vxpose.xlu0.b32.cont [3/16] 0.0, 128
      %1268 = vxpose.xlu0.b32.cont [4/16] 0.0, 128
      %1269 = vxpose.xlu0.b32.cont [5/16] 0.0, 128
      %1270 = vxpose.xlu0.b32.cont [6/16] 0.0, 128
      %1271 = vxpose.xlu0.b32.cont [7/16] 0.0, 128
      %1272 = vxpose.xlu0.b32.cont [8/16] 0.0, 128
      %1273 = vxpose.xlu0.b32.cont [9/16] 0.0, 128
      %1274 = vxpose.xlu0.b32.cont [10/16] 0.0, 128
      %1275 = vxpose.xlu0.b32.cont [11/16] 0.0, 128
      %1276 = vxpose.xlu0.b32.cont [12/16] 0.0, 128
      %1277 = vxpose.xlu0.b32.cont [13/16] 0.0, 128
      %1278 = vxpose.xlu0.b32.cont [14/16] 0.0, 128
      %1279 = vxpose.xlu0.b32.cont [15/16] 0.0, 128
      %1280 = vxpose.xlu0.b32.end [16/16] 0.0, 128
      %v1281 = vpop.trf.xlu0
      %v1282 = vpop.trf.xlu0
      %v1283 = vpop.trf.xlu0
      %v1284 = vpop.trf.xlu0
      %v1285 = vpop.trf.xlu0
      %v1286 = vpop.trf.xlu0
      %v1287 = vpop.trf.xlu0
      %v1288 = vpop.trf.xlu0
      %v1289 = vpop.trf.xlu0
      %v1290 = vpop.trf.xlu0
      %v1291 = vpop.trf.xlu0
      %v1292 = vpop.trf.xlu0
      %v1293 = vpop.trf.xlu0
      %v1294 = vpop.trf.xlu0
      %v1295 = vpop.trf.xlu0
      %v1296 = vpop.trf.xlu0
      %v1297 = vpack.c.bf16 %v1185, %v1185
      %v1298 = vpack.c.bf16 %v1186, %v1186
      %v1299 = vpack.c.bf16 %v1187, %v1187
      %v1300 = vpack.c.bf16 %v1188, %v1188
      %v1301 = vpack.c.bf16 %v1217, %v1217
      %v1302 = vpack.c.bf16 %v1218, %v1218
      %v1303 = vpack.c.bf16 %v1219, %v1219
      %v1304 = vpack.c.bf16 %v1220, %v1220
      %v1305 = vpack.c.bf16 %v1249, %v1249
      %v1306 = vpack.c.bf16 %v1250, %v1250
      %v1307 = vpack.c.bf16 %v1251, %v1251
      %v1308 = vpack.c.bf16 %v1252, %v1252
      %v1309 = vpack.c.bf16 %v1281, %v1281
      %v1310 = vpack.c.bf16 %v1282, %v1282
      %v1311 = vpack.c.bf16 %v1283, %v1283
      %v1312 = vpack.c.bf16 %v1284, %v1284
      %1313 = vxpose.xlu0.b32.start [1/16] %v1017, 128
      %1314 = vxpose.xlu0.b32.cont [2/16] 0.0, 128
      %1315 = vxpose.xlu0.b32.cont [3/16] 0.0, 128
      %1316 = vxpose.xlu0.b32.cont [4/16] 0.0, 128
      %1317 = vxpose.xlu0.b32.cont [5/16] 0.0, 128
      %1318 = vxpose.xlu0.b32.cont [6/16] 0.0, 128
      %1319 = vxpose.xlu0.b32.cont [7/16] 0.0, 128
      %1320 = vxpose.xlu0.b32.cont [8/16] 0.0, 128
      %1321 = vxpose.xlu0.b32.cont [9/16] 0.0, 128
      %1322 = vxpose.xlu0.b32.cont [10/16] 0.0, 128
      %1323 = vxpose.xlu0.b32.cont [11/16] 0.0, 128
      %1324 = vxpose.xlu0.b32.cont [12/16] 0.0, 128
      %1325 = vxpose.xlu0.b32.cont [13/16] 0.0, 128
      %1326 = vxpose.xlu0.b32.cont [14/16] 0.0, 128
      %1327 = vxpose.xlu0.b32.cont [15/16] 0.0, 128
      %1328 = vxpose.xlu0.b32.end [16/16] 0.0, 128
      %v1329 = vpop.trf.xlu0
      %v1330 = vpop.trf.xlu0
      %v1331 = vpop.trf.xlu0
      %v1332 = vpop.trf.xlu0
      %v1333 = vpop.trf.xlu0
      %v1334 = vpop.trf.xlu0
      %v1335 = vpop.trf.xlu0
      %v1336 = vpop.trf.xlu0
      %v1337 = vpop.trf.xlu0
      %v1338 = vpop.trf.xlu0
      %v1339 = vpop.trf.xlu0
      %v1340 = vpop.trf.xlu0
      %v1341 = vpop.trf.xlu0
      %v1342 = vpop.trf.xlu0
      %v1343 = vpop.trf.xlu0
      %v1344 = vpop.trf.xlu0
      %1345 = vxpose.xlu0.b32.start [1/16] %v1018, 128
      %1346 = vxpose.xlu0.b32.cont [2/16] 0.0, 128
      %1347 = vxpose.xlu0.b32.cont [3/16] 0.0, 128
      %1348 = vxpose.xlu0.b32.cont [4/16] 0.0, 128
      %1349 = vxpose.xlu0.b32.cont [5/16] 0.0, 128
      %1350 = vxpose.xlu0.b32.cont [6/16] 0.0, 128
      %1351 = vxpose.xlu0.b32.cont [7/16] 0.0, 128
      %1352 = vxpose.xlu0.b32.cont [8/16] 0.0, 128
      %1353 = vxpose.xlu0.b32.cont [9/16] 0.0, 128
      %1354 = vxpose.xlu0.b32.cont [10/16] 0.0, 128
      %1355 = vxpose.xlu0.b32.cont [11/16] 0.0, 128
      %1356 = vxpose.xlu0.b32.cont [12/16] 0.0, 128
      %1357 = vxpose.xlu0.b32.cont [13/16] 0.0, 128
      %1358 = vxpose.xlu0.b32.cont [14/16] 0.0, 128
      %1359 = vxpose.xlu0.b32.cont [15/16] 0.0, 128
      %1360 = vxpose.xlu0.b32.end [16/16] 0.0, 128
      %v1361 = vpop.trf.xlu0
      %v1362 = vpop.trf.xlu0
      %v1363 = vpop.trf.xlu0
      %v1364 = vpop.trf.xlu0
      %v1365 = vpop.trf.xlu0
      %v1366 = vpop.trf.xlu0
      %v1367 = vpop.trf.xlu0
      %v1368 = vpop.trf.xlu0
      %v1369 = vpop.trf.xlu0
      %v1370 = vpop.trf.xlu0
      %v1371 = vpop.trf.xlu0
      %v1372 = vpop.trf.xlu0
      %v1373 = vpop.trf.xlu0
      %v1374 = vpop.trf.xlu0
      %v1375 = vpop.trf.xlu0
      %v1376 = vpop.trf.xlu0
      %1377 = vxpose.xlu0.b32.start [1/16] %v1019, 128
      %1378 = vxpose.xlu0.b32.cont [2/16] 0.0, 128
      %1379 = vxpose.xlu0.b32.cont [3/16] 0.0, 128
      %1380 = vxpose.xlu0.b32.cont [4/16] 0.0, 128
      %1381 = vxpose.xlu0.b32.cont [5/16] 0.0, 128
      %1382 = vxpose.xlu0.b32.cont [6/16] 0.0, 128
      %1383 = vxpose.xlu0.b32.cont [7/16] 0.0, 128
      %1384 = vxpose.xlu0.b32.cont [8/16] 0.0, 128
      %1385 = vxpose.xlu0.b32.cont [9/16] 0.0, 128
      %1386 = vxpose.xlu0.b32.cont [10/16] 0.0, 128
      %1387 = vxpose.xlu0.b32.cont [11/16] 0.0, 128
      %1388 = vxpose.xlu0.b32.cont [12/16] 0.0, 128
      %1389 = vxpose.xlu0.b32.cont [13/16] 0.0, 128
      %1390 = vxpose.xlu0.b32.cont [14/16] 0.0, 128
      %1391 = vxpose.xlu0.b32.cont [15/16] 0.0, 128
      %1392 = vxpose.xlu0.b32.end [16/16] 0.0, 128
      %v1393 = vpop.trf.xlu0
      %v1394 = vpop.trf.xlu0
      %v1395 = vpop.trf.xlu0
      %v1396 = vpop.trf.xlu0
      %v1397 = vpop.trf.xlu0
      %v1398 = vpop.trf.xlu0
      %v1399 = vpop.trf.xlu0
      %v1400 = vpop.trf.xlu0
      %v1401 = vpop.trf.xlu0
      %v1402 = vpop.trf.xlu0
      %v1403 = vpop.trf.xlu0
      %v1404 = vpop.trf.xlu0
      %v1405 = vpop.trf.xlu0
      %v1406 = vpop.trf.xlu0
      %v1407 = vpop.trf.xlu0
      %v1408 = vpop.trf.xlu0
      %1409 = vxpose.xlu0.b32.start [1/16] %v1020, 128
      %1410 = vxpose.xlu0.b32.cont [2/16] 0.0, 128
      %1411 = vxpose.xlu0.b32.cont [3/16] 0.0, 128
      %1412 = vxpose.xlu0.b32.cont [4/16] 0.0, 128
      %1413 = vxpose.xlu0.b32.cont [5/16] 0.0, 128
      %1414 = vxpose.xlu0.b32.cont [6/16] 0.0, 128
      %1415 = vxpose.xlu0.b32.cont [7/16] 0.0, 128
      %1416 = vxpose.xlu0.b32.cont [8/16] 0.0, 128
      %1417 = vxpose.xlu0.b32.cont [9/16] 0.0, 128
      %1418 = vxpose.xlu0.b32.cont [10/16] 0.0, 128
      %1419 = vxpose.xlu0.b32.cont [11/16] 0.0, 128
      %1420 = vxpose.xlu0.b32.cont [12/16] 0.0, 128
      %1421 = vxpose.xlu0.b32.cont [13/16] 0.0, 128
      %1422 = vxpose.xlu0.b32.cont [14/16] 0.0, 128
      %1423 = vxpose.xlu0.b32.cont [15/16] 0.0, 128
      %1424 = vxpose.xlu0.b32.end [16/16] 0.0, 128
      %v1425 = vpop.trf.xlu0
      %v1426 = vpop.trf.xlu0
      %v1427 = vpop.trf.xlu0
      %v1428 = vpop.trf.xlu0
      %v1429 = vpop.trf.xlu0
      %v1430 = vpop.trf.xlu0
      %v1431 = vpop.trf.xlu0
      %v1432 = vpop.trf.xlu0
      %v1433 = vpop.trf.xlu0
      %v1434 = vpop.trf.xlu0
      %v1435 = vpop.trf.xlu0
      %v1436 = vpop.trf.xlu0
      %v1437 = vpop.trf.xlu0
      %v1438 = vpop.trf.xlu0
      %v1439 = vpop.trf.xlu0
      %v1440 = vpop.trf.xlu0
      %v1441 = vpack.c.bf16 %v1329, %v1329
      %v1442 = vpack.c.bf16 %v1330, %v1330
      %v1443 = vpack.c.bf16 %v1331, %v1331
      %v1444 = vpack.c.bf16 %v1332, %v1332
      %v1445 = vpack.c.bf16 %v1361, %v1361
      %v1446 = vpack.c.bf16 %v1362, %v1362
      %v1447 = vpack.c.bf16 %v1363, %v1363
      %v1448 = vpack.c.bf16 %v1364, %v1364
      %v1449 = vpack.c.bf16 %v1393, %v1393
      %v1450 = vpack.c.bf16 %v1394, %v1394
      %v1451 = vpack.c.bf16 %v1395, %v1395
      %v1452 = vpack.c.bf16 %v1396, %v1396
      %v1453 = vpack.c.bf16 %v1425, %v1425
      %v1454 = vpack.c.bf16 %v1426, %v1426
      %v1455 = vpack.c.bf16 %v1427, %v1427
      %v1456 = vpack.c.bf16 %v1428, %v1428
      %v1457 = vld [vmem:[%s3] sm:$0xff]
      %v1458 = vld [vmem:[%s3 + $0x8] sm:$0xff]
      %v1459 = vld [vmem:[%s3 + $0x10] sm:$0xff]
      %v1460 = vld [vmem:[%s3 + $0x18] sm:$0xff]
      %v1465 = vunpack.c.l.b16 %v1153
      %v1466 = vunpack.c.l.b16 %v1154
      %v1467 = vunpack.c.l.b16 %v1155
      %v1468 = vunpack.c.l.b16 %v1156
      %v1469 = vpack.c.b16 %v1466, %v1465
      %v1470 = vpack.c.b16 %v1468, %v1467
      %v1475 = vunpack.c.l.b16 %v1297
      %v1476 = vunpack.c.l.b16 %v1298
      %v1477 = vunpack.c.l.b16 %v1299
      %v1478 = vunpack.c.l.b16 %v1300
      %v1479 = vpack.c.b16 %v1476, %v1475
      %v1480 = vpack.c.b16 %v1478, %v1477
      %vm1481 = vcmask 64512
      %v1483 = vsel %vm1481, %v1469, 0
      %v1486 = vsel %vm1481, %v1470, 0
      %v1489 = vsel %vm1481, %v1479, 0
      %v1492 = vsel %vm1481, %v1480, 0
      %1494 = vmatpush.bf16.xpose.msra.mxu0 0
      %1495 = vmatpush.bf16.xpose.msra.mxu0 0
      %1496 = vmatpush.bf16.xpose.msra.mxu0 0
      %1497 = vmatpush.bf16.xpose.msra.mxu0 0
      %1498 = vmatpush.bf16.xpose.msra.mxu0 0
      %1499 = vmatpush.bf16.xpose.msra.mxu0 0
      %1500 = vmatpush.bf16.xpose.msra.mxu0 %v1492
      %1501 = vmatpush.bf16.xpose.msra.mxu0 %v1489
      %1502 = vmatmul.bf16.gmra.mxu0 %v1483
      %v1503 = vpop.f32.mrf.mxu0
      %v1504 = vadd.f32 %v1457, %v1503
      %v1505 = vpop.f32.mrf.mxu0
      %v1506 = vadd.f32 %v1458, %v1505
      %1507 = vmatmul.bf16.gmra.mxu0 %v1486
      %v1508 = vpop.f32.mrf.mxu0
      %v1509 = vadd.f32 %v1459, %v1508
      %v1510 = vpop.f32.mrf.mxu0
      %v1511 = vadd.f32 %v1460, %v1510
      %1512 = vdwg.mxu0
      %v1517 = vunpack.c.l.b16 %v1157
      %v1518 = vunpack.c.l.b16 %v1158
      %v1519 = vunpack.c.l.b16 %v1159
      %v1520 = vunpack.c.l.b16 %v1160
      %v1521 = vpack.c.b16 %v1518, %v1517
      %v1522 = vpack.c.b16 %v1520, %v1519
      %v1527 = vunpack.c.l.b16 %v1301
      %v1528 = vunpack.c.l.b16 %v1302
      %v1529 = vunpack.c.l.b16 %v1303
      %v1530 = vunpack.c.l.b16 %v1304
      %v1531 = vpack.c.b16 %v1528, %v1527
      %v1532 = vpack.c.b16 %v1530, %v1529
      %v1534 = vsel %vm1481, %v1521, 0
      %v1537 = vsel %vm1481, %v1522, 0
      %v1540 = vsel %vm1481, %v1531, 0
      %v1543 = vsel %vm1481, %v1532, 0
      %1545 = vmatpush.bf16.xpose.msra.mxu0 0
      %1546 = vmatpush.bf16.xpose.msra.mxu0 0
      %1547 = vmatpush.bf16.xpose.msra.mxu0 0
      %1548 = vmatpush.bf16.xpose.msra.mxu0 0
      %1549 = vmatpush.bf16.xpose.msra.mxu0 0
      %1550 = vmatpush.bf16.xpose.msra.mxu0 0
      %1551 = vmatpush.bf16.xpose.msra.mxu0 %v1543
      %1552 = vmatpush.bf16.xpose.msra.mxu0 %v1540
      %1553 = vmatmul.bf16.gmra.mxu0 %v1534
      %v1554 = vpop.f32.mrf.mxu0
      %v1555 = vadd.f32 %v1457, %v1554
      %v1556 = vpop.f32.mrf.mxu0
      %v1557 = vadd.f32 %v1458, %v1556
      %1558 = vmatmul.bf16.gmra.mxu0 %v1537
      %v1559 = vpop.f32.mrf.mxu0
      %v1560 = vadd.f32 %v1459, %v1559
      %v1561 = vpop.f32.mrf.mxu0
      %v1562 = vadd.f32 %v1460, %v1561
      %1563 = vdwg.mxu0
      %v1568 = vunpack.c.l.b16 %v1161
      %v1569 = vunpack.c.l.b16 %v1162
      %v1570 = vunpack.c.l.b16 %v1163
      %v1571 = vunpack.c.l.b16 %v1164
      %v1572 = vpack.c.b16 %v1569, %v1568
      %v1573 = vpack.c.b16 %v1571, %v1570
      %v1578 = vunpack.c.l.b16 %v1305
      %v1579 = vunpack.c.l.b16 %v1306
      %v1580 = vunpack.c.l.b16 %v1307
      %v1581 = vunpack.c.l.b16 %v1308
      %v1582 = vpack.c.b16 %v1579, %v1578
      %v1583 = vpack.c.b16 %v1581, %v1580
      %v1585 = vsel %vm1481, %v1572, 0
      %v1588 = vsel %vm1481, %v1573, 0
      %v1591 = vsel %vm1481, %v1582, 0
      %v1594 = vsel %vm1481, %v1583, 0
      %1596 = vmatpush.bf16.xpose.msra.mxu0 0
      %1597 = vmatpush.bf16.xpose.msra.mxu0 0
      %1598 = vmatpush.bf16.xpose.msra.mxu0 0
      %1599 = vmatpush.bf16.xpose.msra.mxu0 0
      %1600 = vmatpush.bf16.xpose.msra.mxu0 0
      %1601 = vmatpush.bf16.xpose.msra.mxu0 0
      %1602 = vmatpush.bf16.xpose.msra.mxu0 %v1594
      %1603 = vmatpush.bf16.xpose.msra.mxu0 %v1591
      %1604 = vmatmul.bf16.gmra.mxu0 %v1585
      %v1605 = vpop.f32.mrf.mxu0
      %v1606 = vadd.f32 %v1457, %v1605
      %v1607 = vpop.f32.mrf.mxu0
      %v1608 = vadd.f32 %v1458, %v1607
      %1609 = vmatmul.bf16.gmra.mxu0 %v1588
      %v1610 = vpop.f32.mrf.mxu0
      %v1611 = vadd.f32 %v1459, %v1610
      %v1612 = vpop.f32.mrf.mxu0
      %v1613 = vadd.f32 %v1460, %v1612
      %1614 = vdwg.mxu0
      %v1619 = vunpack.c.l.b16 %v1165
      %v1620 = vunpack.c.l.b16 %v1166
      %v1621 = vunpack.c.l.b16 %v1167
      %v1622 = vunpack.c.l.b16 %v1168
      %v1623 = vpack.c.b16 %v1620, %v1619
      %v1624 = vpack.c.b16 %v1622, %v1621
      %v1629 = vunpack.c.l.b16 %v1309
      %v1630 = vunpack.c.l.b16 %v1310
      %v1631 = vunpack.c.l.b16 %v1311
      %v1632 = vunpack.c.l.b16 %v1312
      %v1633 = vpack.c.b16 %v1630, %v1629
      %v1634 = vpack.c.b16 %v1632, %v1631
      %v1636 = vsel %vm1481, %v1623, 0
      %v1639 = vsel %vm1481, %v1624, 0
      %v1642 = vsel %vm1481, %v1633, 0
      %v1645 = vsel %vm1481, %v1634, 0
      %1647 = vmatpush.bf16.xpose.msra.mxu0 0
      %1648 = vmatpush.bf16.xpose.msra.mxu0 0
      %1649 = vmatpush.bf16.xpose.msra.mxu0 0
      %1650 = vmatpush.bf16.xpose.msra.mxu0 0
      %1651 = vmatpush.bf16.xpose.msra.mxu0 0
      %1652 = vmatpush.bf16.xpose.msra.mxu0 0
      %1653 = vmatpush.bf16.xpose.msra.mxu0 %v1645
      %1654 = vmatpush.bf16.xpose.msra.mxu0 %v1642
      %1655 = vmatmul.bf16.gmra.mxu0 %v1636
      %v1656 = vpop.f32.mrf.mxu0
      %v1657 = vadd.f32 %v1457, %v1656
      %v1658 = vpop.f32.mrf.mxu0
      %v1659 = vadd.f32 %v1458, %v1658
      %1660 = vmatmul.bf16.gmra.mxu0 %v1639
      %v1661 = vpop.f32.mrf.mxu0
      %v1662 = vadd.f32 %v1459, %v1661
      %v1663 = vpop.f32.mrf.mxu0
      %v1664 = vadd.f32 %v1460, %v1663
      %1665 = vdwg.mxu0
      %v1666 = vsel %vm967, %v1504, -inf
      %1667 = vmax.xlane.f32.xlu0 %v1666
      %v1668 = vpop.xlane.xlu0 %1667
      %v1669 = vsel %vm967, %v1506, -inf
      %1670 = vmax.xlane.f32.xlu0 %v1669
      %v1671 = vpop.xlane.xlu0 %1670
      %v1672 = vsel %vm967, %v1509, -inf
      %1673 = vmax.xlane.f32.xlu0 %v1672
      %v1674 = vpop.xlane.xlu0 %1673
      %v1675 = vsel %vm967, %v1511, -inf
      %1676 = vmax.xlane.f32.xlu0 %v1675
      %v1677 = vpop.xlane.xlu0 %1676
      %v1678 = vsel %vm967, %v1555, -inf
      %1679 = vmax.xlane.f32.xlu0 %v1678
      %v1680 = vpop.xlane.xlu0 %1679
      %v1681 = vsel %vm967, %v1557, -inf
      %1682 = vmax.xlane.f32.xlu0 %v1681
      %v1683 = vpop.xlane.xlu0 %1682
      %v1684 = vsel %vm967, %v1560, -inf
      %1685 = vmax.xlane.f32.xlu0 %v1684
      %v1686 = vpop.xlane.xlu0 %1685
      %v1687 = vsel %vm967, %v1562, -inf
      %1688 = vmax.xlane.f32.xlu0 %v1687
      %v1689 = vpop.xlane.xlu0 %1688
      %v1690 = vsel %vm967, %v1606, -inf
      %1691 = vmax.xlane.f32.xlu0 %v1690
      %v1692 = vpop.xlane.xlu0 %1691
      %v1693 = vsel %vm967, %v1608, -inf
      %1694 = vmax.xlane.f32.xlu0 %v1693
      %v1695 = vpop.xlane.xlu0 %1694
      %v1696 = vsel %vm967, %v1611, -inf
      %1697 = vmax.xlane.f32.xlu0 %v1696
      %v1698 = vpop.xlane.xlu0 %1697
      %v1699 = vsel %vm967, %v1613, -inf
      %1700 = vmax.xlane.f32.xlu0 %v1699
      %v1701 = vpop.xlane.xlu0 %1700
      %v1702 = vsel %vm967, %v1657, -inf
      %1703 = vmax.xlane.f32.xlu0 %v1702
      %v1704 = vpop.xlane.xlu0 %1703
      %v1705 = vsel %vm967, %v1659, -inf
      %1706 = vmax.xlane.f32.xlu0 %v1705
      %v1707 = vpop.xlane.xlu0 %1706
      %v1708 = vsel %vm967, %v1662, -inf
      %1709 = vmax.xlane.f32.xlu0 %v1708
      %v1710 = vpop.xlane.xlu0 %1709
      %v1711 = vsel %vm967, %v1664, -inf
      %1712 = vmax.xlane.f32.xlu0 %v1711
      %v1713 = vpop.xlane.xlu0 %1712
      %v1714 = vsub.f32 %v1504, %v1668
      %v1715 = vsub.f32 %v1506, %v1671
      %v1716 = vsub.f32 %v1509, %v1674
      %v1717 = vsub.f32 %v1511, %v1677
      %v1718 = vsub.f32 %v1555, %v1680
      %v1719 = vsub.f32 %v1557, %v1683
      %v1720 = vsub.f32 %v1560, %v1686
      %v1721 = vsub.f32 %v1562, %v1689
      %v1722 = vsub.f32 %v1606, %v1692
      %v1723 = vsub.f32 %v1608, %v1695
      %v1724 = vsub.f32 %v1611, %v1698
      %v1725 = vsub.f32 %v1613, %v1701
      %v1726 = vsub.f32 %v1657, %v1704
      %v1727 = vsub.f32 %v1659, %v1707
      %v1728 = vsub.f32 %v1662, %v1710
      %v1729 = vsub.f32 %v1664, %v1713
      %v1730 = vmul.f32 %v1714, 1.442695
      %v1731 = vpow.pop %v1730
      %v1732 = vmul.f32 %v1715, 1.442695
      %v1733 = vpow.pop %v1732
      %v1734 = vmul.f32 %v1716, 1.442695
      %v1735 = vpow.pop %v1734
      %v1736 = vmul.f32 %v1717, 1.442695
      %v1737 = vpow.pop %v1736
      %v1738 = vmul.f32 %v1718, 1.442695
      %v1739 = vpow.pop %v1738
      %v1740 = vmul.f32 %v1719, 1.442695
      %v1741 = vpow.pop %v1740
      %v1742 = vmul.f32 %v1720, 1.442695
      %v1743 = vpow.pop %v1742
      %v1744 = vmul.f32 %v1721, 1.442695
      %v1745 = vpow.pop %v1744
      %v1746 = vmul.f32 %v1722, 1.442695
      %v1747 = vpow.pop %v1746
      %v1748 = vmul.f32 %v1723, 1.442695
      %v1749 = vpow.pop %v1748
      %v1750 = vmul.f32 %v1724, 1.442695
      %v1751 = vpow.pop %v1750
      %v1752 = vmul.f32 %v1725, 1.442695
      %v1753 = vpow.pop %v1752
      %v1754 = vmul.f32 %v1726, 1.442695
      %v1755 = vpow.pop %v1754
      %v1756 = vmul.f32 %v1727, 1.442695
      %v1757 = vpow.pop %v1756
      %v1758 = vmul.f32 %v1728, 1.442695
      %v1759 = vpow.pop %v1758
      %v1760 = vmul.f32 %v1729, 1.442695
      %v1761 = vpow.pop %v1760
      %v1762 = vsel %vm967, %v1731, 0.0
      %1763 = vadd.xlane.f32.xlu0 %v1762
      %v1764 = vpop.xlane.xlu0 %1763
      %v1765 = vsel %vm967, %v1733, 0.0
      %1766 = vadd.xlane.f32.xlu0 %v1765
      %v1767 = vpop.xlane.xlu0 %1766
      %v1768 = vsel %vm967, %v1735, 0.0
      %1769 = vadd.xlane.f32.xlu0 %v1768
      %v1770 = vpop.xlane.xlu0 %1769
      %v1771 = vsel %vm967, %v1737, 0.0
      %1772 = vadd.xlane.f32.xlu0 %v1771
      %v1773 = vpop.xlane.xlu0 %1772
      %v1774 = vsel %vm967, %v1739, 0.0
      %1775 = vadd.xlane.f32.xlu0 %v1774
      %v1776 = vpop.xlane.xlu0 %1775
      %v1777 = vsel %vm967, %v1741, 0.0
      %1778 = vadd.xlane.f32.xlu0 %v1777
      %v1779 = vpop.xlane.xlu0 %1778
      %v1780 = vsel %vm967, %v1743, 0.0
      %1781 = vadd.xlane.f32.xlu0 %v1780
      %v1782 = vpop.xlane.xlu0 %1781
      %v1783 = vsel %vm967, %v1745, 0.0
      %1784 = vadd.xlane.f32.xlu0 %v1783
      %v1785 = vpop.xlane.xlu0 %1784
      %v1786 = vsel %vm967, %v1747, 0.0
      %1787 = vadd.xlane.f32.xlu0 %v1786
      %v1788 = vpop.xlane.xlu0 %1787
      %v1789 = vsel %vm967, %v1749, 0.0
      %1790 = vadd.xlane.f32.xlu0 %v1789
      %v1791 = vpop.xlane.xlu0 %1790
      %v1792 = vsel %vm967, %v1751, 0.0
      %1793 = vadd.xlane.f32.xlu0 %v1792
      %v1794 = vpop.xlane.xlu0 %1793
      %v1795 = vsel %vm967, %v1753, 0.0
      %1796 = vadd.xlane.f32.xlu0 %v1795
      %v1797 = vpop.xlane.xlu0 %1796
      %v1798 = vsel %vm967, %v1755, 0.0
      %1799 = vadd.xlane.f32.xlu0 %v1798
      %v1800 = vpop.xlane.xlu0 %1799
      %v1801 = vsel %vm967, %v1757, 0.0
      %1802 = vadd.xlane.f32.xlu0 %v1801
      %v1803 = vpop.xlane.xlu0 %1802
      %v1804 = vsel %vm967, %v1759, 0.0
      %1805 = vadd.xlane.f32.xlu0 %v1804
      %v1806 = vpop.xlane.xlu0 %1805
      %v1807 = vsel %vm967, %v1761, 0.0
      %1808 = vadd.xlane.f32.xlu0 %v1807
      %v1809 = vpop.xlane.xlu0 %1808
      %v1810 = vrcp.pop %v1764
      %v1811 = vrcp.pop %v1767
      %v1812 = vrcp.pop %v1770
      %v1813 = vrcp.pop %v1773
      %v1814 = vrcp.pop %v1776
      %v1815 = vrcp.pop %v1779
      %v1816 = vrcp.pop %v1782
      %v1817 = vrcp.pop %v1785
      %v1818 = vrcp.pop %v1788
      %v1819 = vrcp.pop %v1791
      %v1820 = vrcp.pop %v1794
      %v1821 = vrcp.pop %v1797
      %v1822 = vrcp.pop %v1800
      %v1823 = vrcp.pop %v1803
      %v1824 = vrcp.pop %v1806
      %v1825 = vrcp.pop %v1809
      %v1826 = vmul.f32 %v1731, %v1810
      %v1827 = vmul.f32 %v1733, %v1811
      %v1828 = vmul.f32 %v1735, %v1812
      %v1829 = vmul.f32 %v1737, %v1813
      %v1830 = vmul.f32 %v1739, %v1814
      %v1831 = vmul.f32 %v1741, %v1815
      %v1832 = vmul.f32 %v1743, %v1816
      %v1833 = vmul.f32 %v1745, %v1817
      %v1834 = vmul.f32 %v1747, %v1818
      %v1835 = vmul.f32 %v1749, %v1819
      %v1836 = vmul.f32 %v1751, %v1820
      %v1837 = vmul.f32 %v1753, %v1821
      %v1838 = vmul.f32 %v1755, %v1822
      %v1839 = vmul.f32 %v1757, %v1823
      %v1840 = vmul.f32 %v1759, %v1824
      %v1841 = vmul.f32 %v1761, %v1825
      %v1842 = vpack.c.bf16 %v1826, %v1826
      %v1843 = vpack.c.bf16 %v1827, %v1827
      %v1844 = vpack.c.bf16 %v1828, %v1828
      %v1845 = vpack.c.bf16 %v1829, %v1829
      %v1846 = vpack.c.bf16 %v1830, %v1830
      %v1847 = vpack.c.bf16 %v1831, %v1831
      %v1848 = vpack.c.bf16 %v1832, %v1832
      %v1849 = vpack.c.bf16 %v1833, %v1833
      %v1850 = vpack.c.bf16 %v1834, %v1834
      %v1851 = vpack.c.bf16 %v1835, %v1835
      %v1852 = vpack.c.bf16 %v1836, %v1836
      %v1853 = vpack.c.bf16 %v1837, %v1837
      %v1854 = vpack.c.bf16 %v1838, %v1838
      %v1855 = vpack.c.bf16 %v1839, %v1839
      %v1856 = vpack.c.bf16 %v1840, %v1840
      %v1857 = vpack.c.bf16 %v1841, %v1841
      %v1862 = vunpack.c.l.b16 %v1842
      %v1863 = vunpack.c.l.b16 %v1843
      %v1864 = vunpack.c.l.b16 %v1844
      %v1865 = vunpack.c.l.b16 %v1845
      %v1866 = vpack.c.b16 %v1863, %v1862
      %v1867 = vpack.c.b16 %v1865, %v1864
      %v1872 = vunpack.c.l.b16 %v1441
      %v1873 = vunpack.c.l.b16 %v1442
      %v1874 = vunpack.c.l.b16 %v1443
      %v1875 = vunpack.c.l.b16 %v1444
      %v1876 = vpack.c.b16 %v1873, %v1872
      %v1877 = vpack.c.b16 %v1875, %v1874
      %v1881 = vsel %vm967, %v1866, 0
      %v1884 = vsel %vm967, %v1867, 0
      %1886 = vmatpush.bf16.msra.mxu0 0
      %1887 = vmatpush.bf16.msra.mxu0 0
      %1888 = vmatpush.bf16.msra.mxu0 0
      %1889 = vmatpush.bf16.msra.mxu0 0
      %1890 = vmatpush.bf16.msra.mxu0 0
      %1891 = vmatpush.bf16.msra.mxu0 0
      %1892 = vmatpush.bf16.msra.mxu0 %v1877
      %1893 = vmatpush.bf16.msra.mxu0 %v1876
      %1894 = vmatmul.bf16.gmra.mxu0 %v1881
      %v1895 = vpop.f32.mrf.mxu0
      %v1896 = vadd.f32 0.0, %v1895
      %v1897 = vpop.f32.mrf.mxu0
      %v1898 = vadd.f32 0.0, %v1897
      %1899 = vmatmul.bf16.gmra.mxu0 %v1884
      %v1900 = vpop.f32.mrf.mxu0
      %v1901 = vadd.f32 0.0, %v1900
      %v1902 = vpop.f32.mrf.mxu0
      %v1903 = vadd.f32 0.0, %v1902
      %1904 = vdwg.mxu0
      %v1909 = vunpack.c.l.b16 %v1846
      %v1910 = vunpack.c.l.b16 %v1847
      %v1911 = vunpack.c.l.b16 %v1848
      %v1912 = vunpack.c.l.b16 %v1849
      %v1913 = vpack.c.b16 %v1910, %v1909
      %v1914 = vpack.c.b16 %v1912, %v1911
      %v1919 = vunpack.c.l.b16 %v1445
      %v1920 = vunpack.c.l.b16 %v1446
      %v1921 = vunpack.c.l.b16 %v1447
      %v1922 = vunpack.c.l.b16 %v1448
      %v1923 = vpack.c.b16 %v1920, %v1919
      %v1924 = vpack.c.b16 %v1922, %v1921
      %v1928 = vsel %vm967, %v1913, 0
      %v1931 = vsel %vm967, %v1914, 0
      %1933 = vmatpush.bf16.msra.mxu0 0
      %1934 = vmatpush.bf16.msra.mxu0 0
      %1935 = vmatpush.bf16.msra.mxu0 0
      %1936 = vmatpush.bf16.msra.mxu0 0
      %1937 = vmatpush.bf16.msra.mxu0 0
      %1938 = vmatpush.bf16.msra.mxu0 0
      %1939 = vmatpush.bf16.msra.mxu0 %v1924
      %1940 = vmatpush.bf16.msra.mxu0 %v1923
      %1941 = vmatmul.bf16.gmra.mxu0 %v1928
      %v1942 = vpop.f32.mrf.mxu0
      %v1943 = vadd.f32 0.0, %v1942
      %v1944 = vpop.f32.mrf.mxu0
      %v1945 = vadd.f32 0.0, %v1944
      %1946 = vmatmul.bf16.gmra.mxu0 %v1931
      %v1947 = vpop.f32.mrf.mxu0
      %v1948 = vadd.f32 0.0, %v1947
      %v1949 = vpop.f32.mrf.mxu0
      %v1950 = vadd.f32 0.0, %v1949
      %1951 = vdwg.mxu0
      %v1956 = vunpack.c.l.b16 %v1850
      %v1957 = vunpack.c.l.b16 %v1851
      %v1958 = vunpack.c.l.b16 %v1852
      %v1959 = vunpack.c.l.b16 %v1853
      %v1960 = vpack.c.b16 %v1957, %v1956
      %v1961 = vpack.c.b16 %v1959, %v1958
      %v1966 = vunpack.c.l.b16 %v1449
      %v1967 = vunpack.c.l.b16 %v1450
      %v1968 = vunpack.c.l.b16 %v1451
      %v1969 = vunpack.c.l.b16 %v1452
      %v1970 = vpack.c.b16 %v1967, %v1966
      %v1971 = vpack.c.b16 %v1969, %v1968
      %v1975 = vsel %vm967, %v1960, 0
      %v1978 = vsel %vm967, %v1961, 0
      %1980 = vmatpush.bf16.msra.mxu0 0
      %1981 = vmatpush.bf16.msra.mxu0 0
      %1982 = vmatpush.bf16.msra.mxu0 0
      %1983 = vmatpush.bf16.msra.mxu0 0
      %1984 = vmatpush.bf16.msra.mxu0 0
      %1985 = vmatpush.bf16.msra.mxu0 0
      %1986 = vmatpush.bf16.msra.mxu0 %v1971
      %1987 = vmatpush.bf16.msra.mxu0 %v1970
      %1988 = vmatmul.bf16.gmra.mxu0 %v1975
      %v1989 = vpop.f32.mrf.mxu0
      %v1990 = vadd.f32 0.0, %v1989
      %v1991 = vpop.f32.mrf.mxu0
      %v1992 = vadd.f32 0.0, %v1991
      %1993 = vmatmul.bf16.gmra.mxu0 %v1978
      %v1994 = vpop.f32.mrf.mxu0
      %v1995 = vadd.f32 0.0, %v1994
      %v1996 = vpop.f32.mrf.mxu0
      %v1997 = vadd.f32 0.0, %v1996
      %1998 = vdwg.mxu0
      %v2003 = vunpack.c.l.b16 %v1854
      %v2004 = vunpack.c.l.b16 %v1855
      %v2005 = vunpack.c.l.b16 %v1856
      %v2006 = vunpack.c.l.b16 %v1857
      %v2007 = vpack.c.b16 %v2004, %v2003
      %v2008 = vpack.c.b16 %v2006, %v2005
      %v2013 = vunpack.c.l.b16 %v1453
      %v2014 = vunpack.c.l.b16 %v1454
      %v2015 = vunpack.c.l.b16 %v1455
      %v2016 = vunpack.c.l.b16 %v1456
      %v2017 = vpack.c.b16 %v2014, %v2013
      %v2018 = vpack.c.b16 %v2016, %v2015
      %v2022 = vsel %vm967, %v2007, 0
      %v2025 = vsel %vm967, %v2008, 0
      %2027 = vmatpush.bf16.msra.mxu0 0
      %2028 = vmatpush.bf16.msra.mxu0 0
      %2029 = vmatpush.bf16.msra.mxu0 0
      %2030 = vmatpush.bf16.msra.mxu0 0
      %2031 = vmatpush.bf16.msra.mxu0 0
      %2032 = vmatpush.bf16.msra.mxu0 0
      %2033 = vmatpush.bf16.msra.mxu0 %v2018
      %2034 = vmatpush.bf16.msra.mxu0 %v2017
      %2035 = vmatmul.bf16.gmra.mxu0 %v2022
      %v2036 = vpop.f32.mrf.mxu0
      %v2037 = vadd.f32 0.0, %v2036
      %v2038 = vpop.f32.mrf.mxu0
      %v2039 = vadd.f32 0.0, %v2038
      %2040 = vmatmul.bf16.gmra.mxu0 %v2025
      %v2041 = vpop.f32.mrf.mxu0
      %v2042 = vadd.f32 0.0, %v2041
      %v2043 = vpop.f32.mrf.mxu0
      %v2044 = vadd.f32 0.0, %v2043
      %2045 = vdwg.mxu0
      %2050 = vrot.lane.b32.xlu0 %v1943, 8
      %v2051 = vpop.permute.xlu0 %2050
      %2052 = vrot.lane.b32.xlu0 %v1945, 8
      %v2053 = vpop.permute.xlu0 %2052
      %2054 = vrot.lane.b32.xlu0 %v1948, 8
      %v2055 = vpop.permute.xlu0 %2054
      %2056 = vrot.lane.b32.xlu0 %v1950, 8
      %v2057 = vpop.permute.xlu0 %2056
      %2066 = vrot.lane.b32.xlu0 %v1990, 16
      %v2067 = vpop.permute.xlu0 %2066
      %2068 = vrot.lane.b32.xlu0 %v1992, 16
      %v2069 = vpop.permute.xlu0 %2068
      %2070 = vrot.lane.b32.xlu0 %v1995, 16
      %v2071 = vpop.permute.xlu0 %2070
      %2072 = vrot.lane.b32.xlu0 %v1997, 16
      %v2073 = vpop.permute.xlu0 %2072
      %2082 = vrot.lane.b32.xlu0 %v2037, 24
      %v2083 = vpop.permute.xlu0 %2082
      %2084 = vrot.lane.b32.xlu0 %v2039, 24
      %v2085 = vpop.permute.xlu0 %2084
      %2086 = vrot.lane.b32.xlu0 %v2042, 24
      %v2087 = vpop.permute.xlu0 %2086
      %2088 = vrot.lane.b32.xlu0 %v2044, 24
      %v2089 = vpop.permute.xlu0 %2088
      %v2094 = vsel %vm1481, %v1896, %v2051
      %v2095 = vsel %vm1481, %v1898, %v2053
      %v2096 = vsel %vm1481, %v1901, %v2055
      %v2097 = vsel %vm1481, %v1903, %v2057
      %vm2098 = vcmask 130048
      %v2099 = vsel %vm2098, %v2094, %v2067
      %v2100 = vsel %vm2098, %v2095, %v2069
      %v2101 = vsel %vm2098, %v2096, %v2071
      %v2102 = vsel %vm2098, %v2097, %v2073
      %vm2103 = vcmask 195584
      %v2104 = vsel %vm2103, %v2099, %v2083
      %v2105 = vsel %vm2103, %v2100, %v2085
      %v2106 = vsel %vm2103, %v2101, %v2087
      %v2107 = vsel %vm2103, %v2102, %v2089
      %v2108 = vpack.c.bf16 %v2105, %v2104
      %v2109 = vpack.c.bf16 %v2107, %v2106
      %v2110 = vld [vmem:[%s784] sm:$0xf]
      %v2111 = vld [vmem:[%s784 + $0x4] sm:$0xf]
      %v2112 = vld [vmem:[%s784 + $0x8] sm:$0xf]
      %v2113 = vld [vmem:[%s784 + $0xc] sm:$0xf]
      %v2114 = vld [vmem:[%s787] sm:$0x1]
      %v2116 = vperm.slane %v2114, 0
      %v2122 = vunpack.c.l.b16 %v2110
      %v2123 = vunpack.c.l.b16 %v2111
      %v2124 = vunpack.c.l.b16 %v2112
      %v2125 = vunpack.c.l.b16 %v2113
      %v2126 = vpack.c.b16 %v2123, %v2122
      %v2127 = vpack.c.b16 %v2125, %v2124
      %v2131 = vsel %vm967, %v2108, 0
      %v2134 = vsel %vm967, %v2109, 0
      %2136 = vmatpush.bf16.msra.mxu0 0
      %2137 = vmatpush.bf16.msra.mxu0 0
      %2138 = vmatpush.bf16.msra.mxu0 0
      %2139 = vmatpush.bf16.msra.mxu0 0
      %2140 = vmatpush.bf16.msra.mxu0 0
      %2141 = vmatpush.bf16.msra.mxu0 0
      %2142 = vmatpush.bf16.msra.mxu0 %v2127
      %2143 = vmatpush.bf16.msra.mxu0 %v2126
      %2144 = vmatmul.bf16.gmra.mxu0 %v2131
      %v2145 = vpop.f32.mrf.mxu0
      %v2146 = vadd.f32 %v2116, %v2145
      %v2147 = vpop.f32.mrf.mxu0
      %v2148 = vadd.f32 %v2116, %v2147
      %2149 = vmatmul.bf16.gmra.mxu0 %v2134
      %v2150 = vpop.f32.mrf.mxu0
      %v2151 = vadd.f32 %v2116, %v2150
      %v2152 = vpop.f32.mrf.mxu0
      %v2153 = vadd.f32 %v2116, %v2152
      %2154 = vdwg.mxu0
      %v2155 = vadd.f32 %v941, %v2146
      %v2156 = vadd.f32 %v942, %v2148
      %v2157 = vadd.f32 %v943, %v2151
      %v2158 = vadd.f32 %v944, %v2153
      %v2159 = vld [vmem:[%s790] sm:$0x1]
      %v2160 = vld [vmem:[%s793] sm:$0x1]
      %v2161 = vsel %vm967, %v2155, 0.0
      %2162 = vadd.xlane.f32.xlu0 %v2161
      %v2163 = vpop.xlane.xlu0 %2162
      %v2164 = vsel %vm967, %v2156, 0.0
      %2165 = vadd.xlane.f32.xlu0 %v2164
      %v2166 = vpop.xlane.xlu0 %2165
      %v2167 = vsel %vm967, %v2157, 0.0
      %2168 = vadd.xlane.f32.xlu0 %v2167
      %v2169 = vpop.xlane.xlu0 %2168
      %v2170 = vsel %vm967, %v2158, 0.0
      %2171 = vadd.xlane.f32.xlu0 %v2170
      %v2172 = vpop.xlane.xlu0 %2171
      %v2173 = vrcp.pop 32.0
      %v2174 = vmul.f32 32.0, %v2173
      %v2175 = vsub.f32 1.0, %v2174
      %v2176 = vmul.f32 %v2173, %v2175
      %v2177 = vadd.f32 %v2173, %v2176
      %vm2178 = vweird.f32 %v2173
      %v2179 = vsel %vm2178, %v2173, %v2177
      %v2180 = vmul.f32 %v2163, %v2179
      %v2181 = vmul.f32 %v2166, %v2179
      %v2182 = vmul.f32 %v2169, %v2179
      %v2183 = vmul.f32 %v2172, %v2179
      %v2184 = vsub.f32 %v2155, %v2180
      %v2185 = vsub.f32 %v2156, %v2181
      %v2186 = vsub.f32 %v2157, %v2182
      %v2187 = vsub.f32 %v2158, %v2183
      %v2188 = vmul.f32 %v2184, %v2184
      %v2189 = vmul.f32 %v2185, %v2185
      %v2190 = vmul.f32 %v2186, %v2186
      %v2191 = vmul.f32 %v2187, %v2187
      %v2192 = vsel %vm967, %v2188, 0.0
      %2193 = vadd.xlane.f32.xlu0 %v2192
      %v2194 = vpop.xlane.xlu0 %2193
      %v2195 = vsel %vm967, %v2189, 0.0
      %2196 = vadd.xlane.f32.xlu0 %v2195
      %v2197 = vpop.xlane.xlu0 %2196
      %v2198 = vsel %vm967, %v2190, 0.0
      %2199 = vadd.xlane.f32.xlu0 %v2198
      %v2200 = vpop.xlane.xlu0 %2199
      %v2201 = vsel %vm967, %v2191, 0.0
      %2202 = vadd.xlane.f32.xlu0 %v2201
      %v2203 = vpop.xlane.xlu0 %2202
      %v2204 = vmul.f32 %v2194, %v2179
      %v2205 = vmul.f32 %v2197, %v2179
      %v2206 = vmul.f32 %v2200, %v2179
      %v2207 = vmul.f32 %v2203, %v2179
      %v2208 = vadd.f32 %v2204, 1e-12
      %v2209 = vadd.f32 %v2205, 1e-12
      %v2210 = vadd.f32 %v2206, 1e-12
      %v2211 = vadd.f32 %v2207, 1e-12
      %v2212 = vrsqrt.pop %v2208
      %v2213 = vmul.f32 %v2212, %v2208
      %v2214 = vmul.f32 %v2213, %v2212
      %v2215 = vmul.f32 0.5, %v2214
      %v2216 = vsub.f32 1.5, %v2215
      %v2217 = vmul.f32 %v2212, %v2216
      %vm2218 = vweird.f32 %v2208
      %vm2219 = vweird.f32 %v2212
      %vm2220 = vmor %vm2218, %vm2219
      %v2221 = vsel %vm2220, %v2212, %v2217
      %v2222 = vrsqrt.pop %v2209
      %v2223 = vmul.f32 %v2222, %v2209
      %v2224 = vmul.f32 %v2223, %v2222
      %v2225 = vmul.f32 0.5, %v2224
      %v2226 = vsub.f32 1.5, %v2225
      %v2227 = vmul.f32 %v2222, %v2226
      %vm2228 = vweird.f32 %v2209
      %vm2229 = vweird.f32 %v2222
      %vm2230 = vmor %vm2228, %vm2229
      %v2231 = vsel %vm2230, %v2222, %v2227
      %v2232 = vrsqrt.pop %v2210
      %v2233 = vmul.f32 %v2232, %v2210
      %v2234 = vmul.f32 %v2233, %v2232
      %v2235 = vmul.f32 0.5, %v2234
      %v2236 = vsub.f32 1.5, %v2235
      %v2237 = vmul.f32 %v2232, %v2236
      %vm2238 = vweird.f32 %v2210
      %vm2239 = vweird.f32 %v2232
      %vm2240 = vmor %vm2238, %vm2239
      %v2241 = vsel %vm2240, %v2232, %v2237
      %v2242 = vrsqrt.pop %v2211
      %v2243 = vmul.f32 %v2242, %v2211
      %v2244 = vmul.f32 %v2243, %v2242
      %v2245 = vmul.f32 0.5, %v2244
      %v2246 = vsub.f32 1.5, %v2245
      %v2247 = vmul.f32 %v2242, %v2246
      %vm2248 = vweird.f32 %v2211
      %vm2249 = vweird.f32 %v2242
      %vm2250 = vmor %vm2248, %vm2249
      %v2251 = vsel %vm2250, %v2242, %v2247
      %v2252 = vmul.f32 %v2184, %v2221
      %v2253 = vmul.f32 %v2185, %v2231
      %v2254 = vmul.f32 %v2186, %v2241
      %v2255 = vmul.f32 %v2187, %v2251
      %v2257 = vperm.slane %v2159, 0
      %v2259 = vmul.f32 %v2252, %v2257
      %v2260 = vmul.f32 %v2253, %v2257
      %v2261 = vmul.f32 %v2254, %v2257
      %v2262 = vmul.f32 %v2255, %v2257
      %v2264 = vperm.slane %v2160, 0
      %v2266 = vadd.f32 %v2259, %v2264
      %v2267 = vadd.f32 %v2260, %v2264
      %v2268 = vadd.f32 %v2261, %v2264
      %v2269 = vadd.f32 %v2262, %v2264
      %v2270 = vpack.c.bf16 %v2267, %v2266
      %v2271 = vpack.c.bf16 %v2269, %v2268
      %v2272 = vld [vmem:[%s798] sm:$0xf]
      %v2273 = vld [vmem:[%s798 + $0x4] sm:$0xf]
      %v2274 = vld [vmem:[%s798 + $0x8] sm:$0xf]
      %v2275 = vld [vmem:[%s798 + $0xc] sm:$0xf]
      %v2276 = vld [vmem:[%s801] sm:$0x1]
      %v2278 = vperm.slane %v2276, 0
      %v2284 = vunpack.c.l.b16 %v2272
      %v2285 = vunpack.c.l.b16 %v2273
      %v2286 = vunpack.c.l.b16 %v2274
      %v2287 = vunpack.c.l.b16 %v2275
      %v2288 = vpack.c.b16 %v2285, %v2284
      %v2289 = vpack.c.b16 %v2287, %v2286
      %v2293 = vsel %vm967, %v2270, 0
      %v2296 = vsel %vm967, %v2271, 0
      %2298 = vmatpush.bf16.msra.mxu0 0
      %2299 = vmatpush.bf16.msra.mxu0 0
      %2300 = vmatpush.bf16.msra.mxu0 0
      %2301 = vmatpush.bf16.msra.mxu0 0
      %2302 = vmatpush.bf16.msra.mxu0 0
      %2303 = vmatpush.bf16.msra.mxu0 0
      %2304 = vmatpush.bf16.msra.mxu0 %v2289
      %2305 = vmatpush.bf16.msra.mxu0 %v2288
      %2306 = vmatmul.bf16.gmra.mxu0 %v2293
      %v2307 = vpop.f32.mrf.mxu0
      %v2308 = vadd.f32 %v2278, %v2307
      %v2309 = vpop.f32.mrf.mxu0
      %v2310 = vadd.f32 %v2278, %v2309
      %2311 = vmatmul.bf16.gmra.mxu0 %v2296
      %v2312 = vpop.f32.mrf.mxu0
      %v2313 = vadd.f32 %v2278, %v2312
      %v2314 = vpop.f32.mrf.mxu0
      %v2315 = vadd.f32 %v2278, %v2314
      %2316 = vdwg.mxu0
      %v2317 = vmul.f32 %v2308, 0.5
      %v2318 = vmul.f32 %v2310, 0.5
      %v2319 = vmul.f32 %v2313, 0.5
      %v2320 = vmul.f32 %v2315, 0.5
      %v2321 = vmul.f32 %v2308, 0.70710677
      %v2322 = vmul.f32 %v2310, 0.70710677
      %v2323 = vmul.f32 %v2313, 0.70710677
      %v2324 = vmul.f32 %v2315, 0.70710677
      %v2325 = vand.u32 2147483647, %v2321
      %v2326 = vand.u32 2147483647, %v2322
      %v2327 = vand.u32 2147483647, %v2323
      %v2328 = vand.u32 2147483647, %v2324
      %v2329 = vmul.f32 %v2325, 0.3275911
      %v2330 = vmul.f32 %v2326, 0.3275911
      %v2331 = vmul.f32 %v2327, 0.3275911
      %v2332 = vmul.f32 %v2328, 0.3275911
      %v2333 = vadd.f32 %v2329, 1.0
      %v2334 = vadd.f32 %v2330, 1.0
      %v2335 = vadd.f32 %v2331, 1.0
      %v2336 = vadd.f32 %v2332, 1.0
      %v2337 = vrcp.pop %v2333
      %v2338 = vmul.f32 %v2333, %v2337
      %v2339 = vsub.f32 1.0, %v2338
      %v2340 = vmul.f32 %v2337, %v2339
      %v2341 = vadd.f32 %v2337, %v2340
      %vm2342 = vweird.f32 %v2333
      %vm2343 = vweird.f32 %v2337
      %vm2344 = vmor %vm2342, %vm2343
      %v2345 = vsel %vm2344, %v2337, %v2341
      %v2346 = vand.u32 2147483647, %v2333
      %vm2347 = vcmp.eq.f32.partialorder %v2346, 8.507059e+37
      %v2348 = vand.u32 %v2333, 2147483648
      %v2349 = vor.u32 1.1754944e-38, %v2348
      %v2350 = vsel %vm2347, %v2349, %v2345
      %v2351 = vmul.f32 1.0, %v2350
      %v2352 = vrcp.pop %v2334
      %v2353 = vmul.f32 %v2334, %v2352
      %v2354 = vsub.f32 1.0, %v2353
      %v2355 = vmul.f32 %v2352, %v2354
      %v2356 = vadd.f32 %v2352, %v2355
      %vm2357 = vweird.f32 %v2334
      %vm2358 = vweird.f32 %v2352
      %vm2359 = vmor %vm2357, %vm2358
      %v2360 = vsel %vm2359, %v2352, %v2356
      %v2361 = vand.u32 2147483647, %v2334
      %vm2362 = vcmp.eq.f32.partialorder %v2361, 8.507059e+37
      %v2363 = vand.u32 %v2334, 2147483648
      %v2364 = vor.u32 1.1754944e-38, %v2363
      %v2365 = vsel %vm2362, %v2364, %v2360
      %v2366 = vmul.f32 1.0, %v2365
      %v2367 = vrcp.pop %v2335
      %v2368 = vmul.f32 %v2335, %v2367
      %v2369 = vsub.f32 1.0, %v2368
      %v2370 = vmul.f32 %v2367, %v2369
      %v2371 = vadd.f32 %v2367, %v2370
      %vm2372 = vweird.f32 %v2335
      %vm2373 = vweird.f32 %v2367
      %vm2374 = vmor %vm2372, %vm2373
      %v2375 = vsel %vm2374, %v2367, %v2371
      %v2376 = vand.u32 2147483647, %v2335
      %vm2377 = vcmp.eq.f32.partialorder %v2376, 8.507059e+37
      %v2378 = vand.u32 %v2335, 2147483648
      %v2379 = vor.u32 1.1754944e-38, %v2378
      %v2380 = vsel %vm2377, %v2379, %v2375
      %v2381 = vmul.f32 1.0, %v2380
      %v2382 = vrcp.pop %v2336
      %v2383 = vmul.f32 %v2336, %v2382
      %v2384 = vsub.f32 1.0, %v2383
      %v2385 = vmul.f32 %v2382, %v2384
      %v2386 = vadd.f32 %v2382, %v2385
      %vm2387 = vweird.f32 %v2336
      %vm2388 = vweird.f32 %v2382
      %vm2389 = vmor %vm2387, %vm2388
      %v2390 = vsel %vm2389, %v2382, %v2386
      %v2391 = vand.u32 2147483647, %v2336
      %vm2392 = vcmp.eq.f32.partialorder %v2391, 8.507059e+37
      %v2393 = vand.u32 %v2336, 2147483648
      %v2394 = vor.u32 1.1754944e-38, %v2393
      %v2395 = vsel %vm2392, %v2394, %v2390
      %v2396 = vmul.f32 1.0, %v2395
      %v2397 = vmul.f32 %v2351, 1.0614054
      %v2398 = vmul.f32 %v2366, 1.0614054
      %v2399 = vmul.f32 %v2381, 1.0614054
      %v2400 = vmul.f32 %v2396, 1.0614054
      %v2401 = vadd.f32 %v2397, -1.4531521
      %v2402 = vadd.f32 %v2398, -1.4531521
      %v2403 = vadd.f32 %v2399, -1.4531521
      %v2404 = vadd.f32 %v2400, -1.4531521
      %v2405 = vmul.f32 %v2401, %v2351
      %v2406 = vmul.f32 %v2402, %v2366
      %v2407 = vmul.f32 %v2403, %v2381
      %v2408 = vmul.f32 %v2404, %v2396
      %v2409 = vadd.f32 %v2405, 1.4214138
      %v2410 = vadd.f32 %v2406, 1.4214138
      %v2411 = vadd.f32 %v2407, 1.4214138
      %v2412 = vadd.f32 %v2408, 1.4214138
      %v2413 = vmul.f32 %v2409, %v2351
      %v2414 = vmul.f32 %v2410, %v2366
      %v2415 = vmul.f32 %v2411, %v2381
      %v2416 = vmul.f32 %v2412, %v2396
      %v2417 = vadd.f32 %v2413, -0.28449672
      %v2418 = vadd.f32 %v2414, -0.28449672
      %v2419 = vadd.f32 %v2415, -0.28449672
      %v2420 = vadd.f32 %v2416, -0.28449672
      %v2421 = vmul.f32 %v2417, %v2351
      %v2422 = vmul.f32 %v2418, %v2366
      %v2423 = vmul.f32 %v2419, %v2381
      %v2424 = vmul.f32 %v2420, %v2396
      %v2425 = vadd.f32 %v2421, 0.2548296
      %v2426 = vadd.f32 %v2422, 0.2548296
      %v2427 = vadd.f32 %v2423, 0.2548296
      %v2428 = vadd.f32 %v2424, 0.2548296
      %v2429 = vmul.f32 %v2425, %v2351
      %v2430 = vmul.f32 %v2426, %v2366
      %v2431 = vmul.f32 %v2427, %v2381
      %v2432 = vmul.f32 %v2428, %v2396
      %v2433 = vsub.f32 0.0, %v2325
      %v2434 = vsub.f32 0.0, %v2326
      %v2435 = vsub.f32 0.0, %v2327
      %v2436 = vsub.f32 0.0, %v2328
      %v2437 = vmul.f32 %v2433, %v2325
      %v2438 = vmul.f32 %v2434, %v2326
      %v2439 = vmul.f32 %v2435, %v2327
      %v2440 = vmul.f32 %v2436, %v2328
      %v2441 = vmul.f32 %v2437, 1.442695
      %v2442 = vpow.pop %v2441
      %v2443 = vmul.f32 %v2438, 1.442695
      %v2444 = vpow.pop %v2443
      %v2445 = vmul.f32 %v2439, 1.442695
      %v2446 = vpow.pop %v2445
      %v2447 = vmul.f32 %v2440, 1.442695
      %v2448 = vpow.pop %v2447
      %v2449 = vmul.f32 %v2429, %v2442
      %v2450 = vmul.f32 %v2430, %v2444
      %v2451 = vmul.f32 %v2431, %v2446
      %v2452 = vmul.f32 %v2432, %v2448
      %v2453 = vsub.f32 1.0, %v2449
      %v2454 = vsub.f32 1.0, %v2450
      %v2455 = vsub.f32 1.0, %v2451
      %v2456 = vsub.f32 1.0, %v2452
      %vm2457 = vcmp.ge.f32.partialorder %v2321, 0.0
      %vm2458 = vcmp.ge.f32.partialorder %v2322, 0.0
      %vm2459 = vcmp.ge.f32.partialorder %v2323, 0.0
      %vm2460 = vcmp.ge.f32.partialorder %v2324, 0.0
      %v2461 = vsub.f32 0.0, %v2453
      %v2462 = vsub.f32 0.0, %v2454
      %v2463 = vsub.f32 0.0, %v2455
      %v2464 = vsub.f32 0.0, %v2456
      %v2465 = vsel %vm2457, %v2453, %v2461
      %v2466 = vsel %vm2458, %v2454, %v2462
      %v2467 = vsel %vm2459, %v2455, %v2463
      %v2468 = vsel %vm2460, %v2456, %v2464
      %v2469 = vadd.f32 %v2465, 1.0
      %v2470 = vadd.f32 %v2466, 1.0
      %v2471 = vadd.f32 %v2467, 1.0
      %v2472 = vadd.f32 %v2468, 1.0
      %v2473 = vmul.f32 %v2317, %v2469
      %v2474 = vmul.f32 %v2318, %v2470
      %v2475 = vmul.f32 %v2319, %v2471
      %v2476 = vmul.f32 %v2320, %v2472
      %v2477 = vpack.c.bf16 %v2474, %v2473
      %v2478 = vpack.c.bf16 %v2476, %v2475
      %v2479 = vld [vmem:[%s806] sm:$0xf]
      %v2480 = vld [vmem:[%s806 + $0x4] sm:$0xf]
      %v2481 = vld [vmem:[%s806 + $0x8] sm:$0xf]
      %v2482 = vld [vmem:[%s806 + $0xc] sm:$0xf]
      %v2483 = vld [vmem:[%s806 + $0x10] sm:$0xf]
      %v2484 = vld [vmem:[%s806 + $0x14] sm:$0xf]
      %v2485 = vld [vmem:[%s806 + $0x18] sm:$0xf]
      %v2486 = vld [vmem:[%s806 + $0x1c] sm:$0xf]
      %v2487 = vld [vmem:[%s809] sm:$0x1]
      %v2489 = vperm.slane %v2487, 0
      %v2499 = vunpack.c.l.b16 %v2479
      %v2500 = vunpack.c.l.b16 %v2480
      %v2501 = vunpack.c.l.b16 %v2481
      %v2502 = vunpack.c.l.b16 %v2482
      %v2503 = vunpack.c.l.b16 %v2483
      %v2504 = vunpack.c.l.b16 %v2484
      %v2505 = vunpack.c.l.b16 %v2485
      %v2506 = vunpack.c.l.b16 %v2486
      %v2507 = vpack.c.b16 %v2500, %v2499
      %v2508 = vpack.c.b16 %v2502, %v2501
      %v2509 = vpack.c.b16 %v2504, %v2503
      %v2510 = vpack.c.b16 %v2506, %v2505
      %vm2515 = vcmask 523264
      %v2517 = vsel %vm2515, %v2477, 0
      %v2520 = vsel %vm2515, %v2478, 0
      %2522 = vmatpush.bf16.msra.mxu0 0
      %2523 = vmatpush.bf16.msra.mxu0 0
      %2524 = vmatpush.bf16.msra.mxu0 0
      %2525 = vmatpush.bf16.msra.mxu0 0
      %2526 = vmatpush.bf16.msra.mxu0 %v2510
      %2527 = vmatpush.bf16.msra.mxu0 %v2509
      %2528 = vmatpush.bf16.msra.mxu0 %v2508
      %2529 = vmatpush.bf16.msra.mxu0 %v2507
      %2530 = vmatmul.bf16.gmra.mxu0 %v2517
      %v2531 = vpop.f32.mrf.mxu0
      %v2532 = vadd.f32 %v2489, %v2531
      %v2533 = vpop.f32.mrf.mxu0
      %v2534 = vadd.f32 %v2489, %v2533
      %2535 = vmatmul.bf16.gmra.mxu0 %v2520
      %v2536 = vpop.f32.mrf.mxu0
      %v2537 = vadd.f32 %v2489, %v2536
      %v2538 = vpop.f32.mrf.mxu0
      %v2539 = vadd.f32 %v2489, %v2538
      %2540 = vdwg.mxu0
      %v2541 = vadd.f32 %v2266, %v2532
      %v2542 = vadd.f32 %v2267, %v2534
      %v2543 = vadd.f32 %v2268, %v2537
      %v2544 = vadd.f32 %v2269, %v2539
      %v2545 = vld [vmem:[%s812] sm:$0x1]
      %v2546 = vld [vmem:[%s815] sm:$0x1]
      %v2547 = vsel %vm967, %v2541, 0.0
      %2548 = vadd.xlane.f32.xlu0 %v2547
      %v2549 = vpop.xlane.xlu0 %2548
      %v2550 = vsel %vm967, %v2542, 0.0
      %2551 = vadd.xlane.f32.xlu0 %v2550
      %v2552 = vpop.xlane.xlu0 %2551
      %v2553 = vsel %vm967, %v2543, 0.0
      %2554 = vadd.xlane.f32.xlu0 %v2553
      %v2555 = vpop.xlane.xlu0 %2554
      %v2556 = vsel %vm967, %v2544, 0.0
      %2557 = vadd.xlane.f32.xlu0 %v2556
      %v2558 = vpop.xlane.xlu0 %2557
      %v2559 = vmul.f32 %v2549, %v2179
      %v2560 = vmul.f32 %v2552, %v2179
      %v2561 = vmul.f32 %v2555, %v2179
      %v2562 = vmul.f32 %v2558, %v2179
      %v2563 = vsub.f32 %v2541, %v2559
      %v2564 = vsub.f32 %v2542, %v2560
      %v2565 = vsub.f32 %v2543, %v2561
      %v2566 = vsub.f32 %v2544, %v2562
      %v2567 = vmul.f32 %v2563, %v2563
      %v2568 = vmul.f32 %v2564, %v2564
      %v2569 = vmul.f32 %v2565, %v2565
      %v2570 = vmul.f32 %v2566, %v2566
      %v2571 = vsel %vm967, %v2567, 0.0
      %2572 = vadd.xlane.f32.xlu0 %v2571
      %v2573 = vpop.xlane.xlu0 %2572
      %v2574 = vsel %vm967, %v2568, 0.0
      %2575 = vadd.xlane.f32.xlu0 %v2574
      %v2576 = vpop.xlane.xlu0 %2575
      %v2577 = vsel %vm967, %v2569, 0.0
      %2578 = vadd.xlane.f32.xlu0 %v2577
      %v2579 = vpop.xlane.xlu0 %2578
      %v2580 = vsel %vm967, %v2570, 0.0
      %2581 = vadd.xlane.f32.xlu0 %v2580
      %v2582 = vpop.xlane.xlu0 %2581
      %v2583 = vmul.f32 %v2573, %v2179
      %v2584 = vmul.f32 %v2576, %v2179
      %v2585 = vmul.f32 %v2579, %v2179
      %v2586 = vmul.f32 %v2582, %v2179
      %v2587 = vadd.f32 %v2583, 1e-12
      %v2588 = vadd.f32 %v2584, 1e-12
      %v2589 = vadd.f32 %v2585, 1e-12
      %v2590 = vadd.f32 %v2586, 1e-12
      %v2591 = vrsqrt.pop %v2587
      %v2592 = vmul.f32 %v2591, %v2587
      %v2593 = vmul.f32 %v2592, %v2591
      %v2594 = vmul.f32 0.5, %v2593
      %v2595 = vsub.f32 1.5, %v2594
      %v2596 = vmul.f32 %v2591, %v2595
      %vm2597 = vweird.f32 %v2587
      %vm2598 = vweird.f32 %v2591
      %vm2599 = vmor %vm2597, %vm2598
      %v2600 = vsel %vm2599, %v2591, %v2596
      %v2601 = vrsqrt.pop %v2588
      %v2602 = vmul.f32 %v2601, %v2588
      %v2603 = vmul.f32 %v2602, %v2601
      %v2604 = vmul.f32 0.5, %v2603
      %v2605 = vsub.f32 1.5, %v2604
      %v2606 = vmul.f32 %v2601, %v2605
      %vm2607 = vweird.f32 %v2588
      %vm2608 = vweird.f32 %v2601
      %vm2609 = vmor %vm2607, %vm2608
      %v2610 = vsel %vm2609, %v2601, %v2606
      %v2611 = vrsqrt.pop %v2589
      %v2612 = vmul.f32 %v2611, %v2589
      %v2613 = vmul.f32 %v2612, %v2611
      %v2614 = vmul.f32 0.5, %v2613
      %v2615 = vsub.f32 1.5, %v2614
      %v2616 = vmul.f32 %v2611, %v2615
      %vm2617 = vweird.f32 %v2589
      %vm2618 = vweird.f32 %v2611
      %vm2619 = vmor %vm2617, %vm2618
      %v2620 = vsel %vm2619, %v2611, %v2616
      %v2621 = vrsqrt.pop %v2590
      %v2622 = vmul.f32 %v2621, %v2590
      %v2623 = vmul.f32 %v2622, %v2621
      %v2624 = vmul.f32 0.5, %v2623
      %v2625 = vsub.f32 1.5, %v2624
      %v2626 = vmul.f32 %v2621, %v2625
      %vm2627 = vweird.f32 %v2590
      %vm2628 = vweird.f32 %v2621
      %vm2629 = vmor %vm2627, %vm2628
      %v2630 = vsel %vm2629, %v2621, %v2626
      %v2631 = vmul.f32 %v2563, %v2600
      %v2632 = vmul.f32 %v2564, %v2610
      %v2633 = vmul.f32 %v2565, %v2620
      %v2634 = vmul.f32 %v2566, %v2630
      %v2636 = vperm.slane %v2545, 0
      %v2638 = vmul.f32 %v2631, %v2636
      %v2639 = vmul.f32 %v2632, %v2636
      %v2640 = vmul.f32 %v2633, %v2636
      %v2641 = vmul.f32 %v2634, %v2636
      %v2643 = vperm.slane %v2546, 0
      %v2645 = vadd.f32 %v2638, %v2643
      %v2646 = vadd.f32 %v2639, %v2643
      %v2647 = vadd.f32 %v2640, %v2643
      %v2648 = vadd.f32 %v2641, %v2643
      %2649 = vst.msk [vmem:[#allocation2] sm:$0xff] %vm967, %v2645
      %2650 = vst.msk [vmem:[#allocation2 + $0x8] sm:$0xff] %vm967, %v2646
      %2651 = vst.msk [vmem:[#allocation2 + $0x10] sm:$0xff] %vm967, %v2647
      %2652 = vst.msk [vmem:[#allocation2 + $0x18] sm:$0xff] %vm967, %v2648
      %p2653 = scmp.eq.s32.totalorder %s34, 1
      // Predicated region
      $region109: #{bert_cnn_forward.1} parent=103 // pred_check
        %p2654 = pneg %p2653
      $region110: #{bert_cnn_forward.1} parent=103 // pred_check_branch
        %2656 = sbr.rel (%p2654) target = $region112
      $region111: #{bert_cnn_forward.1} parent=103 // pred_region
        %vm2661 = vcmask 1046528
        %v2662 = vrot.slane %v2645, 1
        %v2663 = vrot.slane %v2646, 1
        %v2664 = vsel %vm2661, %v2662, %v2663
        %v2665 = vrot.slane %v2647, 1
        %v2666 = vsel %vm2661, %v2663, %v2665
        %v2667 = vrot.slane %v2648, 1
        %v2668 = vsel %vm2661, %v2665, %v2667
        %v2671 = vsel %vm2661, %v2667, %v2662
        %vm2672 = vcmask 1045504
        %v2673 = vrot.slane %v2645, 2
        %v2674 = vrot.slane %v2646, 2
        %v2675 = vsel %vm2672, %v2673, %v2674
        %v2676 = vrot.slane %v2647, 2
        %v2677 = vsel %vm2672, %v2674, %v2676
        %v2678 = vrot.slane %v2648, 2
        %v2679 = vsel %vm2672, %v2676, %v2678
        %v2682 = vsel %vm2672, %v2678, %v2673
        %vm2683 = vcmask 1044480
        %v2684 = vrot.slane %v2645, 3
        %v2685 = vrot.slane %v2646, 3
        %v2686 = vsel %vm2683, %v2684, %v2685
        %v2687 = vrot.slane %v2647, 3
        %v2688 = vsel %vm2683, %v2685, %v2687
        %v2689 = vrot.slane %v2648, 3
        %v2690 = vsel %vm2683, %v2687, %v2689
        %v2693 = vsel %vm2683, %v2689, %v2684
        %vm2694 = vcmask 1043456
        %v2695 = vrot.slane %v2645, 4
        %v2696 = vrot.slane %v2646, 4
        %v2697 = vsel %vm2694, %v2695, %v2696
        %v2698 = vrot.slane %v2647, 4
        %v2699 = vsel %vm2694, %v2696, %v2698
        %v2700 = vrot.slane %v2648, 4
        %v2701 = vsel %vm2694, %v2698, %v2700
        %v2707 = vsel %vm2694, %v2700, %v2695
        %vm2708 = vcmask 1042432
        %v2709 = vrot.slane %v2645, 5
        %v2710 = vrot.slane %v2646, 5
        %v2711 = vsel %vm2708, %v2709, %v2710
        %v2712 = vrot.slane %v2647, 5
        %v2713 = vsel %vm2708, %v2710, %v2712
        %v2714 = vrot.slane %v2648, 5
        %v2715 = vsel %vm2708, %v2712, %v2714
        %v2718 = vsel %vm2708, %v2714, %v2709
        %2720 = vrot.lane.b32.xlu0 %v2664, 32
        %v2721 = vpop.permute.xlu0 %2720
        %2722 = vrot.lane.b32.xlu0 %v2666, 32
        %v2723 = vpop.permute.xlu0 %2722
        %2724 = vrot.lane.b32.xlu0 %v2668, 32
        %v2725 = vpop.permute.xlu0 %2724
        %2726 = vrot.lane.b32.xlu0 %v2671, 32
        %v2727 = vpop.permute.xlu0 %2726
        %2733 = vrot.lane.b32.xlu0 %v2675, 64
        %v2734 = vpop.permute.xlu0 %2733
        %2735 = vrot.lane.b32.xlu0 %v2677, 64
        %v2736 = vpop.permute.xlu0 %2735
        %2737 = vrot.lane.b32.xlu0 %v2679, 64
        %v2738 = vpop.permute.xlu0 %2737
        %2739 = vrot.lane.b32.xlu0 %v2682, 64
        %v2740 = vpop.permute.xlu0 %2739
        %2746 = vrot.lane.b32.xlu0 %v2686, 96
        %v2747 = vpop.permute.xlu0 %2746
        %2748 = vrot.lane.b32.xlu0 %v2688, 96
        %v2749 = vpop.permute.xlu0 %2748
        %2750 = vrot.lane.b32.xlu0 %v2690, 96
        %v2751 = vpop.permute.xlu0 %2750
        %2752 = vrot.lane.b32.xlu0 %v2693, 96
        %v2753 = vpop.permute.xlu0 %2752
        %2759 = vrot.lane.b32.xlu0 %v2711, 32
        %v2760 = vpop.permute.xlu0 %2759
        %2761 = vrot.lane.b32.xlu0 %v2713, 32
        %v2762 = vpop.permute.xlu0 %2761
        %2763 = vrot.lane.b32.xlu0 %v2715, 32
        %v2764 = vpop.permute.xlu0 %2763
        %2765 = vrot.lane.b32.xlu0 %v2718, 32
        %v2766 = vpop.permute.xlu0 %2765
        %v2771 = vsel %vm967, %v2645, %v2721
        %v2772 = vsel %vm967, %v2646, %v2723
        %v2773 = vsel %vm967, %v2647, %v2725
        %v2774 = vsel %vm967, %v2648, %v2727
        %v2775 = vsel %vm2515, %v2771, %v2734
        %v2776 = vsel %vm2515, %v2772, %v2736
        %v2777 = vsel %vm2515, %v2773, %v2738
        %v2778 = vsel %vm2515, %v2774, %v2740
        %vm2779 = vcmask 785408
        %v2780 = vsel %vm2779, %v2775, %v2747
        %v2781 = vsel %vm2779, %v2776, %v2749
        %v2782 = vsel %vm2779, %v2777, %v2751
        %v2783 = vsel %vm2779, %v2778, %v2753
        %v2784 = vsel %vm967, %v2697, %v2760
        %v2785 = vsel %vm967, %v2699, %v2762
        %v2786 = vsel %vm967, %v2701, %v2764
        %v2787 = vsel %vm967, %v2707, %v2766
        %v2788 = vpack.c.bf16 %v2781, %v2780
        %v2789 = vpack.c.bf16 %v2785, %v2784
        %v2790 = vpack.c.bf16 %v2783, %v2782
        %v2791 = vpack.c.bf16 %v2787, %v2786
        %v2792 = vld [vmem:[%s16] sm:$0xff]
        %v2793 = vld [vmem:[%s16 + $0x8] sm:$0xf]
        %v2794 = vld [vmem:[%s16 + $0xc] sm:$0xff]
        %v2795 = vld [vmem:[%s16 + $0x14] sm:$0xf]
        %v2796 = vld [vmem:[%s16 + $0x18] sm:$0xff]
        %v2797 = vld [vmem:[%s16 + $0x20] sm:$0xf]
        %v2798 = vld [vmem:[%s16 + $0x24] sm:$0xff]
        %v2799 = vld [vmem:[%s16 + $0x2c] sm:$0xf]
        %v2800 = vld [vmem:[%s16 + $0x30] sm:$0xff]
        %v2801 = vld [vmem:[%s16 + $0x38] sm:$0xf]
        %v2802 = vld [vmem:[%s16 + $0x3c] sm:$0xff]
        %v2803 = vld [vmem:[%s16 + $0x44] sm:$0xf]
        %v2804 = vld [vmem:[%s16 + $0x48] sm:$0xff]
        %v2805 = vld [vmem:[%s16 + $0x50] sm:$0xf]
        %v2806 = vld [vmem:[%s16 + $0x54] sm:$0xff]
        %v2807 = vld [vmem:[%s16 + $0x5c] sm:$0xf]
        %v2808 = vld [vmem:[%s16 + $0x60] sm:$0xff]
        %v2809 = vld [vmem:[%s16 + $0x68] sm:$0xf]
        %v2810 = vld [vmem:[%s16 + $0x6c] sm:$0xff]
        %v2811 = vld [vmem:[%s16 + $0x74] sm:$0xf]
        %v2812 = vld [vmem:[%s16 + $0x78] sm:$0xff]
        %v2813 = vld [vmem:[%s16 + $0x80] sm:$0xf]
        %v2814 = vld [vmem:[%s16 + $0x84] sm:$0xff]
        %v2815 = vld [vmem:[%s16 + $0x8c] sm:$0xf]
        %v2816 = vld [vmem:[%s16 + $0x90] sm:$0xff]
        %v2817 = vld [vmem:[%s16 + $0x98] sm:$0xf]
        %v2818 = vld [vmem:[%s16 + $0x9c] sm:$0xff]
        %v2819 = vld [vmem:[%s16 + $0xa4] sm:$0xf]
        %v2820 = vld [vmem:[%s16 + $0xa8] sm:$0xff]
        %v2821 = vld [vmem:[%s16 + $0xb0] sm:$0xf]
        %v2822 = vld [vmem:[%s16 + $0xb4] sm:$0xff]
        %v2823 = vld [vmem:[%s16 + $0xbc] sm:$0xf]
        %v2824 = vld [vmem:[%s16 + $0xc0] sm:$0xff]
        %v2825 = vld [vmem:[%s16 + $0xc8] sm:$0xf]
        %v2826 = vld [vmem:[%s16 + $0xcc] sm:$0xff]
        %v2827 = vld [vmem:[%s16 + $0xd4] sm:$0xf]
        %v2828 = vld [vmem:[%s16 + $0xd8] sm:$0xff]
        %v2829 = vld [vmem:[%s16 + $0xe0] sm:$0xf]
        %v2830 = vld [vmem:[%s16 + $0xe4] sm:$0xff]
        %v2831 = vld [vmem:[%s16 + $0xec] sm:$0xf]
        %v2832 = vld [vmem:[%s16 + $0xf0] sm:$0xff]
        %v2833 = vld [vmem:[%s16 + $0xf8] sm:$0xf]
        %v2834 = vld [vmem:[%s16 + $0xfc] sm:$0xff]
        %v2835 = vld [vmem:[%s16 + $0x104] sm:$0xf]
        %v2836 = vld [vmem:[%s16 + $0x108] sm:$0xff]
        %v2837 = vld [vmem:[%s16 + $0x110] sm:$0xf]
        %v2838 = vld [vmem:[%s16 + $0x114] sm:$0xff]
        %v2839 = vld [vmem:[%s16 + $0x11c] sm:$0xf]
        %v2840 = vld [vmem:[%s17] sm:$0x7]
        %v2842 = vperm.slane %v2840, 0
        %v2843 = vperm.slane %v2840, 1
        %v2844 = vperm.slane %v2840, 2
        %v2896 = vunpack.c.l.b16 %v2792
        %v2897 = vunpack.c.h.b16 %v2792
        %v2898 = vunpack.c.l.b16 %v2793
        %v2899 = vunpack.c.l.b16 %v2794
        %v2900 = vunpack.c.h.b16 %v2794
        %v2901 = vunpack.c.l.b16 %v2795
        %v2902 = vunpack.c.l.b16 %v2796
        %v2903 = vunpack.c.h.b16 %v2796
        %v2904 = vunpack.c.l.b16 %v2797
        %v2905 = vunpack.c.l.b16 %v2798
        %v2906 = vunpack.c.h.b16 %v2798
        %v2907 = vunpack.c.l.b16 %v2799
        %v2908 = vunpack.c.l.b16 %v2800
        %v2909 = vunpack.c.h.b16 %v2800
        %v2910 = vunpack.c.l.b16 %v2801
        %v2911 = vunpack.c.l.b16 %v2802
        %v2912 = vunpack.c.h.b16 %v2802
        %v2913 = vunpack.c.l.b16 %v2803
        %v2914 = vunpack.c.l.b16 %v2804
        %v2915 = vunpack.c.h.b16 %v2804
        %v2916 = vunpack.c.l.b16 %v2805
        %v2917 = vunpack.c.l.b16 %v2806
        %v2918 = vunpack.c.h.b16 %v2806
        %v2919 = vunpack.c.l.b16 %v2807
        %v2920 = vunpack.c.l.b16 %v2808
        %v2921 = vunpack.c.h.b16 %v2808
        %v2922 = vunpack.c.l.b16 %v2809
        %v2923 = vunpack.c.l.b16 %v2810
        %v2924 = vunpack.c.h.b16 %v2810
        %v2925 = vunpack.c.l.b16 %v2811
        %v2926 = vunpack.c.l.b16 %v2812
        %v2927 = vunpack.c.h.b16 %v2812
        %v2928 = vunpack.c.l.b16 %v2813
        %v2929 = vunpack.c.l.b16 %v2814
        %v2930 = vunpack.c.h.b16 %v2814
        %v2931 = vunpack.c.l.b16 %v2815
        %v2932 = vunpack.c.l.b16 %v2816
        %v2933 = vunpack.c.h.b16 %v2816
        %v2934 = vunpack.c.l.b16 %v2817
        %v2935 = vunpack.c.l.b16 %v2818
        %v2936 = vunpack.c.h.b16 %v2818
        %v2937 = vunpack.c.l.b16 %v2819
        %v2938 = vunpack.c.l.b16 %v2820
        %v2939 = vunpack.c.h.b16 %v2820
        %v2940 = vunpack.c.l.b16 %v2821
        %v2941 = vunpack.c.l.b16 %v2822
        %v2942 = vunpack.c.h.b16 %v2822
        %v2943 = vunpack.c.l.b16 %v2823
        %v2944 = vunpack.c.l.b16 %v2824
        %v2945 = vunpack.c.h.b16 %v2824
        %v2946 = vunpack.c.l.b16 %v2825
        %v2947 = vunpack.c.l.b16 %v2826
        %v2948 = vunpack.c.h.b16 %v2826
        %v2949 = vunpack.c.l.b16 %v2827
        %v2950 = vunpack.c.l.b16 %v2828
        %v2951 = vunpack.c.h.b16 %v2828
        %v2952 = vunpack.c.l.b16 %v2829
        %v2953 = vunpack.c.l.b16 %v2830
        %v2954 = vunpack.c.h.b16 %v2830
        %v2955 = vunpack.c.l.b16 %v2831
        %v2956 = vunpack.c.l.b16 %v2832
        %v2957 = vunpack.c.h.b16 %v2832
        %v2958 = vunpack.c.l.b16 %v2833
        %v2959 = vunpack.c.l.b16 %v2834
        %v2960 = vunpack.c.h.b16 %v2834
        %v2961 = vunpack.c.l.b16 %v2835
        %v2962 = vunpack.c.l.b16 %v2836
        %v2963 = vunpack.c.h.b16 %v2836
        %v2964 = vunpack.c.l.b16 %v2837
        %v2965 = vunpack.c.l.b16 %v2838
        %v2966 = vunpack.c.h.b16 %v2838
        %v2967 = vunpack.c.l.b16 %v2839
        %v2968 = vpack.c.b16 %v2899, %v2896
        %v2969 = vpack.c.b16 %v2900, %v2897
        %v2970 = vpack.c.b16 %v2901, %v2898
        %v2971 = vpack.c.b16 %v2905, %v2902
        %v2972 = vpack.c.b16 %v2906, %v2903
        %v2973 = vpack.c.b16 %v2907, %v2904
        %v2974 = vpack.c.b16 %v2911, %v2908
        %v2975 = vpack.c.b16 %v2912, %v2909
        %v2976 = vpack.c.b16 %v2913, %v2910
        %v2977 = vpack.c.b16 %v2917, %v2914
        %v2978 = vpack.c.b16 %v2918, %v2915
        %v2979 = vpack.c.b16 %v2919, %v2916
        %v2980 = vpack.c.b16 %v2923, %v2920
        %v2981 = vpack.c.b16 %v2924, %v2921
        %v2982 = vpack.c.b16 %v2925, %v2922
        %v2983 = vpack.c.b16 %v2929, %v2926
        %v2984 = vpack.c.b16 %v2930, %v2927
        %v2985 = vpack.c.b16 %v2931, %v2928
        %v2986 = vpack.c.b16 %v2935, %v2932
        %v2987 = vpack.c.b16 %v2936, %v2933
        %v2988 = vpack.c.b16 %v2937, %v2934
        %v2989 = vpack.c.b16 %v2941, %v2938
        %v2990 = vpack.c.b16 %v2942, %v2939
        %v2991 = vpack.c.b16 %v2943, %v2940
        %v2992 = vpack.c.b16 %v2947, %v2944
        %v2993 = vpack.c.b16 %v2948, %v2945
        %v2994 = vpack.c.b16 %v2949, %v2946
        %v2995 = vpack.c.b16 %v2953, %v2950
        %v2996 = vpack.c.b16 %v2954, %v2951
        %v2997 = vpack.c.b16 %v2955, %v2952
        %v2998 = vpack.c.b16 %v2959, %v2956
        %v2999 = vpack.c.b16 %v2960, %v2957
        %v3000 = vpack.c.b16 %v2961, %v2958
        %v3001 = vpack.c.b16 %v2965, %v2962
        %v3002 = vpack.c.b16 %v2966, %v2963
        %v3003 = vpack.c.b16 %v2967, %v2964
        %v3041 = vsel %vm2515, %v2789, 0
        %v3044 = vsel %vm2515, %v2791, 0
        %3046 = vmatpush.bf16.msra.mxu0 %v2989
        %3047 = vmatpush.bf16.msra.mxu0 %v2986
        %3048 = vmatpush.bf16.msra.mxu0 %v2983
        %3049 = vmatpush.bf16.msra.mxu0 %v2980
        %3050 = vmatpush.bf16.msra.mxu0 %v2977
        %3051 = vmatpush.bf16.msra.mxu0 %v2974
        %3052 = vmatpush.bf16.msra.mxu0 %v2971
        %3053 = vmatpush.bf16.msra.mxu0 %v2968
        %3054 = vmatmul.bf16.gmra.mxu0 %v2788
        %v3055 = vpop.f32.mrf.mxu0
        %v3056 = vadd.f32 %v2842, %v3055
        %v3057 = vpop.f32.mrf.mxu0
        %v3058 = vadd.f32 %v2842, %v3057
        %3059 = vmatmul.bf16.gmra.mxu0 %v2790
        %v3060 = vpop.f32.mrf.mxu0
        %v3061 = vadd.f32 %v2842, %v3060
        %v3062 = vpop.f32.mrf.mxu0
        %v3063 = vadd.f32 %v2842, %v3062
        %3064 = vdwg.mxu0
        %3065 = vmatpush.bf16.msra.mxu0 0
        %3066 = vmatpush.bf16.msra.mxu0 0
        %3067 = vmatpush.bf16.msra.mxu0 0
        %3068 = vmatpush.bf16.msra.mxu0 0
        %3069 = vmatpush.bf16.msra.mxu0 %v3001
        %3070 = vmatpush.bf16.msra.mxu0 %v2998
        %3071 = vmatpush.bf16.msra.mxu0 %v2995
        %3072 = vmatpush.bf16.msra.mxu0 %v2992
        %3073 = vmatmul.bf16.gmra.mxu0 %v3041
        %v3074 = vpop.f32.mrf.mxu0
        %v3075 = vadd.f32 %v3056, %v3074
        %v3076 = vpop.f32.mrf.mxu0
        %v3077 = vadd.f32 %v3058, %v3076
        %3078 = vmatmul.bf16.gmra.mxu0 %v3044
        %v3079 = vpop.f32.mrf.mxu0
        %v3080 = vadd.f32 %v3061, %v3079
        %v3081 = vpop.f32.mrf.mxu0
        %v3082 = vadd.f32 %v3063, %v3081
        %3083 = vdwg.mxu0
        %3084 = vmatpush.bf16.msra.mxu0 %v2990
        %3085 = vmatpush.bf16.msra.mxu0 %v2987
        %3086 = vmatpush.bf16.msra.mxu0 %v2984
        %3087 = vmatpush.bf16.msra.mxu0 %v2981
        %3088 = vmatpush.bf16.msra.mxu0 %v2978
        %3089 = vmatpush.bf16.msra.mxu0 %v2975
        %3090 = vmatpush.bf16.msra.mxu0 %v2972
        %3091 = vmatpush.bf16.msra.mxu0 %v2969
        %3092 = vmatmul.bf16.gmra.mxu0 %v2788
        %v3093 = vpop.f32.mrf.mxu0
        %v3094 = vadd.f32 %v2843, %v3093
        %v3095 = vpop.f32.mrf.mxu0
        %v3096 = vadd.f32 %v2843, %v3095
        %3097 = vmatmul.bf16.gmra.mxu0 %v2790
        %v3098 = vpop.f32.mrf.mxu0
        %v3099 = vadd.f32 %v2843, %v3098
        %v3100 = vpop.f32.mrf.mxu0
        %v3101 = vadd.f32 %v2843, %v3100
        %3102 = vdwg.mxu0
        %3103 = vmatpush.bf16.msra.mxu0 0
        %3104 = vmatpush.bf16.msra.mxu0 0
        %3105 = vmatpush.bf16.msra.mxu0 0
        %3106 = vmatpush.bf16.msra.mxu0 0
        %3107 = vmatpush.bf16.msra.mxu0 %v3002
        %3108 = vmatpush.bf16.msra.mxu0 %v2999
        %3109 = vmatpush.bf16.msra.mxu0 %v2996
        %3110 = vmatpush.bf16.msra.mxu0 %v2993
        %3111 = vmatmul.bf16.gmra.mxu0 %v3041
        %v3112 = vpop.f32.mrf.mxu0
        %v3113 = vadd.f32 %v3094, %v3112
        %v3114 = vpop.f32.mrf.mxu0
        %v3115 = vadd.f32 %v3096, %v3114
        %3116 = vmatmul.bf16.gmra.mxu0 %v3044
        %v3117 = vpop.f32.mrf.mxu0
        %v3118 = vadd.f32 %v3099, %v3117
        %v3119 = vpop.f32.mrf.mxu0
        %v3120 = vadd.f32 %v3101, %v3119
        %3121 = vdwg.mxu0
        %3122 = vmatpush.bf16.msra.mxu0 %v2991
        %3123 = vmatpush.bf16.msra.mxu0 %v2988
        %3124 = vmatpush.bf16.msra.mxu0 %v2985
        %3125 = vmatpush.bf16.msra.mxu0 %v2982
        %3126 = vmatpush.bf16.msra.mxu0 %v2979
        %3127 = vmatpush.bf16.msra.mxu0 %v2976
        %3128 = vmatpush.bf16.msra.mxu0 %v2973
        %3129 = vmatpush.bf16.msra.mxu0 %v2970
        %3130 = vmatmul.bf16.gmra.mxu0 %v2788
        %v3131 = vpop.f32.mrf.mxu0
        %v3132 = vadd.f32 %v2844, %v3131
        %v3133 = vpop.f32.mrf.mxu0
        %v3134 = vadd.f32 %v2844, %v3133
        %3135 = vmatmul.bf16.gmra.mxu0 %v2790
        %v3136 = vpop.f32.mrf.mxu0
        %v3137 = vadd.f32 %v2844, %v3136
        %v3138 = vpop.f32.mrf.mxu0
        %v3139 = vadd.f32 %v2844, %v3138
        %3140 = vdwg.mxu0
        %3141 = vmatpush.bf16.msra.mxu0 0
        %3142 = vmatpush.bf16.msra.mxu0 0
        %3143 = vmatpush.bf16.msra.mxu0 0
        %3144 = vmatpush.bf16.msra.mxu0 0
        %3145 = vmatpush.bf16.msra.mxu0 %v3003
        %3146 = vmatpush.bf16.msra.mxu0 %v3000
        %3147 = vmatpush.bf16.msra.mxu0 %v2997
        %3148 = vmatpush.bf16.msra.mxu0 %v2994
        %3149 = vmatmul.bf16.gmra.mxu0 %v3041
        %v3150 = vpop.f32.mrf.mxu0
        %v3151 = vadd.f32 %v3132, %v3150
        %v3152 = vpop.f32.mrf.mxu0
        %v3153 = vadd.f32 %v3134, %v3152
        %3154 = vmatmul.bf16.gmra.mxu0 %v3044
        %v3155 = vpop.f32.mrf.mxu0
        %v3156 = vadd.f32 %v3137, %v3155
        %v3157 = vpop.f32.mrf.mxu0
        %v3158 = vadd.f32 %v3139, %v3157
        %3159 = vdwg.mxu0
        %v3160 = vmax.f32 %v3075, 0.0
        %v3161 = vmax.f32 %v3113, 0.0
        %v3162 = vmax.f32 %v3151, 0.0
        %v3163 = vmax.f32 %v3077, 0.0
        %v3164 = vmax.f32 %v3115, 0.0
        %v3165 = vmax.f32 %v3153, 0.0
        %v3166 = vmax.f32 %v3080, 0.0
        %v3167 = vmax.f32 %v3118, 0.0
        %v3168 = vmax.f32 %v3156, 0.0
        %v3169 = vmax.f32 %v3082, 0.0
        %v3170 = vmax.f32 %v3120, 0.0
        %v3171 = vmax.f32 %v3158, 0.0
        %v3172 = vld [vmem:[%s18] sm:$0xff]
        %v3173 = vld [vmem:[%s18 + $0x8] sm:$0xff]
        %v3174 = vld [vmem:[%s18 + $0x10] sm:$0xff]
        %v3175 = vld [vmem:[%s18 + $0x18] sm:$0xff]
        %v3176 = vld [vmem:[%s18 + $0x20] sm:$0xff]
        %v3177 = vld [vmem:[%s18 + $0x28] sm:$0xff]
        %v3178 = vld [vmem:[%s18 + $0x30] sm:$0xff]
        %v3179 = vld [vmem:[%s18 + $0x38] sm:$0xff]
        %v3180 = vld [vmem:[%s18 + $0x40] sm:$0xff]
        %v3181 = vld [vmem:[%s18 + $0x48] sm:$0xff]
        %v3182 = vld [vmem:[%s18 + $0x50] sm:$0xff]
        %v3183 = vld [vmem:[%s18 + $0x58] sm:$0xff]
        %v3184 = vmul.f32 %v3160, %v3172
        %v3185 = vmul.f32 %v3161, %v3173
        %v3186 = vmul.f32 %v3162, %v3174
        %v3187 = vmul.f32 %v3163, %v3175
        %v3188 = vmul.f32 %v3164, %v3176
        %v3189 = vmul.f32 %v3165, %v3177
        %v3190 = vmul.f32 %v3166, %v3178
        %v3191 = vmul.f32 %v3167, %v3179
        %v3192 = vmul.f32 %v3168, %v3180
        %v3193 = vmul.f32 %v3169, %v3181
        %v3194 = vmul.f32 %v3170, %v3182
        %v3195 = vmul.f32 %v3171, %v3183
        %v3196 = vmax.f32 %v3184, %v3187
        %v3197 = vrot.slane %v3196, 4
        %v3198 = vmax.f32 %v3196, %v3197
        %v3199 = vrot.slane %v3198, 2
        %v3200 = vmax.f32 %v3198, %v3199
        %v3201 = vrot.slane %v3200, 1
        %v3202 = vmax.f32 %v3200, %v3201
        %v3203 = vmax.f32 %v3185, %v3188
        %v3204 = vrot.slane %v3203, 4
        %v3205 = vmax.f32 %v3203, %v3204
        %v3206 = vrot.slane %v3205, 2
        %v3207 = vmax.f32 %v3205, %v3206
        %v3208 = vrot.slane %v3207, 1
        %v3209 = vmax.f32 %v3207, %v3208
        %v3210 = vmax.f32 %v3186, %v3189
        %v3211 = vrot.slane %v3210, 4
        %v3212 = vmax.f32 %v3210, %v3211
        %v3213 = vrot.slane %v3212, 2
        %v3214 = vmax.f32 %v3212, %v3213
        %v3215 = vrot.slane %v3214, 1
        %v3216 = vmax.f32 %v3214, %v3215
        %v3217 = vmax.f32 %v3190, %v3193
        %v3218 = vrot.slane %v3217, 4
        %v3219 = vmax.f32 %v3217, %v3218
        %v3220 = vrot.slane %v3219, 2
        %v3221 = vmax.f32 %v3219, %v3220
        %v3222 = vrot.slane %v3221, 1
        %v3223 = vmax.f32 %v3221, %v3222
        %v3224 = vmax.f32 %v3191, %v3194
        %v3225 = vrot.slane %v3224, 4
        %v3226 = vmax.f32 %v3224, %v3225
        %v3227 = vrot.slane %v3226, 2
        %v3228 = vmax.f32 %v3226, %v3227
        %v3229 = vrot.slane %v3228, 1
        %v3230 = vmax.f32 %v3228, %v3229
        %v3231 = vmax.f32 %v3192, %v3195
        %v3232 = vrot.slane %v3231, 4
        %v3233 = vmax.f32 %v3231, %v3232
        %v3234 = vrot.slane %v3233, 2
        %v3235 = vmax.f32 %v3233, %v3234
        %v3236 = vrot.slane %v3235, 1
        %v3237 = vmax.f32 %v3235, %v3236
        %v3238 = vpack.c.bf16 %v3202, %v3202
        %v3239 = vpack.c.bf16 %v3209, %v3209
        %v3240 = vpack.c.bf16 %v3216, %v3216
        %v3241 = vpack.c.bf16 %v3223, %v3223
        %v3242 = vpack.c.bf16 %v3230, %v3230
        %v3243 = vpack.c.bf16 %v3237, %v3237
        %v3244 = vld [vmem:[%s19] sm:$0xf]
        %v3245 = vld [vmem:[%s19 + $0x4] sm:$0xf]
        %v3246 = vld [vmem:[%s19 + $0x8] sm:$0xf]
        %v3247 = vld [vmem:[%s19 + $0xc] sm:$0xf]
        %v3248 = vld [vmem:[%s19 + $0x10] sm:$0xf]
        %v3249 = vld [vmem:[%s19 + $0x14] sm:$0xf]
        %v3250 = vld [vmem:[%s19 + $0x18] sm:$0xf]
        %v3251 = vld [vmem:[%s19 + $0x1c] sm:$0xf]
        %v3252 = vld [vmem:[%s19 + $0x20] sm:$0xf]
        %v3253 = vld [vmem:[%s19 + $0x24] sm:$0xf]
        %v3254 = vld [vmem:[%s19 + $0x28] sm:$0xf]
        %v3255 = vld [vmem:[%s19 + $0x2c] sm:$0xf]
        %v3256 = vld [vmem:[%s19 + $0x30] sm:$0xf]
        %v3257 = vld [vmem:[%s19 + $0x34] sm:$0xf]
        %v3258 = vld [vmem:[%s19 + $0x38] sm:$0xf]
        %v3259 = vld [vmem:[%s19 + $0x3c] sm:$0xf]
        %v3260 = vld [vmem:[%s19 + $0x40] sm:$0xf]
        %v3261 = vld [vmem:[%s19 + $0x44] sm:$0xf]
        %v3262 = vld [vmem:[%s19 + $0x48] sm:$0xf]
        %v3263 = vld [vmem:[%s19 + $0x4c] sm:$0xf]
        %v3264 = vld [vmem:[%s19 + $0x50] sm:$0xf]
        %v3265 = vld [vmem:[%s19 + $0x54] sm:$0xf]
        %v3266 = vld [vmem:[%s19 + $0x58] sm:$0xf]
        %v3267 = vld [vmem:[%s19 + $0x5c] sm:$0xf]
        %v3268 = vld [vmem:[%s19 + $0x60] sm:$0xf]
        %v3269 = vld [vmem:[%s19 + $0x64] sm:$0xf]
        %v3270 = vld [vmem:[%s19 + $0x68] sm:$0xf]
        %v3271 = vld [vmem:[%s19 + $0x6c] sm:$0xf]
        %v3272 = vld [vmem:[%s19 + $0x70] sm:$0xf]
        %v3273 = vld [vmem:[%s19 + $0x74] sm:$0xf]
        %v3274 = vld [vmem:[%s19 + $0x78] sm:$0xf]
        %v3275 = vld [vmem:[%s19 + $0x7c] sm:$0xf]
        %v3276 = vld [vmem:[%s19 + $0x80] sm:$0xf]
        %v3277 = vld [vmem:[%s19 + $0x84] sm:$0xf]
        %v3278 = vld [vmem:[%s19 + $0x88] sm:$0xf]
        %v3279 = vld [vmem:[%s19 + $0x8c] sm:$0xf]
        %v3280 = vld [vmem:[%s19 + $0x90] sm:$0xf]
        %v3281 = vld [vmem:[%s19 + $0x94] sm:$0xf]
        %v3282 = vld [vmem:[%s19 + $0x98] sm:$0xf]
        %v3283 = vld [vmem:[%s19 + $0x9c] sm:$0xf]
        %v3284 = vld [vmem:[%s19 + $0xa0] sm:$0xf]
        %v3285 = vld [vmem:[%s19 + $0xa4] sm:$0xf]
        %v3286 = vld [vmem:[%s19 + $0xa8] sm:$0xf]
        %v3287 = vld [vmem:[%s19 + $0xac] sm:$0xf]
        %v3288 = vld [vmem:[%s19 + $0xb0] sm:$0xf]
        %v3289 = vld [vmem:[%s19 + $0xb4] sm:$0xf]
        %v3290 = vld [vmem:[%s19 + $0xb8] sm:$0xf]
        %v3291 = vld [vmem:[%s19 + $0xbc] sm:$0xf]
        %v3292 = vld [vmem:[#allocation3] sm:$0x1]
        %v3294 = vperm.slane %v3292, 0
        %v3302 = vunpack.c.l.b16 %v3238
        %v3303 = vunpack.c.l.b16 %v3239
        %v3304 = vunpack.c.l.b16 %v3240
        %v3305 = vunpack.c.l.b16 %v3241
        %v3306 = vunpack.c.l.b16 %v3242
        %v3307 = vunpack.c.l.b16 %v3243
        %vm3308 = vcmask 1041409
        %v3309 = vsel %vm3308, %v3305, %v3302
        %v3310 = vsel %vm3308, %v3306, %v3303
        %v3311 = vsel %vm3308, %v3307, %v3304
        %v3312 = vpack.c.b16 %v3309, %v3309
        %v3313 = vpack.c.b16 %v3310, %v3310
        %v3314 = vpack.c.b16 %v3311, %v3311
        %v3366 = vunpack.c.l.b16 %v3244
        %v3367 = vunpack.c.l.b16 %v3245
        %v3368 = vunpack.c.l.b16 %v3246
        %v3369 = vunpack.c.l.b16 %v3247
        %v3370 = vunpack.c.l.b16 %v3248
        %v3371 = vunpack.c.l.b16 %v3249
        %v3372 = vunpack.c.l.b16 %v3250
        %v3373 = vunpack.c.l.b16 %v3251
        %v3374 = vunpack.c.l.b16 %v3252
        %v3375 = vunpack.c.l.b16 %v3253
        %v3376 = vunpack.c.l.b16 %v3254
        %v3377 = vunpack.c.l.b16 %v3255
        %v3378 = vunpack.c.l.b16 %v3256
        %v3379 = vunpack.c.l.b16 %v3257
        %v3380 = vunpack.c.l.b16 %v3258
        %v3381 = vunpack.c.l.b16 %v3259
        %v3382 = vunpack.c.l.b16 %v3260
        %v3383 = vunpack.c.l.b16 %v3261
        %v3384 = vunpack.c.l.b16 %v3262
        %v3385 = vunpack.c.l.b16 %v3263
        %v3386 = vunpack.c.l.b16 %v3264
        %v3387 = vunpack.c.l.b16 %v3265
        %v3388 = vunpack.c.l.b16 %v3266
        %v3389 = vunpack.c.l.b16 %v3267
        %v3390 = vunpack.c.l.b16 %v3268
        %v3391 = vunpack.c.l.b16 %v3269
        %v3392 = vunpack.c.l.b16 %v3270
        %v3393 = vunpack.c.l.b16 %v3271
        %v3394 = vunpack.c.l.b16 %v3272
        %v3395 = vunpack.c.l.b16 %v3273
        %v3396 = vunpack.c.l.b16 %v3274
        %v3397 = vunpack.c.l.b16 %v3275
        %v3398 = vunpack.c.l.b16 %v3276
        %v3399 = vunpack.c.l.b16 %v3277
        %v3400 = vunpack.c.l.b16 %v3278
        %v3401 = vunpack.c.l.b16 %v3279
        %v3402 = vunpack.c.l.b16 %v3280
        %v3403 = vunpack.c.l.b16 %v3281
        %v3404 = vunpack.c.l.b16 %v3282
        %v3405 = vunpack.c.l.b16 %v3283
        %v3406 = vunpack.c.l.b16 %v3284
        %v3407 = vunpack.c.l.b16 %v3285
        %v3408 = vunpack.c.l.b16 %v3286
        %v3409 = vunpack.c.l.b16 %v3287
        %v3410 = vunpack.c.l.b16 %v3288
        %v3411 = vunpack.c.l.b16 %v3289
        %v3412 = vunpack.c.l.b16 %v3290
        %v3413 = vunpack.c.l.b16 %v3291
        %v3414 = vpack.c.b16 %v3367, %v3366
        %v3415 = vpack.c.b16 %v3369, %v3368
        %v3416 = vpack.c.b16 %v3371, %v3370
        %v3417 = vpack.c.b16 %v3373, %v3372
        %v3418 = vpack.c.b16 %v3375, %v3374
        %v3419 = vpack.c.b16 %v3377, %v3376
        %v3420 = vpack.c.b16 %v3379, %v3378
        %v3421 = vpack.c.b16 %v3381, %v3380
        %v3422 = vpack.c.b16 %v3383, %v3382
        %v3423 = vpack.c.b16 %v3385, %v3384
        %v3424 = vpack.c.b16 %v3387, %v3386
        %v3425 = vpack.c.b16 %v3389, %v3388
        %v3426 = vpack.c.b16 %v3391, %v3390
        %v3427 = vpack.c.b16 %v3393, %v3392
        %v3428 = vpack.c.b16 %v3395, %v3394
        %v3429 = vpack.c.b16 %v3397, %v3396
        %v3430 = vpack.c.b16 %v3399, %v3398
        %v3431 = vpack.c.b16 %v3401, %v3400
        %v3432 = vpack.c.b16 %v3403, %v3402
        %v3433 = vpack.c.b16 %v3405, %v3404
        %v3434 = vpack.c.b16 %v3407, %v3406
        %v3435 = vpack.c.b16 %v3409, %v3408
        %v3436 = vpack.c.b16 %v3411, %v3410
        %v3437 = vpack.c.b16 %v3413, %v3412
        %3462 = vmatpush.bf16.msra.mxu0 %v3421
        %3463 = vmatpush.bf16.msra.mxu0 %v3420
        %3464 = vmatpush.bf16.msra.mxu0 %v3419
        %3465 = vmatpush.bf16.msra.mxu0 %v3418
        %3466 = vmatpush.bf16.msra.mxu0 %v3417
        %3467 = vmatpush.bf16.msra.mxu0 %v3416
        %3468 = vmatpush.bf16.msra.mxu0 %v3415
        %3469 = vmatpush.bf16.msra.mxu0 %v3414
        %3470 = vmatmul.bf16.gmra.mxu0 %v3312
        %v3471 = vpop.f32.mrf.mxu0
        %v3472 = vadd.f32 %v3294, %v3471
        %v3473 = vpop.f32.mrf.mxu0
        %3474 = vdwg.mxu0
        %3475 = vmatpush.bf16.msra.mxu0 %v3429
        %3476 = vmatpush.bf16.msra.mxu0 %v3428
        %3477 = vmatpush.bf16.msra.mxu0 %v3427
        %3478 = vmatpush.bf16.msra.mxu0 %v3426
        %3479 = vmatpush.bf16.msra.mxu0 %v3425
        %3480 = vmatpush.bf16.msra.mxu0 %v3424
        %3481 = vmatpush.bf16.msra.mxu0 %v3423
        %3482 = vmatpush.bf16.msra.mxu0 %v3422
        %3483 = vmatmul.bf16.gmra.mxu0 %v3313
        %v3484 = vpop.f32.mrf.mxu0
        %v3485 = vadd.f32 %v3472, %v3484
        %v3486 = vpop.f32.mrf.mxu0
        %3487 = vdwg.mxu0
        %3488 = vmatpush.bf16.msra.mxu0 %v3437
        %3489 = vmatpush.bf16.msra.mxu0 %v3436
        %3490 = vmatpush.bf16.msra.mxu0 %v3435
        %3491 = vmatpush.bf16.msra.mxu0 %v3434
        %3492 = vmatpush.bf16.msra.mxu0 %v3433
        %3493 = vmatpush.bf16.msra.mxu0 %v3432
        %3494 = vmatpush.bf16.msra.mxu0 %v3431
        %3495 = vmatpush.bf16.msra.mxu0 %v3430
        %3496 = vmatmul.bf16.gmra.mxu0 %v3314
        %v3497 = vpop.f32.mrf.mxu0
        %v3498 = vadd.f32 %v3485, %v3497
        %v3499 = vpop.f32.mrf.mxu0
        %3500 = vdwg.mxu0
        %v3501 = vsub.f32 0.0, %v3498
        %v3502 = vmul.f32 %v3501, 1.442695
        %v3503 = vpow.pop %v3502
        %v3504 = vadd.f32 %v3503, 1.0
        %v3505 = vrcp.pop %v3504
        %v3506 = vmul.f32 %v3504, %v3505
        %v3507 = vsub.f32 1.0, %v3506
        %v3508 = vmul.f32 %v3505, %v3507
        %v3509 = vadd.f32 %v3505, %v3508
        %vm3510 = vweird.f32 %v3504
        %vm3511 = vweird.f32 %v3505
        %vm3512 = vmor %vm3510, %vm3511
        %v3513 = vsel %vm3512, %v3505, %v3509
        %v3514 = vand.u32 2147483647, %v3504
        %vm3515 = vcmp.eq.f32.partialorder %v3514, 8.507059e+37
        %v3516 = vand.u32 %v3504, 2147483648
        %v3517 = vor.u32 1.1754944e-38, %v3516
        %v3518 = vsel %vm3515, %v3517, %v3513
        %v3519 = vmul.f32 1.0, %v3518
        %vm3520 = vcmask 1024
        %3521 = vst.msk [vmem:[%s21] sm:$0x3] %vm3520, %v3519
      $region112: #{bert_cnn_forward.1} parent=103 // pred_fallthru
        _
      // Predicated region
      $region113: #{bert_cnn_forward.1} parent=103 // pred_check
        %p3522 = pneg %p548
      $region114: #{bert_cnn_forward.1} parent=103 // pred_check_branch
        %3524 = sbr.rel (%p3522) target = $region116
      $region115: #{bert_cnn_forward.1} parent=103 // pred_region
        _
      $region116: #{bert_cnn_forward.1} parent=103 // pred_fallthru
        _
      // Predicated region
      $region117: #{bert_cnn_forward.1} parent=103 // pred_check
        %p3525 = pneg %p548
      $region118: #{bert_cnn_forward.1} parent=103 // pred_check_branch
        %3527 = sbr.rel (%p3525) target = $region120
      $region119: #{bert_cnn_forward.1} parent=103 // pred_region
        _
      $region120: #{bert_cnn_forward.1} parent=103 // pred_fallthru
        _
    $region104: #{bert_cnn_forward.1} parent=5 // pred_fallthru
      _
    %p3528 = scmp.le.s32.totalorder 2, %s29
    // Predicated region
    $region121: #{bert_cnn_forward.1} parent=5 // pred_check
      %p3529 = pneg %p3528
    $region122: #{bert_cnn_forward.1} parent=5 // pred_check_branch
      %3531 = sbr.rel (%p3529) target = $region124
    $region123: #{bert_cnn_forward.1} parent=5 // pred_region
      %s3532 = ssub.s32 %s29, 2
    $region124: #{bert_cnn_forward.1} parent=5 // pred_fallthru
      _
  $region6: #{bert_cnn_forward.1} parent=0 // loop_footer
    %s33 = sadd.s32 1, %s29
  $region7: #{bert_cnn_forward.1} parent=0 // loop_footer_branch
    %28 = sbr.rel target = $region3
  $region8: #{bert_cnn_forward.1} parent=0 // loop_exit
    _

</llo_original>
